<compile_context>
chip_gen: v7x
topology: tpu7x:2x2x1
jax: 0.10.0
libtpu: 0.0.40
codegen_flags: <defaults>
</compile_context>

<pallas_src>
import jax
import jax.numpy as jnp
from jax import lax
from jax.experimental import pallas as pl
from jax.experimental.pallas import tpu as pltpu

EPS = 1e-5                       # nn.BatchNorm2d default eps
_VMEM_LIMIT = 32 * 1024 * 1024   # safe on v5e/v6e (128 MiB) and v7x (64 MiB)
_TM_CANDIDATES = (1024, 512, 256, 128, 64, 32, 16, 8)


# ----------------------------- Pallas kernels ------------------------------

def _mm_stats_kernel(x_ref, w_ref, y_ref, st_ref):
    """Single-shot (nk==1): Y = X @ W (f32 MXU acc), stored bf16; emit
    per-tile per-lane [sum, sum-of-squares] of the f32 product for BatchNorm."""
    y = jnp.dot(x_ref[...], w_ref[...], preferred_element_type=jnp.float32)
    y_ref[...] = y.astype(y_ref.dtype)
    st_ref[0:1, :] = jnp.sum(y, axis=0, keepdims=True)
    st_ref[1:2, :] = jnp.sum(y * y, axis=0, keepdims=True)


def _mm_stats_acc_kernel(x_ref, w_ref, y_ref, st_ref, acc_ref):
    """K-tiled fallback (nk>1).  NOTE: the k axis must stay innermost and
    'arbitrary' — y/st blocks are only written on the last k step and rely on
    the block staying resident across the k loop."""
    k = pl.program_id(2)

    @pl.when(k == 0)
    def _():
        acc_ref[...] = jnp.zeros_like(acc_ref)

    acc_ref[...] += jnp.dot(x_ref[...], w_ref[...],
                            preferred_element_type=jnp.float32)

    @pl.when(k == pl.num_programs(2) - 1)
    def _():
        y = acc_ref[...]
        y_ref[...] = y.astype(y_ref.dtype)
        st_ref[0:1, :] = jnp.sum(y, axis=0, keepdims=True)
        st_ref[1:2, :] = jnp.sum(y * y, axis=0, keepdims=True)


def _mm_tanh_kernel(x_ref, w_ref, b_ref, o_ref):
    """Single-shot (nk==1): O = tanh(X @ W + bias), stored bf16."""
    y = jnp.dot(x_ref[...], w_ref[...], preferred_element_type=jnp.float32)
    o_ref[...] = jnp.tanh(y + b_ref[...]).astype(o_ref.dtype)


def _mm_tanh_acc_kernel(x_ref, w_ref, b_ref, o_ref, acc_ref):
    k = pl.program_id(2)

    @pl.when(k == 0)
    def _():
        acc_ref[...] = jnp.zeros_like(acc_ref)

    acc_ref[...] += jnp.dot(x_ref[...], w_ref[...],
                            preferred_element_type=jnp.float32)

    @pl.when(k == pl.num_programs(2) - 1)
    def _():
        o_ref[...] = jnp.tanh(acc_ref[...] + b_ref[...]).astype(o_ref.dtype)


# ----------------------------- pallas_call wrappers -------------------------

def _round_up(x, m):
    return (x + m - 1) // m * m


def _pick_tile(n, candidates):
    for c in candidates:
        if c <= n and n % c == 0:
            return c
    return n


def _matmul_stats(x, w):
    """x (G,M,K) bf16 @ w (G,K,Cp) bf16 -> (y bf16 (G,M,Cp),
    stats f32 (G,nm,2,Cp)): stats[...,0,:]=col sum, stats[...,1,:]=col sumsq."""
    G, M, K = x.shape
    Cp = w.shape[2]
    tm = _pick_tile(M, _TM_CANDIDATES)
    tk = K if K <= 512 else _pick_tile(K, (512, 256, 128))
    nm, nk = M // tm, K // tk
    out_shape = (jax.ShapeDtypeStruct((G, M, Cp), jnp.bfloat16),
                 jax.ShapeDtypeStruct((G, nm, 2, Cp), jnp.float32))

    if nk == 1:
        return pl.pallas_call(
            _mm_stats_kernel,
            out_shape=out_shape,
            grid_spec=pltpu.PrefetchScalarGridSpec(
                num_scalar_prefetch=0,
                grid=(G, nm),
                in_specs=[
                    pl.BlockSpec((None, tm, K), lambda g, m: (g, m, 0)),
                    pl.BlockSpec((None, K, Cp), lambda g, m: (g, 0, 0)),
                ],
                out_specs=[
                    pl.BlockSpec((None, tm, Cp), lambda g, m: (g, m, 0)),
                    pl.BlockSpec((None, None, 2, Cp), lambda g, m: (g, m, 0, 0)),
                ]),
            compiler_params=pltpu.CompilerParams(
                dimension_semantics=("parallel", "parallel"),
                vmem_limit_bytes=_VMEM_LIMIT),
        )(x, w)

    # General K-tiled path (not exercised at the demo sizes).
    return pl.pallas_call(
        _mm_stats_acc_kernel,
        out_shape=out_shape,
        grid_spec=pltpu.PrefetchScalarGridSpec(
            num_scalar_prefetch=0,
            grid=(G, nm, nk),
            in_specs=[
                pl.BlockSpec((None, tm, tk), lambda g, m, k: (g, m, k)),
                pl.BlockSpec((None, tk, Cp), lambda g, m, k: (g, k, 0)),
            ],
            out_specs=[
                pl.BlockSpec((None, tm, Cp), lambda g, m, k: (g, m, 0)),
                pl.BlockSpec((None, None, 2, Cp), lambda g, m, k: (g, m, 0, 0)),
            ],
            scratch_shapes=[pltpu.VMEM((tm, Cp), jnp.float32)]),
        compiler_params=pltpu.CompilerParams(
            dimension_semantics=("parallel", "parallel", "arbitrary"),
            vmem_limit_bytes=_VMEM_LIMIT),
    )(x, w)


def _matmul_bias_tanh(x, w, bias):
    """x (G,M,K) bf16 @ w (G,K,Cp) bf16 + bias -> tanh, stored bf16."""
    G, M, K = x.shape
    Cp = w.shape[2]
    tm = _pick_tile(M, _TM_CANDIDATES)
    tk = K if K <= 512 else _pick_tile(K, (512, 256, 128))
    nm, nk = M // tm, K // tk
    out_shape = jax.ShapeDtypeStruct((G, M, Cp), jnp.bfloat16)

    if nk == 1:
        return pl.pallas_call(
            _mm_tanh_kernel,
            out_shape=out_shape,
            grid_spec=pltpu.PrefetchScalarGridSpec(
                num_scalar_prefetch=0,
                grid=(G, nm),
                in_specs=[
                    pl.BlockSpec((None, tm, K), lambda g, m: (g, m, 0)),
                    pl.BlockSpec((None, K, Cp), lambda g, m: (g, 0, 0)),
                    pl.BlockSpec((1, Cp), lambda g, m: (0, 0)),
                ],
                out_specs=pl.BlockSpec((None, tm, Cp), lambda g, m: (g, m, 0))),
            compiler_params=pltpu.CompilerParams(
                dimension_semantics=("parallel", "parallel"),
                vmem_limit_bytes=_VMEM_LIMIT),
        )(x, w, bias)

    return pl.pallas_call(
        _mm_tanh_acc_kernel,
        out_shape=out_shape,
        grid_spec=pltpu.PrefetchScalarGridSpec(
            num_scalar_prefetch=0,
            grid=(G, nm, nk),
            in_specs=[
                pl.BlockSpec((None, tm, tk), lambda g, m, k: (g, m, k)),
                pl.BlockSpec((None, tk, Cp), lambda g, m, k: (g, k, 0)),
                pl.BlockSpec((1, Cp), lambda g, m, k: (0, 0)),
            ],
            out_specs=pl.BlockSpec((None, tm, Cp), lambda g, m, k: (g, m, 0)),
            scratch_shapes=[pltpu.VMEM((tm, Cp), jnp.float32)]),
        compiler_params=pltpu.CompilerParams(
            dimension_semantics=("parallel", "parallel", "arbitrary"),
            vmem_limit_bytes=_VMEM_LIMIT),
    )(x, w, bias)


# ------------------------------ JAX glue ------------------------------------

def _subpixel_patches_weights(x_nhwc, w):
    """Lower a k=4, stride=2, pad=1 ConvTranspose2d to 4 sub-pixel matmuls.

    x: (N, H, W, Cin) channels-last (bf16).  w: (Cin, Cout, 4, 4) PyTorch layout.
    out[n, 2ry+py, 2rx+px, o] =
      sum_{dy,dx,i} xp[n, ry+py+dy, rx+px+dx, i] * w[i, o, 3-2dy-py, 3-2dx-px]
    Only the 4 taps that contribute to each output pixel are gathered.  The
    gather (and the previous layer's affine+ReLU feeding it) is fused XLA glue.
    """
    N, H, W, Cin = x_nhwc.shape
    xp = jnp.pad(x_nhwc.astype(jnp.bfloat16), ((0, 0), (1, 1), (1, 1), (0, 0)))
    patch_groups, weight_groups = [], []
    for py in range(2):
        for px in range(2):
            taps, wtaps = [], []
            for dy in range(2):
                for dx in range(2):
                    taps.append(xp[:, py + dy:py + dy + H,
                                   px + dx:px + dx + W, :])
                    wtaps.append(w[:, :, 3 - 2 * dy - py, 3 - 2 * dx - px])
            p = jnp.stack(taps, axis=3)                        # (N,H,W,4,Cin)
            patch_groups.append(p.reshape(N * H * W, 4 * Cin))
            weight_groups.append(jnp.concatenate(wtaps, axis=0))  # (4*Cin,Cout)
    patches = jnp.stack(patch_groups, axis=0)                  # (4, M, 4*Cin)
    w_stack = jnp.stack(weight_groups, axis=0)                 # (4, 4*Cin, Cout)
    return patches, w_stack


def _bn_from_stats(sums, sumsq, cnt, gamma, beta):
    # NOTE: E[x^2]-E[x]^2 in f32; fine at these magnitudes, a shifted/Welford
    # form would be safer for trained weights with large activations.
    mean = sums / cnt
    var = jnp.maximum(sumsq / cnt - mean * mean, 0.0)
    scale = gamma * lax.rsqrt(var + EPS)
    shift = beta - mean * scale
    return scale, shift


def init_generator_params(key, z_dim, img_ch, features_g):
    """Deterministic synthetic parameters matching Generator.__init__ (img_size=64)."""
    layer_specs = [
        (z_dim,           features_g * 16, 4, 1, 0, True),
        (features_g * 16, features_g * 8,  4, 2, 1, True),
        (features_g * 8,  features_g * 4,  4, 2, 1, True),
        (features_g * 4,  features_g * 2,  4, 2, 1, True),
        (features_g * 2,  img_ch,          4, 2, 1, False),
    ]
    params = []
    for (cin, cout, k, s, p, has_bn) in layer_specs:
        key, wk, bk = jax.random.split(key, 3)
        w = jax.random.normal(wk, (cin, cout, k, k), jnp.float32) * 0.02
        layer = {"w": w, "stride": s, "pad": p, "bn": has_bn}
        if has_bn:
            layer["gamma"] = jnp.ones((cout,), jnp.float32)
            layer["beta"] = jnp.zeros((cout,), jnp.float32)
        else:
            layer["bias"] = jax.random.normal(bk, (cout,), jnp.float32) * 0.02
        params.append(layer)
    return params


def generator_forward(z_nchw, params):
    """z: (N, z_dim, 1, 1) NCHW -> (N, img_ch, 64, 64) NCHW, values in (-1, 1)."""
    N = z_nchw.shape[0]

    # ---- layer 1: 1x1 -> 4x4 (k=4, s=1, p=0), 16 pixels folded into lanes ----
    layer = params[0]
    w = layer["w"]                               # (Cin, Cout, 4, 4)
    Cin, Cout = w.shape[0], w.shape[1]
    L = 16 * Cout
    Lp = _round_up(L, 128)
    Mp = _round_up(N, 8)                         # sublane-dense rows
    lhs = jnp.zeros((1, Mp, Cin), jnp.bfloat16)
    lhs = lhs.at[0, :N, :].set(z_nchw.reshape(N, Cin).astype(jnp.bfloat16))
    rhs = jnp.transpose(w, (0, 2, 3, 1)).reshape(Cin, L)       # lanes = (ky,kx,o)
    rhs = jnp.pad(rhs, ((0, 0), (0, Lp - L))).astype(jnp.bfloat16).reshape(1, Cin, Lp)
    y, st = _matmul_stats(lhs, rhs)              # y (1, Mp, Lp) bf16
    cnt = float(N * 16)
    sums = st[0, 0, 0, :L].reshape(16, Cout).sum(axis=0)
    sumsq = st[0, 0, 1, :L].reshape(16, Cout).sum(axis=0)
    scale, shift = _bn_from_stats(sums, sumsq, cnt, layer["gamma"], layer["beta"])
    yv = y[0, :N, :L].astype(jnp.float32).reshape(N, 4, 4, Cout)
    x = jnp.maximum(yv * scale + shift, 0.0).astype(jnp.bfloat16)   # NHWC bf16

    # ---- stride-2 BN blocks (layers 2-4): k=4, s=2, p=1 ----
    for layer in params[1:-1]:
        w = layer["w"]
        Cin, Cout = w.shape[0], w.shape[1]
        Cp = _round_up(Cout, 128)
        Nn, H, W, _ = x.shape
        patches, w_stack = _subpixel_patches_weights(x, w)     # (4,M,4Cin) bf16
        w_stack = jnp.pad(w_stack, ((0, 0), (0, 0), (0, Cp - Cout))
                          ).astype(jnp.bfloat16)
        y, st = _matmul_stats(patches, w_stack)                # bf16 (4, M, Cp)
        M = patches.shape[1]
        cnt = float(4 * M)                                     # = N*OH*OW
        sums = jnp.sum(st[:, :, 0, :Cout], axis=(0, 1))
        sumsq = jnp.sum(st[:, :, 1, :Cout], axis=(0, 1))
        scale, shift = _bn_from_stats(sums, sumsq, cnt,
                                      layer["gamma"], layer["beta"])
        a = jnp.maximum(y[:, :, :Cout].astype(jnp.float32) * scale + shift, 0.0)
        a = a.astype(jnp.bfloat16)
        # parity-major -> NHWC for the next layer's tap gather (fused XLA glue)
        x = a.reshape(2, 2, Nn, H, W, Cout).transpose(2, 3, 0, 4, 1, 5
                                                      ).reshape(Nn, 2 * H, 2 * W, Cout)

    # ---- final layer: ConvTranspose2d + bias + tanh ----
    layer = params[-1]
    w = layer["w"]
    Cin, Cout = w.shape[0], w.shape[1]
    Cp = _round_up(Cout, 128)
    Nn, H, W, _ = x.shape
    patches, w_stack = _subpixel_patches_weights(x, w)
    w_stack = jnp.pad(w_stack, ((0, 0), (0, 0), (0, Cp - Cout))).astype(jnp.bfloat16)
    bias = jnp.pad(layer["bias"], (0, Cp - Cout)).reshape(1, Cp).astype(jnp.float32)
    o = _matmul_bias_tanh(patches, w_stack, bias)              # bf16 (4, M, Cp)
    o = o[:, :, :Cout].astype(jnp.float32)
    out = o.reshape(2, 2, Nn, H, W, Cout).transpose(2, 5, 3, 0, 4, 1
                                                    ).reshape(Nn, Cout, 2 * H, 2 * W)
    return out                                                 # NCHW f32


# --------------------------- pure-JAX f32 reference --------------------------

def _reference_forward(z_nchw, params):
    y = z_nchw
    for layer in params:
        w = layer["w"]
        k, s, p = w.shape[2], layer["stride"], layer["pad"]
        w_conv = jnp.transpose(jnp.flip(w, (2, 3)), (1, 0, 2, 3))  # (Cout,Cin,k,k)
        y = lax.conv_general_dilated(
            y, w_conv, window_strides=(1, 1),
            padding=[(k - 1 - p, k - 1 - p)] * 2,
            lhs_dilation=(s, s),
            dimension_numbers=("NCHW", "OIHW", "NCHW"),
            precision=lax.Precision.HIGHEST)
        if layer["bn"]:
            mean = jnp.mean(y, axis=(0, 2, 3), keepdims=True)
            var = jnp.mean(jnp.square(y - mean), axis=(0, 2, 3), keepdims=True)
            y = (y - mean) * lax.rsqrt(var + EPS)
            y = y * layer["gamma"].reshape(1, -1, 1, 1) \
                + layer["beta"].reshape(1, -1, 1, 1)
            y = jnp.maximum(y, 0.0)
        else:
            y = jnp.tanh(y + layer["bias"].reshape(1, -1, 1, 1))
    return y


if __name__ == "__main__":
    Z_DIM, IMG_CH, FEATURES_G, BATCH = 32, 3, 4, 2

    key = jax.random.PRNGKey(0)
    key, zk, pk = jax.random.split(key, 3)
    z = jax.random.normal(zk, (BATCH, Z_DIM, 1, 1), jnp.float32)
    params = init_generator_params(pk, Z_DIM, IMG_CH, FEATURES_G)

    fwd = jax.jit(lambda zz: generator_forward(zz, params))
    out = jax.block_until_ready(fwd(z))

    assert out.shape == (BATCH, IMG_CH, 64, 64), out.shape
    assert out.dtype == jnp.float32
    assert bool(jnp.all(jnp.isfinite(out)))
    assert bool(jnp.all(jnp.abs(out) <= 1.0))          # tanh output range

    ref = _reference_forward(z, params)
    err = float(jnp.max(jnp.abs(out - ref)))
    assert err < 4e-2, f"max abs err vs f32 reference: {err}"
    print("KERNEL_OK")
</pallas_src>

<mosaic_0001>
module attributes {stable_mosaic.version = 11 : i64} {
  func.func @_mm_stats_kernel(%arg0: i32, %arg1: i32, %arg2: memref<1x8x32xbf16, #tpu.memory_space<vmem>>, %arg3: memref<1x32x1024xbf16, #tpu.memory_space<vmem>>, %arg4: memref<1x8x1024xbf16, #tpu.memory_space<vmem>>, %arg5: memref<1x1x2x1024xf32, #tpu.memory_space<vmem>>) attributes {dimension_semantics = [#tpu.dimension_semantics<parallel>, #tpu.dimension_semantics<parallel>], iteration_bounds = array<i64: 1, 1>, scalar_prefetch = 0 : i64, scratch_operands = 0 : i64, tpu.core_type = #tpu.core_type<tc>, window_params = [{transform_indices = @transform_0, window_bounds = array<i64: 1, 8, 32>}, {transform_indices = @transform_1, window_bounds = array<i64: 1, 32, 1024>}, {transform_indices = @transform_2, window_bounds = array<i64: 1, 8, 1024>}, {transform_indices = @transform_3, window_bounds = array<i64: 1, 1, 2, 1024>}]} {
    %c0 = arith.constant 0 : index
    %c0_0 = arith.constant 0 : index
    %c0_1 = arith.constant 0 : index
    %0 = vector.load %arg2[%c0, %c0_0, %c0_1] : memref<1x8x32xbf16, #tpu.memory_space<vmem>>, vector<1x8x32xbf16>
    %1 = vector.shape_cast %0 : vector<1x8x32xbf16> to vector<8x32xbf16>
    %c0_2 = arith.constant 0 : index
    %c0_3 = arith.constant 0 : index
    %c0_4 = arith.constant 0 : index
    %2 = vector.load %arg3[%c0_2, %c0_3, %c0_4] : memref<1x32x1024xbf16, #tpu.memory_space<vmem>>, vector<1x32x1024xbf16>
    %3 = vector.shape_cast %2 : vector<1x32x1024xbf16> to vector<32x1024xbf16>
    %cst = arith.constant dense<0.000000e+00> : vector<8x1024xf32>
    %4 = tpu.matmul %1, %3, %cst {dimension_numbers = #tpu.dot_dimension_numbers<[1], [0], [0], [1], [0, 0, 1, 1], [], []>} : vector<8x32xbf16>, vector<32x1024xbf16>, vector<8x1024xf32> -> vector<8x1024xf32>
    %5 = arith.truncf %4 : vector<8x1024xf32> to vector<8x1024xbf16>
    %c0_5 = arith.constant 0 : index
    %c0_6 = arith.constant 0 : index
    %c0_7 = arith.constant 0 : index
    %6 = vector.load %arg4[%c0_5, %c0_6, %c0_7] : memref<1x8x1024xbf16, #tpu.memory_space<vmem>>, vector<1x8x1024xbf16>
    %7 = vector.shape_cast %6 : vector<1x8x1024xbf16> to vector<8x1024xbf16>
    %8 = vector.shape_cast %5 : vector<8x1024xbf16> to vector<1x8x1024xbf16>
    tpu.vector_store %arg4[%c0_5, %c0_6, %c0_7], %8 {strides = array<i32>} : memref<1x8x1024xbf16, #tpu.memory_space<vmem>>, vector<1x8x1024xbf16>,
    %cst_8 = arith.constant dense<0.000000e+00> : vector<1024xf32>
    %9 = vector.multi_reduction <add>, %4, %cst_8 [0] : vector<8x1024xf32> to vector<1024xf32>
    %10 = vector.shape_cast %9 : vector<1024xf32> to vector<1x1024xf32>
    %c0_9 = arith.constant 0 : index
    %c0_10 = arith.constant 0 : index
    %c0_11 = arith.constant 0 : index
    %c0_12 = arith.constant 0 : index
    %11 = vector.load %arg5[%c0_9, %c0_10, %c0_11, %c0_12] : memref<1x1x2x1024xf32, #tpu.memory_space<vmem>>, vector<1x1x1x1024xf32>
    %12 = vector.shape_cast %11 : vector<1x1x1x1024xf32> to vector<1x1024xf32>
    %13 = vector.shape_cast %10 : vector<1x1024xf32> to vector<1x1x1x1024xf32>
    tpu.vector_store %arg5[%c0_9, %c0_10, %c0_11, %c0_12], %13 {strides = array<i32>} : memref<1x1x2x1024xf32, #tpu.memory_space<vmem>>, vector<1x1x1x1024xf32>,
    %14 = arith.mulf %4, %4 : vector<8x1024xf32>
    %cst_13 = arith.constant dense<0.000000e+00> : vector<1024xf32>
    %15 = vector.multi_reduction <add>, %14, %cst_13 [0] : vector<8x1024xf32> to vector<1024xf32>
    %16 = vector.shape_cast %15 : vector<1024xf32> to vector<1x1024xf32>
    %c0_14 = arith.constant 0 : index
    %c0_15 = arith.constant 0 : index
    %c1 = arith.constant 1 : index
    %c0_16 = arith.constant 0 : index
    %17 = vector.load %arg5[%c0_14, %c0_15, %c1, %c0_16] : memref<1x1x2x1024xf32, #tpu.memory_space<vmem>>, vector<1x1x1x1024xf32>
    %18 = vector.shape_cast %17 : vector<1x1x1x1024xf32> to vector<1x1024xf32>
    %19 = vector.shape_cast %16 : vector<1x1024xf32> to vector<1x1x1x1024xf32>
    tpu.vector_store %arg5[%c0_14, %c0_15, %c1, %c0_16], %19 {strides = array<i32>} : memref<1x1x2x1024xf32, #tpu.memory_space<vmem>>, vector<1x1x1x1024xf32>,
    return
  }
  func.func @transform_0(%arg0: i32, %arg1: i32) -> (i32, i32, i32) {
    %c0_i32 = arith.constant 0 : i32
    %c0_i32_0 = arith.constant 0 : i32
    return %arg0, %arg1, %c0_i32 : i32, i32, i32
  }
  func.func @transform_1(%arg0: i32, %arg1: i32) -> (i32, i32, i32) {
    %c0_i32 = arith.constant 0 : i32
    %c0_i32_0 = arith.constant 0 : i32
    %c0_i32_1 = arith.constant 0 : i32
    return %arg0, %c0_i32, %c0_i32_0 : i32, i32, i32
  }
  func.func @transform_2(%arg0: i32, %arg1: i32) -> (i32, i32, i32) {
    %c0_i32 = arith.constant 0 : i32
    %c0_i32_0 = arith.constant 0 : i32
    return %arg0, %arg1, %c0_i32 : i32, i32, i32
  }
  func.func @transform_3(%arg0: i32, %arg1: i32) -> (i32, i32, i32, i32) {
    %c0_i32 = arith.constant 0 : i32
    %c0_i32_0 = arith.constant 0 : i32
    %c0_i32_1 = arith.constant 0 : i32
    return %arg0, %arg1, %c0_i32, %c0_i32_0 : i32, i32, i32, i32
  }
}

module attributes {stable_mosaic.version = 11 : i64} {
  func.func @_mm_stats_kernel(%arg0: i32, %arg1: i32, %arg2: memref<1x32x256xbf16, #tpu.memory_space<vmem>>, %arg3: memref<1x256x128xbf16, #tpu.memory_space<vmem>>, %arg4: memref<1x32x128xbf16, #tpu.memory_space<vmem>>, %arg5: memref<1x1x2x128xf32, #tpu.memory_space<vmem>>) attributes {dimension_semantics = [#tpu.dimension_semantics<parallel>, #tpu.dimension_semantics<parallel>], iteration_bounds = array<i64: 4, 1>, scalar_prefetch = 0 : i64, scratch_operands = 0 : i64, tpu.core_type = #tpu.core_type<tc>, window_params = [{transform_indices = @transform_0, window_bounds = array<i64: 1, 32, 256>}, {transform_indices = @transform_1, window_bounds = array<i64: 1, 256, 128>}, {transform_indices = @transform_2, window_bounds = array<i64: 1, 32, 128>}, {transform_indices = @transform_3, window_bounds = array<i64: 1, 1, 2, 128>}]} {
    %c0 = arith.constant 0 : index
    %c0_0 = arith.constant 0 : index
    %c0_1 = arith.constant 0 : index
    %0 = vector.load %arg2[%c0, %c0_0, %c0_1] : memref<1x32x256xbf16, #tpu.memory_space<vmem>>, vector<1x32x256xbf16>
    %1 = vector.shape_cast %0 : vector<1x32x256xbf16> to vector<32x256xbf16>
    %c0_2 = arith.constant 0 : index
    %c0_3 = arith.constant 0 : index
    %c0_4 = arith.constant 0 : index
    %2 = vector.load %arg3[%c0_2, %c0_3, %c0_4] : memref<1x256x128xbf16, #tpu.memory_space<vmem>>, vector<1x256x128xbf16>
    %3 = vector.shape_cast %2 : vector<1x256x128xbf16> to vector<256x128xbf16>
    %cst = arith.constant dense<0.000000e+00> : vector<32x128xf32>
    %4 = tpu.matmul %1, %3, %cst {dimension_numbers = #tpu.dot_dimension_numbers<[1], [0], [0], [1], [0, 0, 1, 1], [], []>} : vector<32x256xbf16>, vector<256x128xbf16>, vector<32x128xf32> -> vector<32x128xf32>
    %5 = arith.truncf %4 : vector<32x128xf32> to vector<32x128xbf16>
    %c0_5 = arith.constant 0 : index
    %c0_6 = arith.constant 0 : index
    %c0_7 = arith.constant 0 : index
    %6 = vector.load %arg4[%c0_5, %c0_6, %c0_7] : memref<1x32x128xbf16, #tpu.memory_space<vmem>>, vector<1x32x128xbf16>
    %7 = vector.shape_cast %6 : vector<1x32x128xbf16> to vector<32x128xbf16>
    %8 = vector.shape_cast %5 : vector<32x128xbf16> to vector<1x32x128xbf16>
    tpu.vector_store %arg4[%c0_5, %c0_6, %c0_7], %8 {strides = array<i32>} : memref<1x32x128xbf16, #tpu.memory_space<vmem>>, vector<1x32x128xbf16>,
    %cst_8 = arith.constant dense<0.000000e+00> : vector<128xf32>
    %9 = vector.multi_reduction <add>, %4, %cst_8 [0] : vector<32x128xf32> to vector<128xf32>
    %10 = vector.shape_cast %9 : vector<128xf32> to vector<1x128xf32>
    %c0_9 = arith.constant 0 : index
    %c0_10 = arith.constant 0 : index
    %c0_11 = arith.constant 0 : index
    %c0_12 = arith.constant 0 : index
    %11 = vector.load %arg5[%c0_9, %c0_10, %c0_11, %c0_12] : memref<1x1x2x128xf32, #tpu.memory_space<vmem>>, vector<1x1x1x128xf32>
    %12 = vector.shape_cast %11 : vector<1x1x1x128xf32> to vector<1x128xf32>
    %13 = vector.shape_cast %10 : vector<1x128xf32> to vector<1x1x1x128xf32>
    tpu.vector_store %arg5[%c0_9, %c0_10, %c0_11, %c0_12], %13 {strides = array<i32>} : memref<1x1x2x128xf32, #tpu.memory_space<vmem>>, vector<1x1x1x128xf32>,
    %14 = arith.mulf %4, %4 : vector<32x128xf32>
    %cst_13 = arith.constant dense<0.000000e+00> : vector<128xf32>
    %15 = vector.multi_reduction <add>, %14, %cst_13 [0] : vector<32x128xf32> to vector<128xf32>
    %16 = vector.shape_cast %15 : vector<128xf32> to vector<1x128xf32>
    %c0_14 = arith.constant 0 : index
    %c0_15 = arith.constant 0 : index
    %c1 = arith.constant 1 : index
    %c0_16 = arith.constant 0 : index
    %17 = vector.load %arg5[%c0_14, %c0_15, %c1, %c0_16] : memref<1x1x2x128xf32, #tpu.memory_space<vmem>>, vector<1x1x1x128xf32>
    %18 = vector.shape_cast %17 : vector<1x1x1x128xf32> to vector<1x128xf32>
    %19 = vector.shape_cast %16 : vector<1x128xf32> to vector<1x1x1x128xf32>
    tpu.vector_store %arg5[%c0_14, %c0_15, %c1, %c0_16], %19 {strides = array<i32>} : memref<1x1x2x128xf32, #tpu.memory_space<vmem>>, vector<1x1x1x128xf32>,
    return
  }
  func.func @transform_0(%arg0: i32, %arg1: i32) -> (i32, i32, i32) {
    %c0_i32 = arith.constant 0 : i32
    %c0_i32_0 = arith.constant 0 : i32
    return %arg0, %arg1, %c0_i32 : i32, i32, i32
  }
  func.func @transform_1(%arg0: i32, %arg1: i32) -> (i32, i32, i32) {
    %c0_i32 = arith.constant 0 : i32
    %c0_i32_0 = arith.constant 0 : i32
    %c0_i32_1 = arith.constant 0 : i32
    return %arg0, %c0_i32, %c0_i32_0 : i32, i32, i32
  }
  func.func @transform_2(%arg0: i32, %arg1: i32) -> (i32, i32, i32) {
    %c0_i32 = arith.constant 0 : i32
    %c0_i32_0 = arith.constant 0 : i32
    return %arg0, %arg1, %c0_i32 : i32, i32, i32
  }
  func.func @transform_3(%arg0: i32, %arg1: i32) -> (i32, i32, i32, i32) {
    %c0_i32 = arith.constant 0 : i32
    %c0_i32_0 = arith.constant 0 : i32
    %c0_i32_1 = arith.constant 0 : i32
    return %arg0, %arg1, %c0_i32, %c0_i32_0 : i32, i32, i32, i32
  }
}

module attributes {stable_mosaic.version = 11 : i64} {
  func.func @_mm_stats_kernel(%arg0: i32, %arg1: i32, %arg2: memref<1x128x128xbf16, #tpu.memory_space<vmem>>, %arg3: memref<1x128x128xbf16, #tpu.memory_space<vmem>>, %arg4: memref<1x128x128xbf16, #tpu.memory_space<vmem>>, %arg5: memref<1x1x2x128xf32, #tpu.memory_space<vmem>>) attributes {dimension_semantics = [#tpu.dimension_semantics<parallel>, #tpu.dimension_semantics<parallel>], iteration_bounds = array<i64: 4, 1>, scalar_prefetch = 0 : i64, scratch_operands = 0 : i64, tpu.core_type = #tpu.core_type<tc>, window_params = [{transform_indices = @transform_0, window_bounds = array<i64: 1, 128, 128>}, {transform_indices = @transform_1, window_bounds = array<i64: 1, 128, 128>}, {transform_indices = @transform_2, window_bounds = array<i64: 1, 128, 128>}, {transform_indices = @transform_3, window_bounds = array<i64: 1, 1, 2, 128>}]} {
    %c0 = arith.constant 0 : index
    %c0_0 = arith.constant 0 : index
    %c0_1 = arith.constant 0 : index
    %0 = vector.load %arg2[%c0, %c0_0, %c0_1] : memref<1x128x128xbf16, #tpu.memory_space<vmem>>, vector<1x128x128xbf16>
    %1 = vector.shape_cast %0 : vector<1x128x128xbf16> to vector<128x128xbf16>
    %c0_2 = arith.constant 0 : index
    %c0_3 = arith.constant 0 : index
    %c0_4 = arith.constant 0 : index
    %2 = vector.load %arg3[%c0_2, %c0_3, %c0_4] : memref<1x128x128xbf16, #tpu.memory_space<vmem>>, vector<1x128x128xbf16>
    %3 = vector.shape_cast %2 : vector<1x128x128xbf16> to vector<128x128xbf16>
    %cst = arith.constant dense<0.000000e+00> : vector<128x128xf32>
    %4 = tpu.matmul %1, %3, %cst {dimension_numbers = #tpu.dot_dimension_numbers<[1], [0], [0], [1], [0, 0, 1, 1], [], []>} : vector<128x128xbf16>, vector<128x128xbf16>, vector<128x128xf32> -> vector<128x128xf32>
    %5 = arith.truncf %4 : vector<128x128xf32> to vector<128x128xbf16>
    %c0_5 = arith.constant 0 : index
    %c0_6 = arith.constant 0 : index
    %c0_7 = arith.constant 0 : index
    %6 = vector.load %arg4[%c0_5, %c0_6, %c0_7] : memref<1x128x128xbf16, #tpu.memory_space<vmem>>, vector<1x128x128xbf16>
    %7 = vector.shape_cast %6 : vector<1x128x128xbf16> to vector<128x128xbf16>
    %8 = vector.shape_cast %5 : vector<128x128xbf16> to vector<1x128x128xbf16>
    tpu.vector_store %arg4[%c0_5, %c0_6, %c0_7], %8 {strides = array<i32>} : memref<1x128x128xbf16, #tpu.memory_space<vmem>>, vector<1x128x128xbf16>,
    %cst_8 = arith.constant dense<0.000000e+00> : vector<128xf32>
    %9 = vector.multi_reduction <add>, %4, %cst_8 [0] : vector<128x128xf32> to vector<128xf32>
    %10 = vector.shape_cast %9 : vector<128xf32> to vector<1x128xf32>
    %c0_9 = arith.constant 0 : index
    %c0_10 = arith.constant 0 : index
    %c0_11 = arith.constant 0 : index
    %c0_12 = arith.constant 0 : index
    %11 = vector.load %arg5[%c0_9, %c0_10, %c0_11, %c0_12] : memref<1x1x2x128xf32, #tpu.memory_space<vmem>>, vector<1x1x1x128xf32>
    %12 = vector.shape_cast %11 : vector<1x1x1x128xf32> to vector<1x128xf32>
    %13 = vector.shape_cast %10 : vector<1x128xf32> to vector<1x1x1x128xf32>
    tpu.vector_store %arg5[%c0_9, %c0_10, %c0_11, %c0_12], %13 {strides = array<i32>} : memref<1x1x2x128xf32, #tpu.memory_space<vmem>>, vector<1x1x1x128xf32>,
    %14 = arith.mulf %4, %4 : vector<128x128xf32>
    %cst_13 = arith.constant dense<0.000000e+00> : vector<128xf32>
    %15 = vector.multi_reduction <add>, %14, %cst_13 [0] : vector<128x128xf32> to vector<128xf32>
    %16 = vector.shape_cast %15 : vector<128xf32> to vector<1x128xf32>
    %c0_14 = arith.constant 0 : index
    %c0_15 = arith.constant 0 : index
    %c1 = arith.constant 1 : index
    %c0_16 = arith.constant 0 : index
    %17 = vector.load %arg5[%c0_14, %c0_15, %c1, %c0_16] : memref<1x1x2x128xf32, #tpu.memory_space<vmem>>, vector<1x1x1x128xf32>
    %18 = vector.shape_cast %17 : vector<1x1x1x128xf32> to vector<1x128xf32>
    %19 = vector.shape_cast %16 : vector<1x128xf32> to vector<1x1x1x128xf32>
    tpu.vector_store %arg5[%c0_14, %c0_15, %c1, %c0_16], %19 {strides = array<i32>} : memref<1x1x2x128xf32, #tpu.memory_space<vmem>>, vector<1x1x1x128xf32>,
    return
  }
  func.func @transform_0(%arg0: i32, %arg1: i32) -> (i32, i32, i32) {
    %c0_i32 = arith.constant 0 : i32
    %c0_i32_0 = arith.constant 0 : i32
    return %arg0, %arg1, %c0_i32 : i32, i32, i32
  }
  func.func @transform_1(%arg0: i32, %arg1: i32) -> (i32, i32, i32) {
    %c0_i32 = arith.constant 0 : i32
    %c0_i32_0 = arith.constant 0 : i32
    %c0_i32_1 = arith.constant 0 : i32
    return %arg0, %c0_i32, %c0_i32_0 : i32, i32, i32
  }
  func.func @transform_2(%arg0: i32, %arg1: i32) -> (i32, i32, i32) {
    %c0_i32 = arith.constant 0 : i32
    %c0_i32_0 = arith.constant 0 : i32
    return %arg0, %arg1, %c0_i32 : i32, i32, i32
  }
  func.func @transform_3(%arg0: i32, %arg1: i32) -> (i32, i32, i32, i32) {
    %c0_i32 = arith.constant 0 : i32
    %c0_i32_0 = arith.constant 0 : i32
    %c0_i32_1 = arith.constant 0 : i32
    return %arg0, %arg1, %c0_i32, %c0_i32_0 : i32, i32, i32, i32
  }
}

module attributes {stable_mosaic.version = 11 : i64} {
  func.func @_mm_stats_kernel(%arg0: i32, %arg1: i32, %arg2: memref<1x512x64xbf16, #tpu.memory_space<vmem>>, %arg3: memref<1x64x128xbf16, #tpu.memory_space<vmem>>, %arg4: memref<1x512x128xbf16, #tpu.memory_space<vmem>>, %arg5: memref<1x1x2x128xf32, #tpu.memory_space<vmem>>) attributes {dimension_semantics = [#tpu.dimension_semantics<parallel>, #tpu.dimension_semantics<parallel>], iteration_bounds = array<i64: 4, 1>, scalar_prefetch = 0 : i64, scratch_operands = 0 : i64, tpu.core_type = #tpu.core_type<tc>, window_params = [{transform_indices = @transform_0, window_bounds = array<i64: 1, 512, 64>}, {transform_indices = @transform_1, window_bounds = array<i64: 1, 64, 128>}, {transform_indices = @transform_2, window_bounds = array<i64: 1, 512, 128>}, {transform_indices = @transform_3, window_bounds = array<i64: 1, 1, 2, 128>}]} {
    %c0 = arith.constant 0 : index
    %c0_0 = arith.constant 0 : index
    %c0_1 = arith.constant 0 : index
    %0 = vector.load %arg2[%c0, %c0_0, %c0_1] : memref<1x512x64xbf16, #tpu.memory_space<vmem>>, vector<1x512x64xbf16>
    %1 = vector.shape_cast %0 : vector<1x512x64xbf16> to vector<512x64xbf16>
    %c0_2 = arith.constant 0 : index
    %c0_3 = arith.constant 0 : index
    %c0_4 = arith.constant 0 : index
    %2 = vector.load %arg3[%c0_2, %c0_3, %c0_4] : memref<1x64x128xbf16, #tpu.memory_space<vmem>>, vector<1x64x128xbf16>
    %3 = vector.shape_cast %2 : vector<1x64x128xbf16> to vector<64x128xbf16>
    %cst = arith.constant dense<0.000000e+00> : vector<512x128xf32>
    %4 = tpu.matmul %1, %3, %cst {dimension_numbers = #tpu.dot_dimension_numbers<[1], [0], [0], [1], [0, 0, 1, 1], [], []>} : vector<512x64xbf16>, vector<64x128xbf16>, vector<512x128xf32> -> vector<512x128xf32>
    %5 = arith.truncf %4 : vector<512x128xf32> to vector<512x128xbf16>
    %c0_5 = arith.constant 0 : index
    %c0_6 = arith.constant 0 : index
    %c0_7 = arith.constant 0 : index
    %6 = vector.load %arg4[%c0_5, %c0_6, %c0_7] : memref<1x512x128xbf16, #tpu.memory_space<vmem>>, vector<1x512x128xbf16>
    %7 = vector.shape_cast %6 : vector<1x512x128xbf16> to vector<512x128xbf16>
    %8 = vector.shape_cast %5 : vector<512x128xbf16> to vector<1x512x128xbf16>
    tpu.vector_store %arg4[%c0_5, %c0_6, %c0_7], %8 {strides = array<i32>} : memref<1x512x128xbf16, #tpu.memory_space<vmem>>, vector<1x512x128xbf16>,
    %cst_8 = arith.constant dense<0.000000e+00> : vector<128xf32>
    %9 = vector.multi_reduction <add>, %4, %cst_8 [0] : vector<512x128xf32> to vector<128xf32>
    %10 = vector.shape_cast %9 : vector<128xf32> to vector<1x128xf32>
    %c0_9 = arith.constant 0 : index
    %c0_10 = arith.constant 0 : index
    %c0_11 = arith.constant 0 : index
    %c0_12 = arith.constant 0 : index
    %11 = vector.load %arg5[%c0_9, %c0_10, %c0_11, %c0_12] : memref<1x1x2x128xf32, #tpu.memory_space<vmem>>, vector<1x1x1x128xf32>
    %12 = vector.shape_cast %11 : vector<1x1x1x128xf32> to vector<1x128xf32>
    %13 = vector.shape_cast %10 : vector<1x128xf32> to vector<1x1x1x128xf32>
    tpu.vector_store %arg5[%c0_9, %c0_10, %c0_11, %c0_12], %13 {strides = array<i32>} : memref<1x1x2x128xf32, #tpu.memory_space<vmem>>, vector<1x1x1x128xf32>,
    %14 = arith.mulf %4, %4 : vector<512x128xf32>
    %cst_13 = arith.constant dense<0.000000e+00> : vector<128xf32>
    %15 = vector.multi_reduction <add>, %14, %cst_13 [0] : vector<512x128xf32> to vector<128xf32>
    %16 = vector.shape_cast %15 : vector<128xf32> to vector<1x128xf32>
    %c0_14 = arith.constant 0 : index
    %c0_15 = arith.constant 0 : index
    %c1 = arith.constant 1 : index
    %c0_16 = arith.constant 0 : index
    %17 = vector.load %arg5[%c0_14, %c0_15, %c1, %c0_16] : memref<1x1x2x128xf32, #tpu.memory_space<vmem>>, vector<1x1x1x128xf32>
    %18 = vector.shape_cast %17 : vector<1x1x1x128xf32> to vector<1x128xf32>
    %19 = vector.shape_cast %16 : vector<1x128xf32> to vector<1x1x1x128xf32>
    tpu.vector_store %arg5[%c0_14, %c0_15, %c1, %c0_16], %19 {strides = array<i32>} : memref<1x1x2x128xf32, #tpu.memory_space<vmem>>, vector<1x1x1x128xf32>,
    return
  }
  func.func @transform_0(%arg0: i32, %arg1: i32) -> (i32, i32, i32) {
    %c0_i32 = arith.constant 0 : i32
    %c0_i32_0 = arith.constant 0 : i32
    return %arg0, %arg1, %c0_i32 : i32, i32, i32
  }
  func.func @transform_1(%arg0: i32, %arg1: i32) -> (i32, i32, i32) {
    %c0_i32 = arith.constant 0 : i32
    %c0_i32_0 = arith.constant 0 : i32
    %c0_i32_1 = arith.constant 0 : i32
    return %arg0, %c0_i32, %c0_i32_0 : i32, i32, i32
  }
  func.func @transform_2(%arg0: i32, %arg1: i32) -> (i32, i32, i32) {
    %c0_i32 = arith.constant 0 : i32
    %c0_i32_0 = arith.constant 0 : i32
    return %arg0, %arg1, %c0_i32 : i32, i32, i32
  }
  func.func @transform_3(%arg0: i32, %arg1: i32) -> (i32, i32, i32, i32) {
    %c0_i32 = arith.constant 0 : i32
    %c0_i32_0 = arith.constant 0 : i32
    %c0_i32_1 = arith.constant 0 : i32
    return %arg0, %arg1, %c0_i32, %c0_i32_0 : i32, i32, i32, i32
  }
}

module attributes {stable_mosaic.version = 11 : i64} {
  func.func @_mm_tanh_kernel(%arg0: i32, %arg1: i32, %arg2: memref<1x1024x32xbf16, #tpu.memory_space<vmem>>, %arg3: memref<1x32x128xbf16, #tpu.memory_space<vmem>>, %arg4: memref<1x128xf32, #tpu.memory_space<vmem>>, %arg5: memref<1x1024x128xbf16, #tpu.memory_space<vmem>>) attributes {dimension_semantics = [#tpu.dimension_semantics<parallel>, #tpu.dimension_semantics<parallel>], iteration_bounds = array<i64: 4, 2>, scalar_prefetch = 0 : i64, scratch_operands = 0 : i64, tpu.core_type = #tpu.core_type<tc>, window_params = [{transform_indices = @transform_0, window_bounds = array<i64: 1, 1024, 32>}, {transform_indices = @transform_1, window_bounds = array<i64: 1, 32, 128>}, {pipeline_mode = #tpu.pipeline_mode<synchronous>, transform_indices = @transform_2, window_bounds = array<i64: 1, 128>}, {transform_indices = @transform_3, window_bounds = array<i64: 1, 1024, 128>}]} {
    %c0 = arith.constant 0 : index
    %c0_0 = arith.constant 0 : index
    %c0_1 = arith.constant 0 : index
    %0 = vector.load %arg2[%c0, %c0_0, %c0_1] : memref<1x1024x32xbf16, #tpu.memory_space<vmem>>, vector<1x1024x32xbf16>
    %1 = vector.shape_cast %0 : vector<1x1024x32xbf16> to vector<1024x32xbf16>
    %c0_2 = arith.constant 0 : index
    %c0_3 = arith.constant 0 : index
    %c0_4 = arith.constant 0 : index
    %2 = vector.load %arg3[%c0_2, %c0_3, %c0_4] : memref<1x32x128xbf16, #tpu.memory_space<vmem>>, vector<1x32x128xbf16>
    %3 = vector.shape_cast %2 : vector<1x32x128xbf16> to vector<32x128xbf16>
    %cst = arith.constant dense<0.000000e+00> : vector<1024x128xf32>
    %4 = tpu.matmul %1, %3, %cst {dimension_numbers = #tpu.dot_dimension_numbers<[1], [0], [0], [1], [0, 0, 1, 1], [], []>} : vector<1024x32xbf16>, vector<32x128xbf16>, vector<1024x128xf32> -> vector<1024x128xf32>
    %c0_5 = arith.constant 0 : index
    %c0_6 = arith.constant 0 : index
    %5 = vector.load %arg4[%c0_5, %c0_6] : memref<1x128xf32, #tpu.memory_space<vmem>>, vector<1x128xf32>
    %6 = vector.broadcast %5 : vector<1x128xf32> to vector<1024x128xf32>
    %7 = arith.addf %4, %6 : vector<1024x128xf32>
    %8 = math.tanh %7 : vector<1024x128xf32>
    %9 = arith.truncf %8 : vector<1024x128xf32> to vector<1024x128xbf16>
    %c0_7 = arith.constant 0 : index
    %c0_8 = arith.constant 0 : index
    %c0_9 = arith.constant 0 : index
    %10 = vector.load %arg5[%c0_7, %c0_8, %c0_9] : memref<1x1024x128xbf16, #tpu.memory_space<vmem>>, vector<1x1024x128xbf16>
    %11 = vector.shape_cast %10 : vector<1x1024x128xbf16> to vector<1024x128xbf16>
    %12 = vector.shape_cast %9 : vector<1024x128xbf16> to vector<1x1024x128xbf16>
    tpu.vector_store %arg5[%c0_7, %c0_8, %c0_9], %12 {strides = array<i32>} : memref<1x1024x128xbf16, #tpu.memory_space<vmem>>, vector<1x1024x128xbf16>,
    return
  }
  func.func @transform_0(%arg0: i32, %arg1: i32) -> (i32, i32, i32) {
    %c0_i32 = arith.constant 0 : i32
    %c0_i32_0 = arith.constant 0 : i32
    return %arg0, %arg1, %c0_i32 : i32, i32, i32
  }
  func.func @transform_1(%arg0: i32, %arg1: i32) -> (i32, i32, i32) {
    %c0_i32 = arith.constant 0 : i32
    %c0_i32_0 = arith.constant 0 : i32
    %c0_i32_1 = arith.constant 0 : i32
    return %arg0, %c0_i32, %c0_i32_0 : i32, i32, i32
  }
  func.func @transform_2(%arg0: i32, %arg1: i32) -> (i32, i32) {
    %c0_i32 = arith.constant 0 : i32
    %c0_i32_0 = arith.constant 0 : i32
    %c0_i32_1 = arith.constant 0 : i32
    return %c0_i32, %c0_i32_0 : i32, i32
  }
  func.func @transform_3(%arg0: i32, %arg1: i32) -> (i32, i32, i32) {
    %c0_i32 = arith.constant 0 : i32
    %c0_i32_0 = arith.constant 0 : i32
    return %arg0, %arg1, %c0_i32 : i32, i32, i32
  }
}

</mosaic_0001>

<llo_original>
// kernel: squeeze.9
$region0: #{squeeze.9}
  %s0 = inlined_call_operand.vmem [shape: f32[1024], index: 0, kind: input, shape index: {}]
  %s1 = inlined_call_operand.vmem [shape: f32[16,64], index: 1, kind: output, shape index: {}]
  %v2 = vld [vmem:[%s0] sm:$0xff]
  %vm3 = vcmask 523264
  %4 = vst.msk [vmem:[%s1] ss:$2 sm:$0xff] %vm3, %v2
  %v5 = vld [vmem:[%s0] sm:$0xff]
  %6 = vrot.lane.b32.xlu0 %v5, 64
  %v7 = vpop.permute.xlu0 %6
  %vm8 = vcmask 523264
  %s9 = scalar_lea.vmem %s1, 1
  %10 = vst.msk [vmem:[%s9] ss:$2 sm:$0xff] %vm8, %v7

// kernel: _lambda_.5
$region0: #{_lambda_.5}
  #allocation0 [shape = 'u32[]', space=smem, size = 0x4, offset = 0x4, fixed_abs, tag = 'smem constant byte address 0x4 - core index']
  #allocation1 [shape = 'u32[144,128]{1,0:T(1,128)}', space=vmem, size = 0x12000, scoped, tag = 'internal scratch']
  %s0 = inlined_call_operand.vmem [shape: bf16[1,8,32], index: 0, kind: input, shape index: {}]
  %s1 = inlined_call_operand.vmem [shape: bf16[1,32,1024], index: 1, kind: input, shape index: {}]
  %s2 = inlined_call_operand.vmem [shape: bf16[1,8,1024], index: 2, kind: output, shape index: {0}]
  %s3 = inlined_call_operand.vmem [shape: f32[1,1,2,1024], index: 3, kind: output, shape index: {1}]
  %4 = xla_tuple %s2, %s3
  %s5 = sld [smem:[#allocation0]]
  $region26: #{_lambda_.5} parent=0
    _
  %s7 = ssub.s32 1, %s5
  %s8 = scalar_select 0, %s7, %s5
  // Predicated region
  $region2: #{_lambda_.5} parent=0 // pred_check
    _
  $region3: #{_lambda_.5} parent=0 // pred_check_branch
    %10 = sbr.rel (0) target = $region5
  $region4: #{_lambda_.5} parent=0 // pred_region
    _
  $region5: #{_lambda_.5} parent=0 // pred_fallthru
    _
  // Predicated region
  $region6: #{_lambda_.5} parent=0 // pred_check
    _
  $region7: #{_lambda_.5} parent=0 // pred_check_branch
    %12 = sbr.rel (0) target = $region9
  $region8: #{_lambda_.5} parent=0 // pred_region
    _
  $region9: #{_lambda_.5} parent=0 // pred_fallthru
    _
  %v14 = vld [vmem:[%s0] sm:$0xf]
  %v15 = vld [vmem:[%s1] sm:$0xff]
  %v16 = vld [vmem:[%s1 + $0x8] sm:$0xff]
  %v17 = vld [vmem:[%s1 + $0x10] sm:$0xff]
  %v18 = vld [vmem:[%s1 + $0x18] sm:$0xff]
  %v19 = vld [vmem:[%s1 + $0x20] sm:$0xff]
  %v20 = vld [vmem:[%s1 + $0x28] sm:$0xff]
  %v21 = vld [vmem:[%s1 + $0x30] sm:$0xff]
  %v22 = vld [vmem:[%s1 + $0x38] sm:$0xff]
  %v23 = vld [vmem:[%s1 + $0x40] sm:$0xff]
  %v24 = vld [vmem:[%s1 + $0x48] sm:$0xff]
  %v25 = vld [vmem:[%s1 + $0x50] sm:$0xff]
  %v26 = vld [vmem:[%s1 + $0x58] sm:$0xff]
  %v27 = vld [vmem:[%s1 + $0x60] sm:$0xff]
  %v28 = vld [vmem:[%s1 + $0x68] sm:$0xff]
  %v29 = vld [vmem:[%s1 + $0x70] sm:$0xff]
  %v30 = vld [vmem:[%s1 + $0x78] sm:$0xff]
  %v47 = vunpack.c.l.b16 %v15
  %v48 = vunpack.c.h.b16 %v15
  %v49 = vunpack.c.l.b16 %v16
  %v50 = vunpack.c.h.b16 %v16
  %v51 = vunpack.c.l.b16 %v17
  %v52 = vunpack.c.h.b16 %v17
  %v53 = vunpack.c.l.b16 %v18
  %v54 = vunpack.c.h.b16 %v18
  %v55 = vunpack.c.l.b16 %v19
  %v56 = vunpack.c.h.b16 %v19
  %v57 = vunpack.c.l.b16 %v20
  %v58 = vunpack.c.h.b16 %v20
  %v59 = vunpack.c.l.b16 %v21
  %v60 = vunpack.c.h.b16 %v21
  %v61 = vunpack.c.l.b16 %v22
  %v62 = vunpack.c.h.b16 %v22
  %v63 = vunpack.c.l.b16 %v23
  %v64 = vunpack.c.h.b16 %v23
  %v65 = vunpack.c.l.b16 %v24
  %v66 = vunpack.c.h.b16 %v24
  %v67 = vunpack.c.l.b16 %v25
  %v68 = vunpack.c.h.b16 %v25
  %v69 = vunpack.c.l.b16 %v26
  %v70 = vunpack.c.h.b16 %v26
  %v71 = vunpack.c.l.b16 %v27
  %v72 = vunpack.c.h.b16 %v27
  %v73 = vunpack.c.l.b16 %v28
  %v74 = vunpack.c.h.b16 %v28
  %v75 = vunpack.c.l.b16 %v29
  %v76 = vunpack.c.h.b16 %v29
  %v77 = vunpack.c.l.b16 %v30
  %v78 = vunpack.c.h.b16 %v30
  %v79 = vpack.c.b16 %v55, %v47
  %v80 = vpack.c.b16 %v56, %v48
  %v81 = vpack.c.b16 %v57, %v49
  %v82 = vpack.c.b16 %v58, %v50
  %v83 = vpack.c.b16 %v59, %v51
  %v84 = vpack.c.b16 %v60, %v52
  %v85 = vpack.c.b16 %v61, %v53
  %v86 = vpack.c.b16 %v62, %v54
  %v87 = vpack.c.b16 %v71, %v63
  %v88 = vpack.c.b16 %v72, %v64
  %v89 = vpack.c.b16 %v73, %v65
  %v90 = vpack.c.b16 %v74, %v66
  %v91 = vpack.c.b16 %v75, %v67
  %v92 = vpack.c.b16 %v76, %v68
  %v93 = vpack.c.b16 %v77, %v69
  %v94 = vpack.c.b16 %v78, %v70
  %vm111 = vcmask 261120
  %v113 = vsel %vm111, %v14, 0
  %115 = vmatprep.subr.bf16.mxu0 %v80
  %116 = vmatpush1.bf16.msra.mxu0 %v79
  %117 = vmatprep.subr.bf16.mxu0 %v88
  %118 = vmatpush1.bf16.msra.mxu0 %v87
  %119 = vmatprep.subr.bf16.mxu0 0
  %120 = vmatpush1.bf16.msra.mxu0 0
  %121 = vmatprep.subr.bf16.mxu0 0
  %122 = vmatpush1.bf16.msra.mxu0 0
  %123 = vmatprep.subr.bf16.mxu0 0
  %124 = vmatpush1.bf16.msra.mxu0 0
  %125 = vmatprep.subr.bf16.mxu0 0
  %126 = vmatpush1.bf16.msra.mxu0 0
  %127 = vmatprep.subr.bf16.mxu0 0
  %128 = vmatpush1.bf16.msra.mxu0 0
  %129 = vmatprep.subr.bf16.mxu0 0
  %130 = vmatpush1.bf16.msra.mxu0 0
  %131 = vmatprep.subr.bf16.mxu0 0
  %132 = vmatpush1.bf16.msra.mxu0 0
  %133 = vmatprep.subr.bf16.mxu0 0
  %134 = vmatpush1.bf16.msra.mxu0 0
  %135 = vmatprep.subr.bf16.mxu0 0
  %136 = vmatpush1.bf16.msra.mxu0 0
  %137 = vmatprep.subr.bf16.mxu0 0
  %138 = vmatpush1.bf16.msra.mxu0 0
  %139 = vmatprep.subr.bf16.mxu0 0
  %140 = vmatpush1.bf16.msra.mxu0 0
  %141 = vmatprep.subr.bf16.mxu0 0
  %142 = vmatpush1.bf16.msra.mxu0 0
  %143 = vmatprep.subr.bf16.mxu0 0
  %144 = vmatpush1.bf16.msra.mxu0 0
  %145 = vmatprep.subr.bf16.mxu0 0
  %146 = vmatpush1.bf16.msra.mxu0 0
  %147 = vmatprep.mubr.bf16.mxu0 0
  %148 = vmatmul.mubr.bf16.gmra.mrb[0].mxu0 %v113
  %v149 = vpop.f32.mrb[0].mxu0
  %v150 = vadd.f32 0.0, %v149
  %v151 = vpop.f32.mrb[0].mxu0
  %v152 = vadd.f32 0.0, %v151
  %v153 = vpop.f32.mrb[0].mxu0
  %v154 = vpop.f32.mrb[0].mxu0
  %155 = vdwg.mxu0
  %156 = vmatprep.subr.bf16.mxu0 %v82
  %157 = vmatpush1.bf16.msra.mxu0 %v81
  %158 = vmatprep.subr.bf16.mxu0 %v90
  %159 = vmatpush1.bf16.msra.mxu0 %v89
  %160 = vmatprep.subr.bf16.mxu0 0
  %161 = vmatpush1.bf16.msra.mxu0 0
  %162 = vmatprep.subr.bf16.mxu0 0
  %163 = vmatpush1.bf16.msra.mxu0 0
  %164 = vmatprep.subr.bf16.mxu0 0
  %165 = vmatpush1.bf16.msra.mxu0 0
  %166 = vmatprep.subr.bf16.mxu0 0
  %167 = vmatpush1.bf16.msra.mxu0 0
  %168 = vmatprep.subr.bf16.mxu0 0
  %169 = vmatpush1.bf16.msra.mxu0 0
  %170 = vmatprep.subr.bf16.mxu0 0
  %171 = vmatpush1.bf16.msra.mxu0 0
  %172 = vmatprep.subr.bf16.mxu0 0
  %173 = vmatpush1.bf16.msra.mxu0 0
  %174 = vmatprep.subr.bf16.mxu0 0
  %175 = vmatpush1.bf16.msra.mxu0 0
  %176 = vmatprep.subr.bf16.mxu0 0
  %177 = vmatpush1.bf16.msra.mxu0 0
  %178 = vmatprep.subr.bf16.mxu0 0
  %179 = vmatpush1.bf16.msra.mxu0 0
  %180 = vmatprep.subr.bf16.mxu0 0
  %181 = vmatpush1.bf16.msra.mxu0 0
  %182 = vmatprep.subr.bf16.mxu0 0
  %183 = vmatpush1.bf16.msra.mxu0 0
  %184 = vmatprep.subr.bf16.mxu0 0
  %185 = vmatpush1.bf16.msra.mxu0 0
  %186 = vmatprep.subr.bf16.mxu0 0
  %187 = vmatpush1.bf16.msra.mxu0 0
  %188 = vmatprep.mubr.bf16.mxu0 0
  %189 = vmatmul.mubr.bf16.gmra.mrb[0].mxu0 %v113
  %v190 = vpop.f32.mrb[0].mxu0
  %v191 = vadd.f32 0.0, %v190
  %v192 = vpop.f32.mrb[0].mxu0
  %v193 = vadd.f32 0.0, %v192
  %v194 = vpop.f32.mrb[0].mxu0
  %v195 = vpop.f32.mrb[0].mxu0
  %196 = vdwg.mxu0
  %197 = vmatprep.subr.bf16.mxu0 %v84
  %198 = vmatpush1.bf16.msra.mxu0 %v83
  %199 = vmatprep.subr.bf16.mxu0 %v92
  %200 = vmatpush1.bf16.msra.mxu0 %v91
  %201 = vmatprep.subr.bf16.mxu0 0
  %202 = vmatpush1.bf16.msra.mxu0 0
  %203 = vmatprep.subr.bf16.mxu0 0
  %204 = vmatpush1.bf16.msra.mxu0 0
  %205 = vmatprep.subr.bf16.mxu0 0
  %206 = vmatpush1.bf16.msra.mxu0 0
  %207 = vmatprep.subr.bf16.mxu0 0
  %208 = vmatpush1.bf16.msra.mxu0 0
  %209 = vmatprep.subr.bf16.mxu0 0
  %210 = vmatpush1.bf16.msra.mxu0 0
  %211 = vmatprep.subr.bf16.mxu0 0
  %212 = vmatpush1.bf16.msra.mxu0 0
  %213 = vmatprep.subr.bf16.mxu0 0
  %214 = vmatpush1.bf16.msra.mxu0 0
  %215 = vmatprep.subr.bf16.mxu0 0
  %216 = vmatpush1.bf16.msra.mxu0 0
  %217 = vmatprep.subr.bf16.mxu0 0
  %218 = vmatpush1.bf16.msra.mxu0 0
  %219 = vmatprep.subr.bf16.mxu0 0
  %220 = vmatpush1.bf16.msra.mxu0 0
  %221 = vmatprep.subr.bf16.mxu0 0
  %222 = vmatpush1.bf16.msra.mxu0 0
  %223 = vmatprep.subr.bf16.mxu0 0
  %224 = vmatpush1.bf16.msra.mxu0 0
  %225 = vmatprep.subr.bf16.mxu0 0
  %226 = vmatpush1.bf16.msra.mxu0 0
  %227 = vmatprep.subr.bf16.mxu0 0
  %228 = vmatpush1.bf16.msra.mxu0 0
  %229 = vmatprep.mubr.bf16.mxu0 0
  %230 = vmatmul.mubr.bf16.gmra.mrb[0].mxu0 %v113
  %v231 = vpop.f32.mrb[0].mxu0
  %v232 = vadd.f32 0.0, %v231
  %v233 = vpop.f32.mrb[0].mxu0
  %v234 = vadd.f32 0.0, %v233
  %v235 = vpop.f32.mrb[0].mxu0
  %v236 = vpop.f32.mrb[0].mxu0
  %237 = vdwg.mxu0
  %238 = vmatprep.subr.bf16.mxu0 %v86
  %239 = vmatpush1.bf16.msra.mxu0 %v85
  %240 = vmatprep.subr.bf16.mxu0 %v94
  %241 = vmatpush1.bf16.msra.mxu0 %v93
  %242 = vmatprep.subr.bf16.mxu0 0
  %243 = vmatpush1.bf16.msra.mxu0 0
  %244 = vmatprep.subr.bf16.mxu0 0
  %245 = vmatpush1.bf16.msra.mxu0 0
  %246 = vmatprep.subr.bf16.mxu0 0
  %247 = vmatpush1.bf16.msra.mxu0 0
  %248 = vmatprep.subr.bf16.mxu0 0
  %249 = vmatpush1.bf16.msra.mxu0 0
  %250 = vmatprep.subr.bf16.mxu0 0
  %251 = vmatpush1.bf16.msra.mxu0 0
  %252 = vmatprep.subr.bf16.mxu0 0
  %253 = vmatpush1.bf16.msra.mxu0 0
  %254 = vmatprep.subr.bf16.mxu0 0
  %255 = vmatpush1.bf16.msra.mxu0 0
  %256 = vmatprep.subr.bf16.mxu0 0
  %257 = vmatpush1.bf16.msra.mxu0 0
  %258 = vmatprep.subr.bf16.mxu0 0
  %259 = vmatpush1.bf16.msra.mxu0 0
  %260 = vmatprep.subr.bf16.mxu0 0
  %261 = vmatpush1.bf16.msra.mxu0 0
  %262 = vmatprep.subr.bf16.mxu0 0
  %263 = vmatpush1.bf16.msra.mxu0 0
  %264 = vmatprep.subr.bf16.mxu0 0
  %265 = vmatpush1.bf16.msra.mxu0 0
  %266 = vmatprep.subr.bf16.mxu0 0
  %267 = vmatpush1.bf16.msra.mxu0 0
  %268 = vmatprep.subr.bf16.mxu0 0
  %269 = vmatpush1.bf16.msra.mxu0 0
  %270 = vmatprep.mubr.bf16.mxu0 0
  %271 = vmatmul.mubr.bf16.gmra.mrb[0].mxu0 %v113
  %v272 = vpop.f32.mrb[0].mxu0
  %v273 = vadd.f32 0.0, %v272
  %v274 = vpop.f32.mrb[0].mxu0
  %v275 = vadd.f32 0.0, %v274
  %v276 = vpop.f32.mrb[0].mxu0
  %v277 = vpop.f32.mrb[0].mxu0
  %278 = vdwg.mxu0
  %v279 = vpack.c.bf16 %v150, %v150
  %v280 = vpack.c.bf16 %v152, %v152
  %v281 = vpack.c.bf16 %v191, %v191
  %v282 = vpack.c.bf16 %v193, %v193
  %v283 = vpack.c.bf16 %v232, %v232
  %v284 = vpack.c.bf16 %v234, %v234
  %v285 = vpack.c.bf16 %v273, %v273
  %v286 = vpack.c.bf16 %v275, %v275
  %v295 = vunpack.c.l.b16 %v279
  %v296 = vunpack.c.l.b16 %v280
  %v297 = vunpack.c.l.b16 %v281
  %v298 = vunpack.c.l.b16 %v282
  %v299 = vunpack.c.l.b16 %v283
  %v300 = vunpack.c.l.b16 %v284
  %v301 = vunpack.c.l.b16 %v285
  %v302 = vunpack.c.l.b16 %v286
  %v303 = vpack.c.b16 %v296, %v295
  %v304 = vpack.c.b16 %v298, %v297
  %v305 = vpack.c.b16 %v300, %v299
  %v306 = vpack.c.b16 %v302, %v301
  %311 = vst [vmem:[%s2] sm:$0xff] %v303
  %312 = vst [vmem:[%s2 + $0x8] sm:$0xff] %v304
  %313 = vst [vmem:[%s2 + $0x10] sm:$0xff] %v305
  %314 = vst [vmem:[%s2 + $0x18] sm:$0xff] %v306
  %v315 = vrot.slane %v150, 4
  %v316 = vadd.f32 %v150, %v315
  %v317 = vrot.slane %v316, 2
  %v318 = vadd.f32 %v316, %v317
  %v319 = vrot.slane %v318, 1
  %v320 = vadd.f32 %v318, %v319
  %v321 = vrot.slane %v152, 4
  %v322 = vadd.f32 %v152, %v321
  %v323 = vrot.slane %v322, 2
  %v324 = vadd.f32 %v322, %v323
  %v325 = vrot.slane %v324, 1
  %v326 = vadd.f32 %v324, %v325
  %v327 = vrot.slane %v191, 4
  %v328 = vadd.f32 %v191, %v327
  %v329 = vrot.slane %v328, 2
  %v330 = vadd.f32 %v328, %v329
  %v331 = vrot.slane %v330, 1
  %v332 = vadd.f32 %v330, %v331
  %v333 = vrot.slane %v193, 4
  %v334 = vadd.f32 %v193, %v333
  %v335 = vrot.slane %v334, 2
  %v336 = vadd.f32 %v334, %v335
  %v337 = vrot.slane %v336, 1
  %v338 = vadd.f32 %v336, %v337
  %v339 = vrot.slane %v232, 4
  %v340 = vadd.f32 %v232, %v339
  %v341 = vrot.slane %v340, 2
  %v342 = vadd.f32 %v340, %v341
  %v343 = vrot.slane %v342, 1
  %v344 = vadd.f32 %v342, %v343
  %v345 = vrot.slane %v234, 4
  %v346 = vadd.f32 %v234, %v345
  %v347 = vrot.slane %v346, 2
  %v348 = vadd.f32 %v346, %v347
  %v349 = vrot.slane %v348, 1
  %v350 = vadd.f32 %v348, %v349
  %v351 = vrot.slane %v273, 4
  %v352 = vadd.f32 %v273, %v351
  %v353 = vrot.slane %v352, 2
  %v354 = vadd.f32 %v352, %v353
  %v355 = vrot.slane %v354, 1
  %v356 = vadd.f32 %v354, %v355
  %v357 = vrot.slane %v275, 4
  %v358 = vadd.f32 %v275, %v357
  %v359 = vrot.slane %v358, 2
  %v360 = vadd.f32 %v358, %v359
  %v361 = vrot.slane %v360, 1
  %v362 = vadd.f32 %v360, %v361
  %v371 = vcombine.low %v320, %v326
  %v372 = vcombine.low %v332, %v338
  %v373 = vcombine.low %v344, %v350
  %v374 = vcombine.low %v356, %v362
  %v376 = vunpack.c.l.s4 1966171168
  %v377 = vunpack.c.0.s8 %v376
  %v378 = vlaneseq
  %v379 = vshrl.u32 %v378, 7
  %v380 = vsub.s32 %v377, %v379
  %v381 = vrot.slane %v371, %v380
  %v383 = vunpack.c.l.s4 1966171168
  %v384 = vunpack.c.0.s8 %v383
  %v385 = vlaneseq
  %v386 = vshrl.u32 %v385, 7
  %v387 = vsub.s32 %v384, %v386
  %v388 = vrot.slane %v372, %v387
  %v390 = vunpack.c.l.s4 1966171168
  %v391 = vunpack.c.0.s8 %v390
  %v392 = vlaneseq
  %v393 = vshrl.u32 %v392, 7
  %v394 = vsub.s32 %v391, %v393
  %v395 = vrot.slane %v373, %v394
  %v397 = vunpack.c.l.s4 1966171168
  %v398 = vunpack.c.0.s8 %v397
  %v399 = vlaneseq
  %v400 = vshrl.u32 %v399, 7
  %v401 = vsub.s32 %v398, %v400
  %v402 = vrot.slane %v374, %v401
  %v403 = vcombine.low %v381, %v388
  %v404 = vcombine.low %v395, %v402
  %v406 = vunpack.c.l.s4 1966171168
  %v407 = vunpack.c.0.s8 %v406
  %v408 = vlaneseq
  %v409 = vshrl.u32 %v408, 7
  %v410 = vsub.s32 %v407, %v409
  %v411 = vrot.slane %v403, %v410
  %v413 = vunpack.c.l.s4 1966171168
  %v414 = vunpack.c.0.s8 %v413
  %v415 = vlaneseq
  %v416 = vshrl.u32 %v415, 7
  %v417 = vsub.s32 %v414, %v416
  %v418 = vrot.slane %v404, %v417
  %v419 = vcombine.low %v411, %v418
  %421 = vst [vmem:[%s3] ss:$2 sm:$0xff] %v419
  %v422 = vmul.f32 %v150, %v150
  %v423 = vmul.f32 %v152, %v152
  %v424 = vmul.f32 %v191, %v191
  %v425 = vmul.f32 %v193, %v193
  %v426 = vmul.f32 %v232, %v232
  %v427 = vmul.f32 %v234, %v234
  %v428 = vmul.f32 %v273, %v273
  %v429 = vmul.f32 %v275, %v275
  %v430 = vrot.slane %v422, 4
  %v431 = vadd.f32 %v422, %v430
  %v432 = vrot.slane %v431, 2
  %v433 = vadd.f32 %v431, %v432
  %v434 = vrot.slane %v433, 1
  %v435 = vadd.f32 %v433, %v434
  %v436 = vrot.slane %v423, 4
  %v437 = vadd.f32 %v423, %v436
  %v438 = vrot.slane %v437, 2
  %v439 = vadd.f32 %v437, %v438
  %v440 = vrot.slane %v439, 1
  %v441 = vadd.f32 %v439, %v440
  %v442 = vrot.slane %v424, 4
  %v443 = vadd.f32 %v424, %v442
  %v444 = vrot.slane %v443, 2
  %v445 = vadd.f32 %v443, %v444
  %v446 = vrot.slane %v445, 1
  %v447 = vadd.f32 %v445, %v446
  %v448 = vrot.slane %v425, 4
  %v449 = vadd.f32 %v425, %v448
  %v450 = vrot.slane %v449, 2
  %v451 = vadd.f32 %v449, %v450
  %v452 = vrot.slane %v451, 1
  %v453 = vadd.f32 %v451, %v452
  %v454 = vrot.slane %v426, 4
  %v455 = vadd.f32 %v426, %v454
  %v456 = vrot.slane %v455, 2
  %v457 = vadd.f32 %v455, %v456
  %v458 = vrot.slane %v457, 1
  %v459 = vadd.f32 %v457, %v458
  %v460 = vrot.slane %v427, 4
  %v461 = vadd.f32 %v427, %v460
  %v462 = vrot.slane %v461, 2
  %v463 = vadd.f32 %v461, %v462
  %v464 = vrot.slane %v463, 1
  %v465 = vadd.f32 %v463, %v464
  %v466 = vrot.slane %v428, 4
  %v467 = vadd.f32 %v428, %v466
  %v468 = vrot.slane %v467, 2
  %v469 = vadd.f32 %v467, %v468
  %v470 = vrot.slane %v469, 1
  %v471 = vadd.f32 %v469, %v470
  %v472 = vrot.slane %v429, 4
  %v473 = vadd.f32 %v429, %v472
  %v474 = vrot.slane %v473, 2
  %v475 = vadd.f32 %v473, %v474
  %v476 = vrot.slane %v475, 1
  %v477 = vadd.f32 %v475, %v476
  %v486 = vcombine.low %v435, %v441
  %v487 = vcombine.low %v447, %v453
  %v488 = vcombine.low %v459, %v465
  %v489 = vcombine.low %v471, %v477
  %v491 = vunpack.c.l.s4 1966171168
  %v492 = vunpack.c.0.s8 %v491
  %v493 = vlaneseq
  %v494 = vshrl.u32 %v493, 7
  %v495 = vsub.s32 %v492, %v494
  %v496 = vrot.slane %v486, %v495
  %v498 = vunpack.c.l.s4 1966171168
  %v499 = vunpack.c.0.s8 %v498
  %v500 = vlaneseq
  %v501 = vshrl.u32 %v500, 7
  %v502 = vsub.s32 %v499, %v501
  %v503 = vrot.slane %v487, %v502
  %v505 = vunpack.c.l.s4 1966171168
  %v506 = vunpack.c.0.s8 %v505
  %v507 = vlaneseq
  %v508 = vshrl.u32 %v507, 7
  %v509 = vsub.s32 %v506, %v508
  %v510 = vrot.slane %v488, %v509
  %v512 = vunpack.c.l.s4 1966171168
  %v513 = vunpack.c.0.s8 %v512
  %v514 = vlaneseq
  %v515 = vshrl.u32 %v514, 7
  %v516 = vsub.s32 %v513, %v515
  %v517 = vrot.slane %v489, %v516
  %v518 = vcombine.low %v496, %v503
  %v519 = vcombine.low %v510, %v517
  %v521 = vunpack.c.l.s4 1966171168
  %v522 = vunpack.c.0.s8 %v521
  %v523 = vlaneseq
  %v524 = vshrl.u32 %v523, 7
  %v525 = vsub.s32 %v522, %v524
  %v526 = vrot.slane %v518, %v525
  %v528 = vunpack.c.l.s4 1966171168
  %v529 = vunpack.c.0.s8 %v528
  %v530 = vlaneseq
  %v531 = vshrl.u32 %v530, 7
  %v532 = vsub.s32 %v529, %v531
  %v533 = vrot.slane %v519, %v532
  %v534 = vcombine.low %v526, %v533
  %s536 = scalar_lea.vmem %s3, 1
  %537 = vst [vmem:[%s536] ss:$2 sm:$0xff] %v534
  // Predicated region
  $region10: #{_lambda_.5} parent=0 // pred_check
    _
  $region11: #{_lambda_.5} parent=0 // pred_check_branch
    %539 = sbr.rel (0) target = $region13
  $region12: #{_lambda_.5} parent=0 // pred_region
    _
  $region13: #{_lambda_.5} parent=0 // pred_fallthru
    _
  // Predicated region
  $region14: #{_lambda_.5} parent=0 // pred_check
    _
  $region15: #{_lambda_.5} parent=0 // pred_check_branch
    %541 = sbr.rel (0) target = $region17
  $region16: #{_lambda_.5} parent=0 // pred_region
    _
  $region17: #{_lambda_.5} parent=0 // pred_fallthru
    _
  // Predicated region
  $region18: #{_lambda_.5} parent=0 // pred_check
    _
  $region19: #{_lambda_.5} parent=0 // pred_check_branch
    %543 = sbr.rel (0) target = $region21
  $region20: #{_lambda_.5} parent=0 // pred_region
    _
  $region21: #{_lambda_.5} parent=0 // pred_fallthru
    _
  // Predicated region
  $region22: #{_lambda_.5} parent=0 // pred_check
    _
  $region23: #{_lambda_.5} parent=0 // pred_check_branch
    %545 = sbr.rel (0) target = $region25
  $region24: #{_lambda_.5} parent=0 // pred_region
    _
  $region25: #{_lambda_.5} parent=0 // pred_fallthru
    _

// kernel: _lambda_.6
$region0: #{_lambda_.6}
  #allocation0 [shape = 'u32[]', space=smem, size = 0x4, offset = 0x4, fixed_abs, tag = 'smem constant byte address 0x4 - core index']
  #allocation1 [shape = 'u32[144,128]{1,0:T(1,128)}', space=vmem, size = 0x12000, scoped, tag = 'internal scratch']
  %s0 = inlined_call_operand.vmem [shape: bf16[4,32,256], index: 0, kind: input, shape index: {}]
  %s1 = inlined_call_operand.hbm [shape: bf16[4,256,128], index: 1, kind: input, shape index: {}]
  %s2 = inlined_call_operand.vmem [shape: bf16[4,32,128], index: 2, kind: output, shape index: {0}]
  %s3 = inlined_call_operand.vmem [shape: f32[4,1,2,128], index: 3, kind: output, shape index: {1}]
  %4 = xla_tuple %s2, %s3
  %s5 = sld [smem:[#allocation0]]
  $region53: #{_lambda_.6} parent=0
    _
  %s7 = ssub.s32 1, %s5
  %s8 = scalar_select 0, %s7, %s5
  $region1: #{_lambda_.6} parent=0
    #allocation2 [shape = 'u8[131072]{0}', space=vmem, size = 0x20000, scoped, tag = 'input window, operand 1']
    #allocation3 [shape = 's32[2]{0}', space=sflag, size = 0x8, scoped, tag = 'scoped memory for _lambda_.6']
    %9 = vsyncpa [#allocation3], 0
    %s10 = scalar_lea.sflag [#allocation3], 1
    %11 = vsyncpa %s10, 0
    loop: start=0, step=1, limit=6
    $region2: #{_lambda_.6} parent=1 // loop_pre_header
      _
    $region3: #{_lambda_.6} parent=1 // loop_header
      %s13 = sphi 0, %s17
      %p14 = scmp.ge.s32.totalorder %s13, 6
      %s20 = sphi 0, %s32
      %s21 = sphi 0, %s28
      %s22 = sphi 0, %s20
      %s23 = sphi 0, %s21
      %s24 = sphi 0, %s22
      %s25 = sphi 0, %s23
      %s37 = sphi 0, %s39
      %s40 = sphi 0, %s37
      %s41 = sphi 0, %s40
      %s57 = sphi 0, %s41
      %s63 = sphi 0, %s65
      %s66 = sphi 0, %s63
      %s67 = sphi 0, %s66
      %s83 = sphi 0, %s67
      %s91 = sphi 0, %s93
      %s94 = sphi 0, %s91
      %s95 = sphi 0, %s94
      %s111 = sphi 0, %s95
      %s119 = sphi 0, %s121
      %s122 = sphi 0, %s119
      %s123 = sphi 0, %s122
      %s139 = sphi 0, %s123
    $region4: #{_lambda_.6} parent=1 // loop_header_branch
      %16 = sbr.rel (%p14) target = $region8
    $region5: #{_lambda_.6} parent=1 // loop_body
      %s18 = ssub.s32 %s13, 1
      %s19 = ssub.s32 %s13, 2
      %s26 = sadd.s32 1, %s21
      %p27 = scmp.ge.s32.totalorder %s26, 1
      %s28 = scalar_select %p27, 0, %s26
      %s29 = sadd.s32 1, %s20
      %s30 = scalar_select %p27, %s29, %s20
      %p31 = scmp.ge.s32.totalorder %s30, 4
      %s32 = scalar_select %p31, 0, %s30
      %s33 = ssub.s32 %s20, %s32
      %s34 = ssub.s32 %s21, %s28
      %s35 = sor.u32 %s33, %s34
      %p36 = scmp.eq.s32.totalorder %s35, 0
      %s38 = sadd.s32 %s37, 1
      %s39 = scalar_select %p36, %s37, %s38
      %p42 = pneg %p36
      %p43 = scmp.eq.s32.totalorder %s13, 3
      %p44 = por %p42, %p43
      %p45 = scmp.ne.s32.totalorder %s37, %s40
      %p46 = scmp.eq.s32.totalorder %s13, 0
      %p47 = por %p45, %p46
      %p48 = scmp.ne.s32.totalorder %s37, %s40
      %p49 = scmp.eq.s32.totalorder %s18, 3
      %p50 = por %p48, %p49
      %p51 = scmp.ne.s32.totalorder %s40, %s41
      %p52 = scmp.eq.s32.totalorder %s18, 0
      %p53 = por %p51, %p52
      %p54 = scmp.ne.s32.totalorder %s40, %s41
      %p55 = scmp.eq.s32.totalorder %s19, 3
      %p56 = por %p54, %p55
      %p58 = scmp.ne.s32.totalorder %s41, %s57
      %p59 = scmp.eq.s32.totalorder %s19, 0
      %p60 = por %p58, %p59
      %s61 = ssub.s32 %s20, %s32
      %p62 = scmp.eq.s32.totalorder %s61, 0
      %s64 = sadd.s32 %s63, 1
      %s65 = scalar_select %p62, %s63, %s64
      %p68 = pneg %p62
      %p69 = scmp.eq.s32.totalorder %s13, 3
      %p70 = por %p68, %p69
      %p71 = scmp.ne.s32.totalorder %s63, %s66
      %p72 = scmp.eq.s32.totalorder %s13, 0
      %p73 = por %p71, %p72
      %p74 = scmp.ne.s32.totalorder %s63, %s66
      %p75 = scmp.eq.s32.totalorder %s18, 3
      %p76 = por %p74, %p75
      %p77 = scmp.ne.s32.totalorder %s66, %s67
      %p78 = scmp.eq.s32.totalorder %s18, 0
      %p79 = por %p77, %p78
      %p80 = scmp.ne.s32.totalorder %s66, %s67
      %p81 = scmp.eq.s32.totalorder %s19, 3
      %p82 = por %p80, %p81
      %p84 = scmp.ne.s32.totalorder %s67, %s83
      %p85 = scmp.eq.s32.totalorder %s19, 0
      %p86 = por %p84, %p85
      %s87 = ssub.s32 %s20, %s32
      %s88 = ssub.s32 %s21, %s28
      %s89 = sor.u32 %s87, %s88
      %p90 = scmp.eq.s32.totalorder %s89, 0
      %s92 = sadd.s32 %s91, 1
      %s93 = scalar_select %p90, %s91, %s92
      %p96 = pneg %p90
      %p97 = scmp.eq.s32.totalorder %s13, 3
      %p98 = por %p96, %p97
      %p99 = scmp.ne.s32.totalorder %s91, %s94
      %p100 = scmp.eq.s32.totalorder %s13, 0
      %p101 = por %p99, %p100
      %p102 = scmp.ne.s32.totalorder %s91, %s94
      %p103 = scmp.eq.s32.totalorder %s18, 3
      %p104 = por %p102, %p103
      %p105 = scmp.ne.s32.totalorder %s94, %s95
      %p106 = scmp.eq.s32.totalorder %s18, 0
      %p107 = por %p105, %p106
      %p108 = scmp.ne.s32.totalorder %s94, %s95
      %p109 = scmp.eq.s32.totalorder %s19, 3
      %p110 = por %p108, %p109
      %p112 = scmp.ne.s32.totalorder %s95, %s111
      %p113 = scmp.eq.s32.totalorder %s19, 0
      %p114 = por %p112, %p113
      %s115 = ssub.s32 %s20, %s32
      %s116 = ssub.s32 %s21, %s28
      %s117 = sor.u32 %s115, %s116
      %p118 = scmp.eq.s32.totalorder %s117, 0
      %s120 = sadd.s32 %s119, 1
      %s121 = scalar_select %p118, %s119, %s120
      %p124 = pneg %p118
      %p125 = scmp.eq.s32.totalorder %s13, 3
      %p126 = por %p124, %p125
      %p127 = scmp.ne.s32.totalorder %s119, %s122
      %p128 = scmp.eq.s32.totalorder %s13, 0
      %p129 = por %p127, %p128
      %p130 = scmp.ne.s32.totalorder %s119, %s122
      %p131 = scmp.eq.s32.totalorder %s18, 3
      %p132 = por %p130, %p131
      %p133 = scmp.ne.s32.totalorder %s122, %s123
      %p134 = scmp.eq.s32.totalorder %s18, 0
      %p135 = por %p133, %p134
      %p136 = scmp.ne.s32.totalorder %s122, %s123
      %p137 = scmp.eq.s32.totalorder %s19, 3
      %p138 = por %p136, %p137
      %p140 = scmp.ne.s32.totalorder %s123, %s139
      %p141 = scmp.eq.s32.totalorder %s19, 0
      %p142 = por %p140, %p141
      %p143 = scmp.le.s32.totalorder 1, %s13
      %p144 = scmp.lt.s32.totalorder %s13, 5
      %p145 = pnand %p143, %p144
      %p146 = pneg %p145
      // Predicated region
      $region9: #{_lambda_.6} parent=5 // pred_check
        _
      $region10: #{_lambda_.6} parent=5 // pred_check_branch
        %148 = sbr.rel (%p145) target = $region12
      $region11: #{_lambda_.6} parent=5 // pred_region
        %s149 = ssub.s32 %s13, 1
      $region12: #{_lambda_.6} parent=5 // pred_fallthru
        _
      %p150 = scmp.lt.s32.totalorder %s13, 4
      // Predicated region
      $region13: #{_lambda_.6} parent=5 // pred_check
        %p151 = pneg %p150
      $region14: #{_lambda_.6} parent=5 // pred_check_branch
        %153 = sbr.rel (%p151) target = $region16
      $region15: #{_lambda_.6} parent=5 // pred_region
        // Predicated region
        $region17: #{_lambda_.6} parent=15 // pred_check
          %p154 = pneg %p47
        $region18: #{_lambda_.6} parent=15 // pred_check_branch
          %156 = sbr.rel (%p154) target = $region20
        $region19: #{_lambda_.6} parent=15 // pred_region
          %s157 = smul.u32 4, %s21
          %p158 = scmp.lt.s32.totalorder %s20, 3
          %s159 = scalar_select %p158, %s20, 3
          %p160 = scmp.lt.s32.totalorder %s157, 3
          %s161 = scalar_select %p160, %s157, 3
          %s162 = smul.addr %s161, 2
          %s163 = smul.addr %s159, 8
          %s164 = sadd.s32 %s162, %s163
          %s165 = smul.addr %s164, 4
          %s166 = scalar_lea.vmem %s0, %s165
          %s167 = smul.u32 4, %s21
        $region20: #{_lambda_.6} parent=15 // pred_fallthru
          _
        // Predicated region
        $region21: #{_lambda_.6} parent=15 // pred_check
          %p168 = pneg %p73
        $region22: #{_lambda_.6} parent=15 // pred_check_branch
          %170 = sbr.rel (%p168) target = $region24
        $region23: #{_lambda_.6} parent=15 // pred_region
          %s171 = sand.u32 %s63, 1
          %s172 = scalar_lea.sflag [#allocation3], %s171
          %s173 = sand.u32 %s63, 1
          %s174 = smul.addr %s173, 128
          %s175 = scalar_lea.vmem [#allocation2], %s174
          %s177 = ssub.s32 2048, 2048
          %178 = vsyncadd %s172, %s177
          %s179 = smul.addr %s20, 32
          %s180 = smul.addr %s179, 64
          %s181 = scalar_lea.hbm %s1, %s180
          %s182 = sshll.u32 %s175, 4
          %s183 = int_to_ptr.vmem [resolvable:$true] %s182
          %188 = dma.hbm_to_vmem [thread:$0]  %s181, 2048, %s183, %s172, 64, 64, 4
        $region24: #{_lambda_.6} parent=15 // pred_fallthru
          _
      $region16: #{_lambda_.6} parent=5 // pred_fallthru
        _
      %p189 = scmp.le.s32.totalorder 1, %s13
      %p190 = scmp.lt.s32.totalorder %s13, 5
      %p191 = pnand %p189, %p190
      %p192 = pneg %p191
      // Predicated region
      $region25: #{_lambda_.6} parent=5 // pred_check
        _
      $region26: #{_lambda_.6} parent=5 // pred_check_branch
        %194 = sbr.rel (%p191) target = $region28
      $region27: #{_lambda_.6} parent=5 // pred_region
        %s195 = ssub.s32 %s13, 1
        %s196 = sand.u32 %s66, 1
        %s197 = scalar_lea.sflag [#allocation3], %s196
        %s198 = sand.u32 %s66, 1
        %s199 = smul.addr %s198, 128
        %s200 = scalar_lea.vmem [#allocation2], %s199
        // Predicated region
        $region29: #{_lambda_.6} parent=27 // pred_check
          %p201 = pneg %p79
        $region30: #{_lambda_.6} parent=27 // pred_check_branch
          %203 = sbr.rel (%p201) target = $region32
        $region31: #{_lambda_.6} parent=27 // pred_region
          %204 = dma.done %s197, 2048
        $region32: #{_lambda_.6} parent=27 // pred_fallthru
          _
        %s205 = smul.u32 4, %s23
        %p206 = scmp.lt.s32.totalorder %s22, 3
        %s207 = scalar_select %p206, %s22, 3
        %p208 = scmp.lt.s32.totalorder %s205, 3
        %s209 = scalar_select %p208, %s205, 3
        %s210 = smul.addr %s209, 2
        %s211 = smul.addr %s207, 8
        %s212 = sadd.s32 %s210, %s211
        %s213 = smul.addr %s212, 4
        %s214 = scalar_lea.vmem %s0, %s213
        %p215 = pneg %p53
        %p216 = pneg %p50
        %s217 = sand.u32 %s66, 1
        %s218 = scalar_lea.sflag [#allocation3], %s217
        %s219 = sand.u32 %s66, 1
        %s220 = smul.addr %s219, 128
        %s221 = scalar_lea.vmem [#allocation2], %s220
        %p222 = pneg %p79
        %p223 = pneg %p76
        %p224 = pneg %p107
        %p225 = pneg %p104
        %s226 = smul.u32 4, %s23
        %p227 = scmp.lt.s32.totalorder %s22, 3
        %s228 = scalar_select %p227, %s22, 3
        %p229 = scmp.lt.s32.totalorder %s226, 3
        %s230 = scalar_select %p229, %s226, 3
        %s231 = smul.addr %s228, 4
        %s232 = sadd.s32 %s230, %s231
        %s233 = smul.addr %s232, 4
        %s234 = scalar_lea.vmem %s2, %s233
        %p235 = pneg %p135
        %p236 = pneg %p132
        %p237 = scmp.lt.s32.totalorder %s22, 3
        %s238 = scalar_select %p237, %s22, 3
        %p239 = scmp.lt.s32.totalorder %s23, 0
        %s240 = scalar_select %p239, %s23, 0
        %s241 = sadd.s32 %s240, %s238
        %s242 = smul.addr %s241, 2
        %s243 = scalar_lea.vmem %s3, %s242
        %s244 = smul.u32 4, %s23
        %p245 = scmp.lt.s32.totalorder %s22, 3
        %s246 = scalar_select %p245, %s22, 3
        %p247 = scmp.lt.s32.totalorder %s244, 3
        %s248 = scalar_select %p247, %s244, 3
        %s249 = smul.addr %s248, 2
        %s250 = smul.addr %s246, 8
        %s251 = sadd.s32 %s249, %s250
        %s252 = smul.addr %s251, 4
        %s253 = scalar_lea.vmem %s0, %s252
        %s254 = smul.u32 4, %s23
        %s255 = smul.u32 4, %s23
        %p256 = scmp.lt.s32.totalorder %s22, 3
        %s257 = scalar_select %p256, %s22, 3
        %p258 = scmp.lt.s32.totalorder %s255, 3
        %s259 = scalar_select %p258, %s255, 3
        %s260 = smul.addr %s257, 4
        %s261 = sadd.s32 %s259, %s260
        %s262 = smul.addr %s261, 4
        %s263 = scalar_lea.vmem %s2, %s262
        %s264 = smul.u32 4, %s23
        %p265 = scmp.lt.s32.totalorder %s22, 3
        %s266 = scalar_select %p265, %s22, 3
        %p267 = scmp.lt.s32.totalorder %s23, 0
        %s268 = scalar_select %p267, %s23, 0
        %s269 = sadd.s32 %s268, %s266
        %s270 = smul.addr %s269, 2
        %s271 = scalar_lea.vmem %s3, %s270
        %v273 = vld [vmem:[%s253] sm:$0xff]
        %v274 = vld [vmem:[%s253 + $0x8] sm:$0xff]
        %v275 = vld [vmem:[%s253 + $0x10] sm:$0xff]
        %v276 = vld [vmem:[%s253 + $0x18] sm:$0xff]
        %v277 = vld [vmem:[%s200] sm:$0xf]
        %v278 = vld [vmem:[%s200 + $0x4] sm:$0xf]
        %v279 = vld [vmem:[%s200 + $0x8] sm:$0xf]
        %v280 = vld [vmem:[%s200 + $0xc] sm:$0xf]
        %v281 = vld [vmem:[%s200 + $0x10] sm:$0xf]
        %v282 = vld [vmem:[%s200 + $0x14] sm:$0xf]
        %v283 = vld [vmem:[%s200 + $0x18] sm:$0xf]
        %v284 = vld [vmem:[%s200 + $0x1c] sm:$0xf]
        %v285 = vld [vmem:[%s200 + $0x20] sm:$0xf]
        %v286 = vld [vmem:[%s200 + $0x24] sm:$0xf]
        %v287 = vld [vmem:[%s200 + $0x28] sm:$0xf]
        %v288 = vld [vmem:[%s200 + $0x2c] sm:$0xf]
        %v289 = vld [vmem:[%s200 + $0x30] sm:$0xf]
        %v290 = vld [vmem:[%s200 + $0x34] sm:$0xf]
        %v291 = vld [vmem:[%s200 + $0x38] sm:$0xf]
        %v292 = vld [vmem:[%s200 + $0x3c] sm:$0xf]
        %v293 = vld [vmem:[%s200 + $0x40] sm:$0xf]
        %v294 = vld [vmem:[%s200 + $0x44] sm:$0xf]
        %v295 = vld [vmem:[%s200 + $0x48] sm:$0xf]
        %v296 = vld [vmem:[%s200 + $0x4c] sm:$0xf]
        %v297 = vld [vmem:[%s200 + $0x50] sm:$0xf]
        %v298 = vld [vmem:[%s200 + $0x54] sm:$0xf]
        %v299 = vld [vmem:[%s200 + $0x58] sm:$0xf]
        %v300 = vld [vmem:[%s200 + $0x5c] sm:$0xf]
        %v301 = vld [vmem:[%s200 + $0x60] sm:$0xf]
        %v302 = vld [vmem:[%s200 + $0x64] sm:$0xf]
        %v303 = vld [vmem:[%s200 + $0x68] sm:$0xf]
        %v304 = vld [vmem:[%s200 + $0x6c] sm:$0xf]
        %v305 = vld [vmem:[%s200 + $0x70] sm:$0xf]
        %v306 = vld [vmem:[%s200 + $0x74] sm:$0xf]
        %v307 = vld [vmem:[%s200 + $0x78] sm:$0xf]
        %v308 = vld [vmem:[%s200 + $0x7c] sm:$0xf]
        %v313 = vunpack.c.l.b16 %v273
        %v314 = vunpack.c.h.b16 %v273
        %v315 = vunpack.c.l.b16 %v274
        %v316 = vunpack.c.h.b16 %v274
        %v317 = vunpack.c.l.b16 %v275
        %v318 = vunpack.c.h.b16 %v275
        %v319 = vunpack.c.l.b16 %v276
        %v320 = vunpack.c.h.b16 %v276
        %v321 = vpack.c.b16 %v315, %v313
        %v322 = vpack.c.b16 %v316, %v314
        %v323 = vpack.c.b16 %v319, %v317
        %v324 = vpack.c.b16 %v320, %v318
        %v361 = vunpack.c.l.b16 %v277
        %v362 = vunpack.c.l.b16 %v278
        %v363 = vunpack.c.l.b16 %v279
        %v364 = vunpack.c.l.b16 %v280
        %v365 = vunpack.c.l.b16 %v281
        %v366 = vunpack.c.l.b16 %v282
        %v367 = vunpack.c.l.b16 %v283
        %v368 = vunpack.c.l.b16 %v284
        %v369 = vunpack.c.l.b16 %v285
        %v370 = vunpack.c.l.b16 %v286
        %v371 = vunpack.c.l.b16 %v287
        %v372 = vunpack.c.l.b16 %v288
        %v373 = vunpack.c.l.b16 %v289
        %v374 = vunpack.c.l.b16 %v290
        %v375 = vunpack.c.l.b16 %v291
        %v376 = vunpack.c.l.b16 %v292
        %v377 = vunpack.c.l.b16 %v293
        %v378 = vunpack.c.l.b16 %v294
        %v379 = vunpack.c.l.b16 %v295
        %v380 = vunpack.c.l.b16 %v296
        %v381 = vunpack.c.l.b16 %v297
        %v382 = vunpack.c.l.b16 %v298
        %v383 = vunpack.c.l.b16 %v299
        %v384 = vunpack.c.l.b16 %v300
        %v385 = vunpack.c.l.b16 %v301
        %v386 = vunpack.c.l.b16 %v302
        %v387 = vunpack.c.l.b16 %v303
        %v388 = vunpack.c.l.b16 %v304
        %v389 = vunpack.c.l.b16 %v305
        %v390 = vunpack.c.l.b16 %v306
        %v391 = vunpack.c.l.b16 %v307
        %v392 = vunpack.c.l.b16 %v308
        %v393 = vpack.c.b16 %v362, %v361
        %v394 = vpack.c.b16 %v364, %v363
        %v395 = vpack.c.b16 %v366, %v365
        %v396 = vpack.c.b16 %v368, %v367
        %v397 = vpack.c.b16 %v370, %v369
        %v398 = vpack.c.b16 %v372, %v371
        %v399 = vpack.c.b16 %v374, %v373
        %v400 = vpack.c.b16 %v376, %v375
        %v401 = vpack.c.b16 %v378, %v377
        %v402 = vpack.c.b16 %v380, %v379
        %v403 = vpack.c.b16 %v382, %v381
        %v404 = vpack.c.b16 %v384, %v383
        %v405 = vpack.c.b16 %v386, %v385
        %v406 = vpack.c.b16 %v388, %v387
        %v407 = vpack.c.b16 %v390, %v389
        %v408 = vpack.c.b16 %v392, %v391
        %425 = vmatprep.subr.bf16.mxu0 0
        %426 = vmatpush1.bf16.msra.mxu0 %v393
        %427 = vmatprep.subr.bf16.mxu0 0
        %428 = vmatpush1.bf16.msra.mxu0 %v394
        %429 = vmatprep.subr.bf16.mxu0 0
        %430 = vmatpush1.bf16.msra.mxu0 %v395
        %431 = vmatprep.subr.bf16.mxu0 0
        %432 = vmatpush1.bf16.msra.mxu0 %v396
        %433 = vmatprep.subr.bf16.mxu0 0
        %434 = vmatpush1.bf16.msra.mxu0 %v397
        %435 = vmatprep.subr.bf16.mxu0 0
        %436 = vmatpush1.bf16.msra.mxu0 %v398
        %437 = vmatprep.subr.bf16.mxu0 0
        %438 = vmatpush1.bf16.msra.mxu0 %v399
        %439 = vmatprep.subr.bf16.mxu0 0
        %440 = vmatpush1.bf16.msra.mxu0 %v400
        %441 = vmatprep.subr.bf16.mxu0 0
        %442 = vmatpush1.bf16.msra.mxu0 %v401
        %443 = vmatprep.subr.bf16.mxu0 0
        %444 = vmatpush1.bf16.msra.mxu0 %v402
        %445 = vmatprep.subr.bf16.mxu0 0
        %446 = vmatpush1.bf16.msra.mxu0 %v403
        %447 = vmatprep.subr.bf16.mxu0 0
        %448 = vmatpush1.bf16.msra.mxu0 %v404
        %449 = vmatprep.subr.bf16.mxu0 0
        %450 = vmatpush1.bf16.msra.mxu0 %v405
        %451 = vmatprep.subr.bf16.mxu0 0
        %452 = vmatpush1.bf16.msra.mxu0 %v406
        %453 = vmatprep.subr.bf16.mxu0 0
        %454 = vmatpush1.bf16.msra.mxu0 %v407
        %455 = vmatprep.subr.bf16.mxu0 0
        %456 = vmatpush1.bf16.msra.mxu0 %v408
        %457 = vmatprep.mubr.bf16.mxu0 %v322
        %458 = vmatmul.mubr.bf16.gmra.mrb[0].mxu0 %v321
        %v459 = vpop.f32.mrb[0].mxu0
        %v460 = vadd.f32 0.0, %v459
        %v461 = vpop.f32.mrb[0].mxu0
        %v462 = vpop.f32.mrb[0].mxu0
        %v463 = vadd.f32 0.0, %v462
        %v464 = vpop.f32.mrb[0].mxu0
        %465 = vmatprep.mubr.bf16.mxu0 %v324
        %466 = vmatmul.mubr.bf16.gmra.mrb[0].mxu0 %v323
        %v467 = vpop.f32.mrb[0].mxu0
        %v468 = vadd.f32 0.0, %v467
        %v469 = vpop.f32.mrb[0].mxu0
        %v470 = vpop.f32.mrb[0].mxu0
        %v471 = vadd.f32 0.0, %v470
        %v472 = vpop.f32.mrb[0].mxu0
        %473 = vdwg.mxu0
        %v474 = vpack.c.bf16 %v463, %v460
        %v475 = vpack.c.bf16 %v471, %v468
        %v478 = vunpack.c.l.b16 %v474
        %v479 = vunpack.c.h.b16 %v474
        %v480 = vunpack.c.l.b16 %v475
        %v481 = vunpack.c.h.b16 %v475
        %v482 = vpack.c.b16 %v478, %v478
        %v483 = vpack.c.b16 %v479, %v479
        %v484 = vpack.c.b16 %v480, %v480
        %v485 = vpack.c.b16 %v481, %v481
        %490 = vst [vmem:[%s263] sm:$0xf] %v482
        %491 = vst [vmem:[%s263 + $0x4] sm:$0xf] %v483
        %492 = vst [vmem:[%s263 + $0x8] sm:$0xf] %v484
        %493 = vst [vmem:[%s263 + $0xc] sm:$0xf] %v485
        %v494 = vadd.f32 %v460, %v463
        %v495 = vadd.f32 %v494, %v468
        %v496 = vadd.f32 %v495, %v471
        %v497 = vrot.slane %v496, 4
        %v498 = vadd.f32 %v496, %v497
        %v499 = vrot.slane %v498, 2
        %v500 = vadd.f32 %v498, %v499
        %v501 = vrot.slane %v500, 1
        %v502 = vadd.f32 %v500, %v501
        %503 = vst [vmem:[%s271] sm:$0x1] %v502
        %v504 = vmul.f32 %v460, %v460
        %v505 = vmul.f32 %v463, %v463
        %v506 = vmul.f32 %v468, %v468
        %v507 = vmul.f32 %v471, %v471
        %v508 = vadd.f32 %v504, %v505
        %v509 = vadd.f32 %v508, %v506
        %v510 = vadd.f32 %v509, %v507
        %v511 = vrot.slane %v510, 4
        %v512 = vadd.f32 %v510, %v511
        %v513 = vrot.slane %v512, 2
        %v514 = vadd.f32 %v512, %v513
        %v515 = vrot.slane %v514, 1
        %v516 = vadd.f32 %v514, %v515
        %517 = vst [vmem:[%s271 + $0x1] sm:$0x1] %v516
        %s518 = smul.u32 4, %s23
        %p519 = scmp.lt.s32.totalorder %s22, 3
        %s520 = scalar_select %p519, %s22, 3
        %p521 = scmp.lt.s32.totalorder %s518, 3
        %s522 = scalar_select %p521, %s518, 3
        %s523 = smul.addr %s520, 4
        %s524 = sadd.s32 %s522, %s523
        %s525 = smul.addr %s524, 4
        %s526 = scalar_lea.vmem %s2, %s525
        %p527 = scmp.lt.s32.totalorder %s22, 3
        %s528 = scalar_select %p527, %s22, 3
        %p529 = scmp.lt.s32.totalorder %s23, 0
        %s530 = scalar_select %p529, %s23, 0
        %s531 = sadd.s32 %s530, %s528
        %s532 = smul.addr %s531, 2
        %s533 = scalar_lea.vmem %s3, %s532
        // Predicated region
        $region33: #{_lambda_.6} parent=27 // pred_check
          %p534 = pneg %p104
        $region34: #{_lambda_.6} parent=27 // pred_check_branch
          %536 = sbr.rel (%p534) target = $region36
        $region35: #{_lambda_.6} parent=27 // pred_region
          %s537 = smul.u32 4, %s23
        $region36: #{_lambda_.6} parent=27 // pred_fallthru
          _
        // Predicated region
        $region37: #{_lambda_.6} parent=27 // pred_check
          %p538 = pneg %p132
        $region38: #{_lambda_.6} parent=27 // pred_check_branch
          %540 = sbr.rel (%p538) target = $region40
        $region39: #{_lambda_.6} parent=27 // pred_region
          _
        $region40: #{_lambda_.6} parent=27 // pred_fallthru
          _
      $region28: #{_lambda_.6} parent=5 // pred_fallthru
        _
      %p541 = scmp.le.s32.totalorder 2, %s13
      // Predicated region
      $region41: #{_lambda_.6} parent=5 // pred_check
        %p542 = pneg %p541
      $region42: #{_lambda_.6} parent=5 // pred_check_branch
        %544 = sbr.rel (%p542) target = $region44
      $region43: #{_lambda_.6} parent=5 // pred_region
        %s545 = ssub.s32 %s13, 2
        // Predicated region
        $region45: #{_lambda_.6} parent=43 // pred_check
          %p546 = pneg %p110
        $region46: #{_lambda_.6} parent=43 // pred_check_branch
          %548 = sbr.rel (%p546) target = $region48
        $region47: #{_lambda_.6} parent=43 // pred_region
          %s549 = smul.u32 4, %s25
          %p550 = scmp.lt.s32.totalorder %s24, 3
          %s551 = scalar_select %p550, %s24, 3
          %p552 = scmp.lt.s32.totalorder %s549, 3
          %s553 = scalar_select %p552, %s549, 3
          %s554 = smul.addr %s551, 4
          %s555 = sadd.s32 %s553, %s554
          %s556 = smul.addr %s555, 4
          %s557 = scalar_lea.vmem %s2, %s556
        $region48: #{_lambda_.6} parent=43 // pred_fallthru
          _
        // Predicated region
        $region49: #{_lambda_.6} parent=43 // pred_check
          %p558 = pneg %p138
        $region50: #{_lambda_.6} parent=43 // pred_check_branch
          %560 = sbr.rel (%p558) target = $region52
        $region51: #{_lambda_.6} parent=43 // pred_region
          %p561 = scmp.lt.s32.totalorder %s24, 3
          %s562 = scalar_select %p561, %s24, 3
          %p563 = scmp.lt.s32.totalorder %s25, 0
          %s564 = scalar_select %p563, %s25, 0
          %s565 = sadd.s32 %s564, %s562
          %s566 = smul.addr %s565, 2
          %s567 = scalar_lea.vmem %s3, %s566
        $region52: #{_lambda_.6} parent=43 // pred_fallthru
          _
      $region44: #{_lambda_.6} parent=5 // pred_fallthru
        _
    $region6: #{_lambda_.6} parent=1 // loop_footer
      %s17 = sadd.s32 1, %s13
    $region7: #{_lambda_.6} parent=1 // loop_footer_branch
      %12 = sbr.rel target = $region3
    $region8: #{_lambda_.6} parent=1 // loop_exit
      _
    %568 = vsyncpa [#allocation3], 1
    %s569 = scalar_lea.sflag [#allocation3], 1
    %570 = vsyncpa %s569, 1

// kernel: _lambda_.7
$region0: #{_lambda_.7}
  #allocation0 [shape = 'u32[]', space=smem, size = 0x4, offset = 0x4, fixed_abs, tag = 'smem constant byte address 0x4 - core index']
  #allocation1 [shape = 'u32[144,128]{1,0:T(1,128)}', space=vmem, size = 0x12000, scoped, tag = 'internal scratch']
  %s0 = inlined_call_operand.vmem [shape: bf16[4,128,128], index: 0, kind: input, shape index: {}]
  %s1 = inlined_call_operand.vmem [shape: bf16[4,128,128], index: 1, kind: input, shape index: {}]
  %s2 = inlined_call_operand.vmem [shape: bf16[4,128,128], index: 2, kind: output, shape index: {0}]
  %s3 = inlined_call_operand.vmem [shape: f32[4,1,2,128], index: 3, kind: output, shape index: {1}]
  %4 = xla_tuple %s2, %s3
  %s5 = sld [smem:[#allocation0]]
  $region49: #{_lambda_.7} parent=0
    _
  %s7 = ssub.s32 1, %s5
  %s8 = scalar_select 0, %s7, %s5
  loop: start=0, step=1, limit=6
  $region2: #{_lambda_.7} parent=0 // loop_pre_header
    _
  $region3: #{_lambda_.7} parent=0 // loop_header
    %s10 = sphi 0, %s14
    %p11 = scmp.ge.s32.totalorder %s10, 6
    %s17 = sphi 0, %s29
    %s18 = sphi 0, %s25
    %s19 = sphi 0, %s17
    %s20 = sphi 0, %s18
    %s21 = sphi 0, %s19
    %s22 = sphi 0, %s20
    %s34 = sphi 0, %s36
    %s37 = sphi 0, %s34
    %s38 = sphi 0, %s37
    %s54 = sphi 0, %s38
    %s60 = sphi 0, %s62
    %s63 = sphi 0, %s60
    %s64 = sphi 0, %s63
    %s80 = sphi 0, %s64
    %s88 = sphi 0, %s90
    %s91 = sphi 0, %s88
    %s92 = sphi 0, %s91
    %s108 = sphi 0, %s92
    %s116 = sphi 0, %s118
    %s119 = sphi 0, %s116
    %s120 = sphi 0, %s119
    %s136 = sphi 0, %s120
  $region4: #{_lambda_.7} parent=0 // loop_header_branch
    %13 = sbr.rel (%p11) target = $region8
  $region5: #{_lambda_.7} parent=0 // loop_body
    %s15 = ssub.s32 %s10, 1
    %s16 = ssub.s32 %s10, 2
    %s23 = sadd.s32 1, %s18
    %p24 = scmp.ge.s32.totalorder %s23, 1
    %s25 = scalar_select %p24, 0, %s23
    %s26 = sadd.s32 1, %s17
    %s27 = scalar_select %p24, %s26, %s17
    %p28 = scmp.ge.s32.totalorder %s27, 4
    %s29 = scalar_select %p28, 0, %s27
    %s30 = ssub.s32 %s17, %s29
    %s31 = ssub.s32 %s18, %s25
    %s32 = sor.u32 %s30, %s31
    %p33 = scmp.eq.s32.totalorder %s32, 0
    %s35 = sadd.s32 %s34, 1
    %s36 = scalar_select %p33, %s34, %s35
    %p39 = pneg %p33
    %p40 = scmp.eq.s32.totalorder %s10, 3
    %p41 = por %p39, %p40
    %p42 = scmp.ne.s32.totalorder %s34, %s37
    %p43 = scmp.eq.s32.totalorder %s10, 0
    %p44 = por %p42, %p43
    %p45 = scmp.ne.s32.totalorder %s34, %s37
    %p46 = scmp.eq.s32.totalorder %s15, 3
    %p47 = por %p45, %p46
    %p48 = scmp.ne.s32.totalorder %s37, %s38
    %p49 = scmp.eq.s32.totalorder %s15, 0
    %p50 = por %p48, %p49
    %p51 = scmp.ne.s32.totalorder %s37, %s38
    %p52 = scmp.eq.s32.totalorder %s16, 3
    %p53 = por %p51, %p52
    %p55 = scmp.ne.s32.totalorder %s38, %s54
    %p56 = scmp.eq.s32.totalorder %s16, 0
    %p57 = por %p55, %p56
    %s58 = ssub.s32 %s17, %s29
    %p59 = scmp.eq.s32.totalorder %s58, 0
    %s61 = sadd.s32 %s60, 1
    %s62 = scalar_select %p59, %s60, %s61
    %p65 = pneg %p59
    %p66 = scmp.eq.s32.totalorder %s10, 3
    %p67 = por %p65, %p66
    %p68 = scmp.ne.s32.totalorder %s60, %s63
    %p69 = scmp.eq.s32.totalorder %s10, 0
    %p70 = por %p68, %p69
    %p71 = scmp.ne.s32.totalorder %s60, %s63
    %p72 = scmp.eq.s32.totalorder %s15, 3
    %p73 = por %p71, %p72
    %p74 = scmp.ne.s32.totalorder %s63, %s64
    %p75 = scmp.eq.s32.totalorder %s15, 0
    %p76 = por %p74, %p75
    %p77 = scmp.ne.s32.totalorder %s63, %s64
    %p78 = scmp.eq.s32.totalorder %s16, 3
    %p79 = por %p77, %p78
    %p81 = scmp.ne.s32.totalorder %s64, %s80
    %p82 = scmp.eq.s32.totalorder %s16, 0
    %p83 = por %p81, %p82
    %s84 = ssub.s32 %s17, %s29
    %s85 = ssub.s32 %s18, %s25
    %s86 = sor.u32 %s84, %s85
    %p87 = scmp.eq.s32.totalorder %s86, 0
    %s89 = sadd.s32 %s88, 1
    %s90 = scalar_select %p87, %s88, %s89
    %p93 = pneg %p87
    %p94 = scmp.eq.s32.totalorder %s10, 3
    %p95 = por %p93, %p94
    %p96 = scmp.ne.s32.totalorder %s88, %s91
    %p97 = scmp.eq.s32.totalorder %s10, 0
    %p98 = por %p96, %p97
    %p99 = scmp.ne.s32.totalorder %s88, %s91
    %p100 = scmp.eq.s32.totalorder %s15, 3
    %p101 = por %p99, %p100
    %p102 = scmp.ne.s32.totalorder %s91, %s92
    %p103 = scmp.eq.s32.totalorder %s15, 0
    %p104 = por %p102, %p103
    %p105 = scmp.ne.s32.totalorder %s91, %s92
    %p106 = scmp.eq.s32.totalorder %s16, 3
    %p107 = por %p105, %p106
    %p109 = scmp.ne.s32.totalorder %s92, %s108
    %p110 = scmp.eq.s32.totalorder %s16, 0
    %p111 = por %p109, %p110
    %s112 = ssub.s32 %s17, %s29
    %s113 = ssub.s32 %s18, %s25
    %s114 = sor.u32 %s112, %s113
    %p115 = scmp.eq.s32.totalorder %s114, 0
    %s117 = sadd.s32 %s116, 1
    %s118 = scalar_select %p115, %s116, %s117
    %p121 = pneg %p115
    %p122 = scmp.eq.s32.totalorder %s10, 3
    %p123 = por %p121, %p122
    %p124 = scmp.ne.s32.totalorder %s116, %s119
    %p125 = scmp.eq.s32.totalorder %s10, 0
    %p126 = por %p124, %p125
    %p127 = scmp.ne.s32.totalorder %s116, %s119
    %p128 = scmp.eq.s32.totalorder %s15, 3
    %p129 = por %p127, %p128
    %p130 = scmp.ne.s32.totalorder %s119, %s120
    %p131 = scmp.eq.s32.totalorder %s15, 0
    %p132 = por %p130, %p131
    %p133 = scmp.ne.s32.totalorder %s119, %s120
    %p134 = scmp.eq.s32.totalorder %s16, 3
    %p135 = por %p133, %p134
    %p137 = scmp.ne.s32.totalorder %s120, %s136
    %p138 = scmp.eq.s32.totalorder %s16, 0
    %p139 = por %p137, %p138
    %p140 = scmp.le.s32.totalorder 1, %s10
    %p141 = scmp.lt.s32.totalorder %s10, 5
    %p142 = pnand %p140, %p141
    %p143 = pneg %p142
    // Predicated region
    $region9: #{_lambda_.7} parent=5 // pred_check
      _
    $region10: #{_lambda_.7} parent=5 // pred_check_branch
      %145 = sbr.rel (%p142) target = $region12
    $region11: #{_lambda_.7} parent=5 // pred_region
      %s146 = ssub.s32 %s10, 1
    $region12: #{_lambda_.7} parent=5 // pred_fallthru
      _
    %p147 = scmp.lt.s32.totalorder %s10, 4
    // Predicated region
    $region13: #{_lambda_.7} parent=5 // pred_check
      %p148 = pneg %p147
    $region14: #{_lambda_.7} parent=5 // pred_check_branch
      %150 = sbr.rel (%p148) target = $region16
    $region15: #{_lambda_.7} parent=5 // pred_region
      // Predicated region
      $region17: #{_lambda_.7} parent=15 // pred_check
        %p151 = pneg %p44
      $region18: #{_lambda_.7} parent=15 // pred_check_branch
        %153 = sbr.rel (%p151) target = $region20
      $region19: #{_lambda_.7} parent=15 // pred_region
        %s154 = smul.u32 16, %s18
        %p155 = scmp.lt.s32.totalorder %s17, 3
        %s156 = scalar_select %p155, %s17, 3
        %p157 = scmp.lt.s32.totalorder %s154, 15
        %s158 = scalar_select %p157, %s154, 15
        %s159 = smul.addr %s156, 16
        %s160 = sadd.s32 %s158, %s159
        %s161 = smul.addr %s160, 4
        %s162 = scalar_lea.vmem %s0, %s161
        %s163 = smul.u32 16, %s18
      $region20: #{_lambda_.7} parent=15 // pred_fallthru
        _
      // Predicated region
      $region21: #{_lambda_.7} parent=15 // pred_check
        %p164 = pneg %p70
      $region22: #{_lambda_.7} parent=15 // pred_check_branch
        %166 = sbr.rel (%p164) target = $region24
      $region23: #{_lambda_.7} parent=15 // pred_region
        %p167 = scmp.lt.s32.totalorder %s17, 3
        %s168 = scalar_select %p167, %s17, 3
        %s169 = smul.addr %s168, 16
        %s170 = smul.addr %s169, 4
        %s171 = scalar_lea.vmem %s1, %s170
      $region24: #{_lambda_.7} parent=15 // pred_fallthru
        _
    $region16: #{_lambda_.7} parent=5 // pred_fallthru
      _
    %p172 = scmp.le.s32.totalorder 1, %s10
    %p173 = scmp.lt.s32.totalorder %s10, 5
    %p174 = pnand %p172, %p173
    %p175 = pneg %p174
    // Predicated region
    $region25: #{_lambda_.7} parent=5 // pred_check
      _
    $region26: #{_lambda_.7} parent=5 // pred_check_branch
      %177 = sbr.rel (%p174) target = $region28
    $region27: #{_lambda_.7} parent=5 // pred_region
      %s178 = ssub.s32 %s10, 1
      %s179 = smul.u32 16, %s20
      %p180 = scmp.lt.s32.totalorder %s19, 3
      %s181 = scalar_select %p180, %s19, 3
      %p182 = scmp.lt.s32.totalorder %s179, 15
      %s183 = scalar_select %p182, %s179, 15
      %s184 = smul.addr %s181, 16
      %s185 = sadd.s32 %s183, %s184
      %s186 = smul.addr %s185, 4
      %s187 = scalar_lea.vmem %s0, %s186
      %p188 = pneg %p50
      %p189 = pneg %p47
      %p190 = scmp.lt.s32.totalorder %s19, 3
      %s191 = scalar_select %p190, %s19, 3
      %s192 = smul.addr %s191, 16
      %s193 = smul.addr %s192, 4
      %s194 = scalar_lea.vmem %s1, %s193
      %p195 = pneg %p76
      %p196 = pneg %p73
      %p197 = pneg %p104
      %p198 = pneg %p101
      %s199 = smul.u32 16, %s20
      %p200 = scmp.lt.s32.totalorder %s19, 3
      %s201 = scalar_select %p200, %s19, 3
      %p202 = scmp.lt.s32.totalorder %s199, 15
      %s203 = scalar_select %p202, %s199, 15
      %s204 = smul.addr %s201, 16
      %s205 = sadd.s32 %s203, %s204
      %s206 = smul.addr %s205, 4
      %s207 = scalar_lea.vmem %s2, %s206
      %p208 = pneg %p132
      %p209 = pneg %p129
      %p210 = scmp.lt.s32.totalorder %s19, 3
      %s211 = scalar_select %p210, %s19, 3
      %p212 = scmp.lt.s32.totalorder %s20, 0
      %s213 = scalar_select %p212, %s20, 0
      %s214 = sadd.s32 %s213, %s211
      %s215 = smul.addr %s214, 2
      %s216 = scalar_lea.vmem %s3, %s215
      %s217 = smul.u32 16, %s20
      %p218 = scmp.lt.s32.totalorder %s19, 3
      %s219 = scalar_select %p218, %s19, 3
      %p220 = scmp.lt.s32.totalorder %s217, 15
      %s221 = scalar_select %p220, %s217, 15
      %s222 = smul.addr %s219, 16
      %s223 = sadd.s32 %s221, %s222
      %s224 = smul.addr %s223, 4
      %s225 = scalar_lea.vmem %s0, %s224
      %s226 = smul.u32 16, %s20
      %p227 = scmp.lt.s32.totalorder %s19, 3
      %s228 = scalar_select %p227, %s19, 3
      %s229 = smul.addr %s228, 16
      %s230 = smul.addr %s229, 4
      %s231 = scalar_lea.vmem %s1, %s230
      %s232 = smul.u32 16, %s20
      %p233 = scmp.lt.s32.totalorder %s19, 3
      %s234 = scalar_select %p233, %s19, 3
      %p235 = scmp.lt.s32.totalorder %s232, 15
      %s236 = scalar_select %p235, %s232, 15
      %s237 = smul.addr %s234, 16
      %s238 = sadd.s32 %s236, %s237
      %s239 = smul.addr %s238, 4
      %s240 = scalar_lea.vmem %s2, %s239
      %s241 = smul.u32 16, %s20
      %p242 = scmp.lt.s32.totalorder %s19, 3
      %s243 = scalar_select %p242, %s19, 3
      %p244 = scmp.lt.s32.totalorder %s20, 0
      %s245 = scalar_select %p244, %s20, 0
      %s246 = sadd.s32 %s245, %s243
      %s247 = smul.addr %s246, 2
      %s248 = scalar_lea.vmem %s3, %s247
      %v250 = vld [vmem:[%s225] sm:$0xf]
      %v251 = vld [vmem:[%s225 + $0x4] sm:$0xf]
      %v252 = vld [vmem:[%s225 + $0x8] sm:$0xf]
      %v253 = vld [vmem:[%s225 + $0xc] sm:$0xf]
      %v254 = vld [vmem:[%s225 + $0x10] sm:$0xf]
      %v255 = vld [vmem:[%s225 + $0x14] sm:$0xf]
      %v256 = vld [vmem:[%s225 + $0x18] sm:$0xf]
      %v257 = vld [vmem:[%s225 + $0x1c] sm:$0xf]
      %v258 = vld [vmem:[%s225 + $0x20] sm:$0xf]
      %v259 = vld [vmem:[%s225 + $0x24] sm:$0xf]
      %v260 = vld [vmem:[%s225 + $0x28] sm:$0xf]
      %v261 = vld [vmem:[%s225 + $0x2c] sm:$0xf]
      %v262 = vld [vmem:[%s225 + $0x30] sm:$0xf]
      %v263 = vld [vmem:[%s225 + $0x34] sm:$0xf]
      %v264 = vld [vmem:[%s225 + $0x38] sm:$0xf]
      %v265 = vld [vmem:[%s225 + $0x3c] sm:$0xf]
      %v266 = vld [vmem:[%s231] sm:$0xf]
      %v267 = vld [vmem:[%s231 + $0x4] sm:$0xf]
      %v268 = vld [vmem:[%s231 + $0x8] sm:$0xf]
      %v269 = vld [vmem:[%s231 + $0xc] sm:$0xf]
      %v270 = vld [vmem:[%s231 + $0x10] sm:$0xf]
      %v271 = vld [vmem:[%s231 + $0x14] sm:$0xf]
      %v272 = vld [vmem:[%s231 + $0x18] sm:$0xf]
      %v273 = vld [vmem:[%s231 + $0x1c] sm:$0xf]
      %v274 = vld [vmem:[%s231 + $0x20] sm:$0xf]
      %v275 = vld [vmem:[%s231 + $0x24] sm:$0xf]
      %v276 = vld [vmem:[%s231 + $0x28] sm:$0xf]
      %v277 = vld [vmem:[%s231 + $0x2c] sm:$0xf]
      %v278 = vld [vmem:[%s231 + $0x30] sm:$0xf]
      %v279 = vld [vmem:[%s231 + $0x34] sm:$0xf]
      %v280 = vld [vmem:[%s231 + $0x38] sm:$0xf]
      %v281 = vld [vmem:[%s231 + $0x3c] sm:$0xf]
      %v298 = vunpack.c.l.b16 %v250
      %v299 = vunpack.c.l.b16 %v251
      %v300 = vunpack.c.l.b16 %v252
      %v301 = vunpack.c.l.b16 %v253
      %v302 = vunpack.c.l.b16 %v254
      %v303 = vunpack.c.l.b16 %v255
      %v304 = vunpack.c.l.b16 %v256
      %v305 = vunpack.c.l.b16 %v257
      %v306 = vunpack.c.l.b16 %v258
      %v307 = vunpack.c.l.b16 %v259
      %v308 = vunpack.c.l.b16 %v260
      %v309 = vunpack.c.l.b16 %v261
      %v310 = vunpack.c.l.b16 %v262
      %v311 = vunpack.c.l.b16 %v263
      %v312 = vunpack.c.l.b16 %v264
      %v313 = vunpack.c.l.b16 %v265
      %v314 = vpack.c.b16 %v299, %v298
      %v315 = vpack.c.b16 %v301, %v300
      %v316 = vpack.c.b16 %v303, %v302
      %v317 = vpack.c.b16 %v305, %v304
      %v318 = vpack.c.b16 %v307, %v306
      %v319 = vpack.c.b16 %v309, %v308
      %v320 = vpack.c.b16 %v311, %v310
      %v321 = vpack.c.b16 %v313, %v312
      %v346 = vunpack.c.l.b16 %v266
      %v347 = vunpack.c.l.b16 %v267
      %v348 = vunpack.c.l.b16 %v268
      %v349 = vunpack.c.l.b16 %v269
      %v350 = vunpack.c.l.b16 %v270
      %v351 = vunpack.c.l.b16 %v271
      %v352 = vunpack.c.l.b16 %v272
      %v353 = vunpack.c.l.b16 %v273
      %v354 = vunpack.c.l.b16 %v274
      %v355 = vunpack.c.l.b16 %v275
      %v356 = vunpack.c.l.b16 %v276
      %v357 = vunpack.c.l.b16 %v277
      %v358 = vunpack.c.l.b16 %v278
      %v359 = vunpack.c.l.b16 %v279
      %v360 = vunpack.c.l.b16 %v280
      %v361 = vunpack.c.l.b16 %v281
      %v362 = vpack.c.b16 %v347, %v346
      %v363 = vpack.c.b16 %v349, %v348
      %v364 = vpack.c.b16 %v351, %v350
      %v365 = vpack.c.b16 %v353, %v352
      %v366 = vpack.c.b16 %v355, %v354
      %v367 = vpack.c.b16 %v357, %v356
      %v368 = vpack.c.b16 %v359, %v358
      %v369 = vpack.c.b16 %v361, %v360
      %378 = vmatprep.subr.bf16.mxu0 0
      %379 = vmatpush1.bf16.msra.mxu0 %v362
      %380 = vmatprep.subr.bf16.mxu0 0
      %381 = vmatpush1.bf16.msra.mxu0 %v363
      %382 = vmatprep.subr.bf16.mxu0 0
      %383 = vmatpush1.bf16.msra.mxu0 %v364
      %384 = vmatprep.subr.bf16.mxu0 0
      %385 = vmatpush1.bf16.msra.mxu0 %v365
      %386 = vmatprep.subr.bf16.mxu0 0
      %387 = vmatpush1.bf16.msra.mxu0 %v366
      %388 = vmatprep.subr.bf16.mxu0 0
      %389 = vmatpush1.bf16.msra.mxu0 %v367
      %390 = vmatprep.subr.bf16.mxu0 0
      %391 = vmatpush1.bf16.msra.mxu0 %v368
      %392 = vmatprep.subr.bf16.mxu0 0
      %393 = vmatpush1.bf16.msra.mxu0 %v369
      %394 = vmatprep.subr.bf16.mxu0 0
      %395 = vmatpush1.bf16.msra.mxu0 0
      %396 = vmatprep.subr.bf16.mxu0 0
      %397 = vmatpush1.bf16.msra.mxu0 0
      %398 = vmatprep.subr.bf16.mxu0 0
      %399 = vmatpush1.bf16.msra.mxu0 0
      %400 = vmatprep.subr.bf16.mxu0 0
      %401 = vmatpush1.bf16.msra.mxu0 0
      %402 = vmatprep.subr.bf16.mxu0 0
      %403 = vmatpush1.bf16.msra.mxu0 0
      %404 = vmatprep.subr.bf16.mxu0 0
      %405 = vmatpush1.bf16.msra.mxu0 0
      %406 = vmatprep.subr.bf16.mxu0 0
      %407 = vmatpush1.bf16.msra.mxu0 0
      %408 = vmatprep.subr.bf16.mxu0 0
      %409 = vmatpush1.bf16.msra.mxu0 0
      %410 = vmatprep.mubr.bf16.mxu0 0
      %411 = vmatmul.mubr.bf16.gmra.mrb[0].mxu0 %v314
      %v412 = vpop.f32.mrb[0].mxu0
      %v413 = vadd.f32 0.0, %v412
      %v414 = vpop.f32.mrb[0].mxu0
      %v415 = vpop.f32.mrb[0].mxu0
      %v416 = vadd.f32 0.0, %v415
      %v417 = vpop.f32.mrb[0].mxu0
      %418 = vmatprep.mubr.bf16.mxu0 0
      %419 = vmatmul.mubr.bf16.gmra.mrb[0].mxu0 %v315
      %v420 = vpop.f32.mrb[0].mxu0
      %v421 = vadd.f32 0.0, %v420
      %v422 = vpop.f32.mrb[0].mxu0
      %v423 = vpop.f32.mrb[0].mxu0
      %v424 = vadd.f32 0.0, %v423
      %v425 = vpop.f32.mrb[0].mxu0
      %426 = vmatprep.mubr.bf16.mxu0 0
      %427 = vmatmul.mubr.bf16.gmra.mrb[0].mxu0 %v316
      %v428 = vpop.f32.mrb[0].mxu0
      %v429 = vadd.f32 0.0, %v428
      %v430 = vpop.f32.mrb[0].mxu0
      %v431 = vpop.f32.mrb[0].mxu0
      %v432 = vadd.f32 0.0, %v431
      %v433 = vpop.f32.mrb[0].mxu0
      %434 = vmatprep.mubr.bf16.mxu0 0
      %435 = vmatmul.mubr.bf16.gmra.mrb[0].mxu0 %v317
      %v436 = vpop.f32.mrb[0].mxu0
      %v437 = vadd.f32 0.0, %v436
      %v438 = vpop.f32.mrb[0].mxu0
      %v439 = vpop.f32.mrb[0].mxu0
      %v440 = vadd.f32 0.0, %v439
      %v441 = vpop.f32.mrb[0].mxu0
      %442 = vmatprep.mubr.bf16.mxu0 0
      %443 = vmatmul.mubr.bf16.gmra.mrb[0].mxu0 %v318
      %v444 = vpop.f32.mrb[0].mxu0
      %v445 = vadd.f32 0.0, %v444
      %v446 = vpop.f32.mrb[0].mxu0
      %v447 = vpop.f32.mrb[0].mxu0
      %v448 = vadd.f32 0.0, %v447
      %v449 = vpop.f32.mrb[0].mxu0
      %450 = vmatprep.mubr.bf16.mxu0 0
      %451 = vmatmul.mubr.bf16.gmra.mrb[0].mxu0 %v319
      %v452 = vpop.f32.mrb[0].mxu0
      %v453 = vadd.f32 0.0, %v452
      %v454 = vpop.f32.mrb[0].mxu0
      %v455 = vpop.f32.mrb[0].mxu0
      %v456 = vadd.f32 0.0, %v455
      %v457 = vpop.f32.mrb[0].mxu0
      %458 = vmatprep.mubr.bf16.mxu0 0
      %459 = vmatmul.mubr.bf16.gmra.mrb[0].mxu0 %v320
      %v460 = vpop.f32.mrb[0].mxu0
      %v461 = vadd.f32 0.0, %v460
      %v462 = vpop.f32.mrb[0].mxu0
      %v463 = vpop.f32.mrb[0].mxu0
      %v464 = vadd.f32 0.0, %v463
      %v465 = vpop.f32.mrb[0].mxu0
      %466 = vmatprep.mubr.bf16.mxu0 0
      %467 = vmatmul.mubr.bf16.gmra.mrb[0].mxu0 %v321
      %v468 = vpop.f32.mrb[0].mxu0
      %v469 = vadd.f32 0.0, %v468
      %v470 = vpop.f32.mrb[0].mxu0
      %v471 = vpop.f32.mrb[0].mxu0
      %v472 = vadd.f32 0.0, %v471
      %v473 = vpop.f32.mrb[0].mxu0
      %474 = vdwg.mxu0
      %v475 = vpack.c.bf16 %v416, %v413
      %v476 = vpack.c.bf16 %v424, %v421
      %v477 = vpack.c.bf16 %v432, %v429
      %v478 = vpack.c.bf16 %v440, %v437
      %v479 = vpack.c.bf16 %v448, %v445
      %v480 = vpack.c.bf16 %v456, %v453
      %v481 = vpack.c.bf16 %v464, %v461
      %v482 = vpack.c.bf16 %v472, %v469
      %v491 = vunpack.c.l.b16 %v475
      %v492 = vunpack.c.h.b16 %v475
      %v493 = vunpack.c.l.b16 %v476
      %v494 = vunpack.c.h.b16 %v476
      %v495 = vunpack.c.l.b16 %v477
      %v496 = vunpack.c.h.b16 %v477
      %v497 = vunpack.c.l.b16 %v478
      %v498 = vunpack.c.h.b16 %v478
      %v499 = vunpack.c.l.b16 %v479
      %v500 = vunpack.c.h.b16 %v479
      %v501 = vunpack.c.l.b16 %v480
      %v502 = vunpack.c.h.b16 %v480
      %v503 = vunpack.c.l.b16 %v481
      %v504 = vunpack.c.h.b16 %v481
      %v505 = vunpack.c.l.b16 %v482
      %v506 = vunpack.c.h.b16 %v482
      %v507 = vpack.c.b16 %v491, %v491
      %v508 = vpack.c.b16 %v492, %v492
      %v509 = vpack.c.b16 %v493, %v493
      %v510 = vpack.c.b16 %v494, %v494
      %v511 = vpack.c.b16 %v495, %v495
      %v512 = vpack.c.b16 %v496, %v496
      %v513 = vpack.c.b16 %v497, %v497
      %v514 = vpack.c.b16 %v498, %v498
      %v515 = vpack.c.b16 %v499, %v499
      %v516 = vpack.c.b16 %v500, %v500
      %v517 = vpack.c.b16 %v501, %v501
      %v518 = vpack.c.b16 %v502, %v502
      %v519 = vpack.c.b16 %v503, %v503
      %v520 = vpack.c.b16 %v504, %v504
      %v521 = vpack.c.b16 %v505, %v505
      %v522 = vpack.c.b16 %v506, %v506
      %539 = vst [vmem:[%s240] sm:$0xf] %v507
      %540 = vst [vmem:[%s240 + $0x4] sm:$0xf] %v508
      %541 = vst [vmem:[%s240 + $0x8] sm:$0xf] %v509
      %542 = vst [vmem:[%s240 + $0xc] sm:$0xf] %v510
      %543 = vst [vmem:[%s240 + $0x10] sm:$0xf] %v511
      %544 = vst [vmem:[%s240 + $0x14] sm:$0xf] %v512
      %545 = vst [vmem:[%s240 + $0x18] sm:$0xf] %v513
      %546 = vst [vmem:[%s240 + $0x1c] sm:$0xf] %v514
      %547 = vst [vmem:[%s240 + $0x20] sm:$0xf] %v515
      %548 = vst [vmem:[%s240 + $0x24] sm:$0xf] %v516
      %549 = vst [vmem:[%s240 + $0x28] sm:$0xf] %v517
      %550 = vst [vmem:[%s240 + $0x2c] sm:$0xf] %v518
      %551 = vst [vmem:[%s240 + $0x30] sm:$0xf] %v519
      %552 = vst [vmem:[%s240 + $0x34] sm:$0xf] %v520
      %553 = vst [vmem:[%s240 + $0x38] sm:$0xf] %v521
      %554 = vst [vmem:[%s240 + $0x3c] sm:$0xf] %v522
      %v555 = vadd.f32 %v413, %v416
      %v556 = vadd.f32 %v555, %v421
      %v557 = vadd.f32 %v556, %v424
      %v558 = vadd.f32 %v557, %v429
      %v559 = vadd.f32 %v558, %v432
      %v560 = vadd.f32 %v559, %v437
      %v561 = vadd.f32 %v560, %v440
      %v562 = vadd.f32 %v561, %v445
      %v563 = vadd.f32 %v562, %v448
      %v564 = vadd.f32 %v563, %v453
      %v565 = vadd.f32 %v564, %v456
      %v566 = vadd.f32 %v565, %v461
      %v567 = vadd.f32 %v566, %v464
      %v568 = vadd.f32 %v567, %v469
      %v569 = vadd.f32 %v568, %v472
      %v570 = vrot.slane %v569, 4
      %v571 = vadd.f32 %v569, %v570
      %v572 = vrot.slane %v571, 2
      %v573 = vadd.f32 %v571, %v572
      %v574 = vrot.slane %v573, 1
      %v575 = vadd.f32 %v573, %v574
      %576 = vst [vmem:[%s248] sm:$0x1] %v575
      %v577 = vmul.f32 %v413, %v413
      %v578 = vmul.f32 %v416, %v416
      %v579 = vmul.f32 %v421, %v421
      %v580 = vmul.f32 %v424, %v424
      %v581 = vmul.f32 %v429, %v429
      %v582 = vmul.f32 %v432, %v432
      %v583 = vmul.f32 %v437, %v437
      %v584 = vmul.f32 %v440, %v440
      %v585 = vmul.f32 %v445, %v445
      %v586 = vmul.f32 %v448, %v448
      %v587 = vmul.f32 %v453, %v453
      %v588 = vmul.f32 %v456, %v456
      %v589 = vmul.f32 %v461, %v461
      %v590 = vmul.f32 %v464, %v464
      %v591 = vmul.f32 %v469, %v469
      %v592 = vmul.f32 %v472, %v472
      %v593 = vadd.f32 %v577, %v578
      %v594 = vadd.f32 %v593, %v579
      %v595 = vadd.f32 %v594, %v580
      %v596 = vadd.f32 %v595, %v581
      %v597 = vadd.f32 %v596, %v582
      %v598 = vadd.f32 %v597, %v583
      %v599 = vadd.f32 %v598, %v584
      %v600 = vadd.f32 %v599, %v585
      %v601 = vadd.f32 %v600, %v586
      %v602 = vadd.f32 %v601, %v587
      %v603 = vadd.f32 %v602, %v588
      %v604 = vadd.f32 %v603, %v589
      %v605 = vadd.f32 %v604, %v590
      %v606 = vadd.f32 %v605, %v591
      %v607 = vadd.f32 %v606, %v592
      %v608 = vrot.slane %v607, 4
      %v609 = vadd.f32 %v607, %v608
      %v610 = vrot.slane %v609, 2
      %v611 = vadd.f32 %v609, %v610
      %v612 = vrot.slane %v611, 1
      %v613 = vadd.f32 %v611, %v612
      %614 = vst [vmem:[%s248 + $0x1] sm:$0x1] %v613
      %s615 = smul.u32 16, %s20
      %p616 = scmp.lt.s32.totalorder %s19, 3
      %s617 = scalar_select %p616, %s19, 3
      %p618 = scmp.lt.s32.totalorder %s615, 15
      %s619 = scalar_select %p618, %s615, 15
      %s620 = smul.addr %s617, 16
      %s621 = sadd.s32 %s619, %s620
      %s622 = smul.addr %s621, 4
      %s623 = scalar_lea.vmem %s2, %s622
      %p624 = scmp.lt.s32.totalorder %s19, 3
      %s625 = scalar_select %p624, %s19, 3
      %p626 = scmp.lt.s32.totalorder %s20, 0
      %s627 = scalar_select %p626, %s20, 0
      %s628 = sadd.s32 %s627, %s625
      %s629 = smul.addr %s628, 2
      %s630 = scalar_lea.vmem %s3, %s629
      // Predicated region
      $region29: #{_lambda_.7} parent=27 // pred_check
        %p631 = pneg %p101
      $region30: #{_lambda_.7} parent=27 // pred_check_branch
        %633 = sbr.rel (%p631) target = $region32
      $region31: #{_lambda_.7} parent=27 // pred_region
        %s634 = smul.u32 16, %s20
      $region32: #{_lambda_.7} parent=27 // pred_fallthru
        _
      // Predicated region
      $region33: #{_lambda_.7} parent=27 // pred_check
        %p635 = pneg %p129
      $region34: #{_lambda_.7} parent=27 // pred_check_branch
        %637 = sbr.rel (%p635) target = $region36
      $region35: #{_lambda_.7} parent=27 // pred_region
        _
      $region36: #{_lambda_.7} parent=27 // pred_fallthru
        _
    $region28: #{_lambda_.7} parent=5 // pred_fallthru
      _
    %p638 = scmp.le.s32.totalorder 2, %s10
    // Predicated region
    $region37: #{_lambda_.7} parent=5 // pred_check
      %p639 = pneg %p638
    $region38: #{_lambda_.7} parent=5 // pred_check_branch
      %641 = sbr.rel (%p639) target = $region40
    $region39: #{_lambda_.7} parent=5 // pred_region
      %s642 = ssub.s32 %s10, 2
      // Predicated region
      $region41: #{_lambda_.7} parent=39 // pred_check
        %p643 = pneg %p107
      $region42: #{_lambda_.7} parent=39 // pred_check_branch
        %645 = sbr.rel (%p643) target = $region44
      $region43: #{_lambda_.7} parent=39 // pred_region
        %s646 = smul.u32 16, %s22
        %p647 = scmp.lt.s32.totalorder %s21, 3
        %s648 = scalar_select %p647, %s21, 3
        %p649 = scmp.lt.s32.totalorder %s646, 15
        %s650 = scalar_select %p649, %s646, 15
        %s651 = smul.addr %s648, 16
        %s652 = sadd.s32 %s650, %s651
        %s653 = smul.addr %s652, 4
        %s654 = scalar_lea.vmem %s2, %s653
      $region44: #{_lambda_.7} parent=39 // pred_fallthru
        _
      // Predicated region
      $region45: #{_lambda_.7} parent=39 // pred_check
        %p655 = pneg %p135
      $region46: #{_lambda_.7} parent=39 // pred_check_branch
        %657 = sbr.rel (%p655) target = $region48
      $region47: #{_lambda_.7} parent=39 // pred_region
        %p658 = scmp.lt.s32.totalorder %s21, 3
        %s659 = scalar_select %p658, %s21, 3
        %p660 = scmp.lt.s32.totalorder %s22, 0
        %s661 = scalar_select %p660, %s22, 0
        %s662 = sadd.s32 %s661, %s659
        %s663 = smul.addr %s662, 2
        %s664 = scalar_lea.vmem %s3, %s663
      $region48: #{_lambda_.7} parent=39 // pred_fallthru
        _
    $region40: #{_lambda_.7} parent=5 // pred_fallthru
      _
  $region6: #{_lambda_.7} parent=0 // loop_footer
    %s14 = sadd.s32 1, %s10
  $region7: #{_lambda_.7} parent=0 // loop_footer_branch
    %9 = sbr.rel target = $region3
  $region8: #{_lambda_.7} parent=0 // loop_exit
    _

// kernel: _lambda_.8
$region0: #{_lambda_.8}
  #allocation0 [shape = 'u32[]', space=smem, size = 0x4, offset = 0x4, fixed_abs, tag = 'smem constant byte address 0x4 - core index']
  #allocation1 [shape = 'u32[144,128]{1,0:T(1,128)}', space=vmem, size = 0x12000, scoped, tag = 'internal scratch']
  %s0 = inlined_call_operand.vmem [shape: bf16[4,512,64], index: 0, kind: input, shape index: {}]
  %s1 = inlined_call_operand.vmem [shape: bf16[4,64,128], index: 1, kind: input, shape index: {}]
  %s2 = inlined_call_operand.vmem [shape: bf16[4,512,128], index: 2, kind: output, shape index: {0}]
  %s3 = inlined_call_operand.vmem [shape: f32[4,1,2,128], index: 3, kind: output, shape index: {1}]
  %4 = xla_tuple %s2, %s3
  %s5 = sld [smem:[#allocation0]]
  $region49: #{_lambda_.8} parent=0
    _
  %s7 = ssub.s32 1, %s5
  %s8 = scalar_select 0, %s7, %s5
  loop: start=0, step=1, limit=6
  $region2: #{_lambda_.8} parent=0 // loop_pre_header
    _
  $region3: #{_lambda_.8} parent=0 // loop_header
    %s10 = sphi 0, %s14
    %p11 = scmp.ge.s32.totalorder %s10, 6
    %s17 = sphi 0, %s29
    %s18 = sphi 0, %s25
    %s19 = sphi 0, %s17
    %s20 = sphi 0, %s18
    %s21 = sphi 0, %s19
    %s22 = sphi 0, %s20
    %s34 = sphi 0, %s36
    %s37 = sphi 0, %s34
    %s38 = sphi 0, %s37
    %s54 = sphi 0, %s38
    %s60 = sphi 0, %s62
    %s63 = sphi 0, %s60
    %s64 = sphi 0, %s63
    %s80 = sphi 0, %s64
    %s88 = sphi 0, %s90
    %s91 = sphi 0, %s88
    %s92 = sphi 0, %s91
    %s108 = sphi 0, %s92
    %s116 = sphi 0, %s118
    %s119 = sphi 0, %s116
    %s120 = sphi 0, %s119
    %s136 = sphi 0, %s120
  $region4: #{_lambda_.8} parent=0 // loop_header_branch
    %13 = sbr.rel (%p11) target = $region8
  $region5: #{_lambda_.8} parent=0 // loop_body
    %s15 = ssub.s32 %s10, 1
    %s16 = ssub.s32 %s10, 2
    %s23 = sadd.s32 1, %s18
    %p24 = scmp.ge.s32.totalorder %s23, 1
    %s25 = scalar_select %p24, 0, %s23
    %s26 = sadd.s32 1, %s17
    %s27 = scalar_select %p24, %s26, %s17
    %p28 = scmp.ge.s32.totalorder %s27, 4
    %s29 = scalar_select %p28, 0, %s27
    %s30 = ssub.s32 %s17, %s29
    %s31 = ssub.s32 %s18, %s25
    %s32 = sor.u32 %s30, %s31
    %p33 = scmp.eq.s32.totalorder %s32, 0
    %s35 = sadd.s32 %s34, 1
    %s36 = scalar_select %p33, %s34, %s35
    %p39 = pneg %p33
    %p40 = scmp.eq.s32.totalorder %s10, 3
    %p41 = por %p39, %p40
    %p42 = scmp.ne.s32.totalorder %s34, %s37
    %p43 = scmp.eq.s32.totalorder %s10, 0
    %p44 = por %p42, %p43
    %p45 = scmp.ne.s32.totalorder %s34, %s37
    %p46 = scmp.eq.s32.totalorder %s15, 3
    %p47 = por %p45, %p46
    %p48 = scmp.ne.s32.totalorder %s37, %s38
    %p49 = scmp.eq.s32.totalorder %s15, 0
    %p50 = por %p48, %p49
    %p51 = scmp.ne.s32.totalorder %s37, %s38
    %p52 = scmp.eq.s32.totalorder %s16, 3
    %p53 = por %p51, %p52
    %p55 = scmp.ne.s32.totalorder %s38, %s54
    %p56 = scmp.eq.s32.totalorder %s16, 0
    %p57 = por %p55, %p56
    %s58 = ssub.s32 %s17, %s29
    %p59 = scmp.eq.s32.totalorder %s58, 0
    %s61 = sadd.s32 %s60, 1
    %s62 = scalar_select %p59, %s60, %s61
    %p65 = pneg %p59
    %p66 = scmp.eq.s32.totalorder %s10, 3
    %p67 = por %p65, %p66
    %p68 = scmp.ne.s32.totalorder %s60, %s63
    %p69 = scmp.eq.s32.totalorder %s10, 0
    %p70 = por %p68, %p69
    %p71 = scmp.ne.s32.totalorder %s60, %s63
    %p72 = scmp.eq.s32.totalorder %s15, 3
    %p73 = por %p71, %p72
    %p74 = scmp.ne.s32.totalorder %s63, %s64
    %p75 = scmp.eq.s32.totalorder %s15, 0
    %p76 = por %p74, %p75
    %p77 = scmp.ne.s32.totalorder %s63, %s64
    %p78 = scmp.eq.s32.totalorder %s16, 3
    %p79 = por %p77, %p78
    %p81 = scmp.ne.s32.totalorder %s64, %s80
    %p82 = scmp.eq.s32.totalorder %s16, 0
    %p83 = por %p81, %p82
    %s84 = ssub.s32 %s17, %s29
    %s85 = ssub.s32 %s18, %s25
    %s86 = sor.u32 %s84, %s85
    %p87 = scmp.eq.s32.totalorder %s86, 0
    %s89 = sadd.s32 %s88, 1
    %s90 = scalar_select %p87, %s88, %s89
    %p93 = pneg %p87
    %p94 = scmp.eq.s32.totalorder %s10, 3
    %p95 = por %p93, %p94
    %p96 = scmp.ne.s32.totalorder %s88, %s91
    %p97 = scmp.eq.s32.totalorder %s10, 0
    %p98 = por %p96, %p97
    %p99 = scmp.ne.s32.totalorder %s88, %s91
    %p100 = scmp.eq.s32.totalorder %s15, 3
    %p101 = por %p99, %p100
    %p102 = scmp.ne.s32.totalorder %s91, %s92
    %p103 = scmp.eq.s32.totalorder %s15, 0
    %p104 = por %p102, %p103
    %p105 = scmp.ne.s32.totalorder %s91, %s92
    %p106 = scmp.eq.s32.totalorder %s16, 3
    %p107 = por %p105, %p106
    %p109 = scmp.ne.s32.totalorder %s92, %s108
    %p110 = scmp.eq.s32.totalorder %s16, 0
    %p111 = por %p109, %p110
    %s112 = ssub.s32 %s17, %s29
    %s113 = ssub.s32 %s18, %s25
    %s114 = sor.u32 %s112, %s113
    %p115 = scmp.eq.s32.totalorder %s114, 0
    %s117 = sadd.s32 %s116, 1
    %s118 = scalar_select %p115, %s116, %s117
    %p121 = pneg %p115
    %p122 = scmp.eq.s32.totalorder %s10, 3
    %p123 = por %p121, %p122
    %p124 = scmp.ne.s32.totalorder %s116, %s119
    %p125 = scmp.eq.s32.totalorder %s10, 0
    %p126 = por %p124, %p125
    %p127 = scmp.ne.s32.totalorder %s116, %s119
    %p128 = scmp.eq.s32.totalorder %s15, 3
    %p129 = por %p127, %p128
    %p130 = scmp.ne.s32.totalorder %s119, %s120
    %p131 = scmp.eq.s32.totalorder %s15, 0
    %p132 = por %p130, %p131
    %p133 = scmp.ne.s32.totalorder %s119, %s120
    %p134 = scmp.eq.s32.totalorder %s16, 3
    %p135 = por %p133, %p134
    %p137 = scmp.ne.s32.totalorder %s120, %s136
    %p138 = scmp.eq.s32.totalorder %s16, 0
    %p139 = por %p137, %p138
    %p140 = scmp.le.s32.totalorder 1, %s10
    %p141 = scmp.lt.s32.totalorder %s10, 5
    %p142 = pnand %p140, %p141
    %p143 = pneg %p142
    // Predicated region
    $region9: #{_lambda_.8} parent=5 // pred_check
      _
    $region10: #{_lambda_.8} parent=5 // pred_check_branch
      %145 = sbr.rel (%p142) target = $region12
    $region11: #{_lambda_.8} parent=5 // pred_region
      %s146 = ssub.s32 %s10, 1
    $region12: #{_lambda_.8} parent=5 // pred_fallthru
      _
    %p147 = scmp.lt.s32.totalorder %s10, 4
    // Predicated region
    $region13: #{_lambda_.8} parent=5 // pred_check
      %p148 = pneg %p147
    $region14: #{_lambda_.8} parent=5 // pred_check_branch
      %150 = sbr.rel (%p148) target = $region16
    $region15: #{_lambda_.8} parent=5 // pred_region
      // Predicated region
      $region17: #{_lambda_.8} parent=15 // pred_check
        %p151 = pneg %p44
      $region18: #{_lambda_.8} parent=15 // pred_check_branch
        %153 = sbr.rel (%p151) target = $region20
      $region19: #{_lambda_.8} parent=15 // pred_region
        %s154 = smul.u32 64, %s18
        %p155 = scmp.lt.s32.totalorder %s17, 3
        %s156 = scalar_select %p155, %s17, 3
        %p157 = scmp.lt.s32.totalorder %s154, 63
        %s158 = scalar_select %p157, %s154, 63
        %s159 = smul.addr %s156, 64
        %s160 = sadd.s32 %s158, %s159
        %s161 = smul.addr %s160, 4
        %s162 = scalar_lea.vmem %s0, %s161
        %s163 = smul.u32 64, %s18
      $region20: #{_lambda_.8} parent=15 // pred_fallthru
        _
      // Predicated region
      $region21: #{_lambda_.8} parent=15 // pred_check
        %p164 = pneg %p70
      $region22: #{_lambda_.8} parent=15 // pred_check_branch
        %166 = sbr.rel (%p164) target = $region24
      $region23: #{_lambda_.8} parent=15 // pred_region
        %p167 = scmp.lt.s32.totalorder %s17, 3
        %s168 = scalar_select %p167, %s17, 3
        %s169 = smul.addr %s168, 8
        %s170 = smul.addr %s169, 4
        %s171 = scalar_lea.vmem %s1, %s170
      $region24: #{_lambda_.8} parent=15 // pred_fallthru
        _
    $region16: #{_lambda_.8} parent=5 // pred_fallthru
      _
    %p172 = scmp.le.s32.totalorder 1, %s10
    %p173 = scmp.lt.s32.totalorder %s10, 5
    %p174 = pnand %p172, %p173
    %p175 = pneg %p174
    // Predicated region
    $region25: #{_lambda_.8} parent=5 // pred_check
      _
    $region26: #{_lambda_.8} parent=5 // pred_check_branch
      %177 = sbr.rel (%p174) target = $region28
    $region27: #{_lambda_.8} parent=5 // pred_region
      %s178 = ssub.s32 %s10, 1
      %s179 = smul.u32 64, %s20
      %p180 = scmp.lt.s32.totalorder %s19, 3
      %s181 = scalar_select %p180, %s19, 3
      %p182 = scmp.lt.s32.totalorder %s179, 63
      %s183 = scalar_select %p182, %s179, 63
      %s184 = smul.addr %s181, 64
      %s185 = sadd.s32 %s183, %s184
      %s186 = smul.addr %s185, 4
      %s187 = scalar_lea.vmem %s0, %s186
      %p188 = pneg %p50
      %p189 = pneg %p47
      %p190 = scmp.lt.s32.totalorder %s19, 3
      %s191 = scalar_select %p190, %s19, 3
      %s192 = smul.addr %s191, 8
      %s193 = smul.addr %s192, 4
      %s194 = scalar_lea.vmem %s1, %s193
      %p195 = pneg %p76
      %p196 = pneg %p73
      %p197 = pneg %p104
      %p198 = pneg %p101
      %s199 = smul.u32 64, %s20
      %p200 = scmp.lt.s32.totalorder %s19, 3
      %s201 = scalar_select %p200, %s19, 3
      %p202 = scmp.lt.s32.totalorder %s199, 63
      %s203 = scalar_select %p202, %s199, 63
      %s204 = smul.addr %s201, 64
      %s205 = sadd.s32 %s203, %s204
      %s206 = smul.addr %s205, 4
      %s207 = scalar_lea.vmem %s2, %s206
      %p208 = pneg %p132
      %p209 = pneg %p129
      %p210 = scmp.lt.s32.totalorder %s19, 3
      %s211 = scalar_select %p210, %s19, 3
      %p212 = scmp.lt.s32.totalorder %s20, 0
      %s213 = scalar_select %p212, %s20, 0
      %s214 = sadd.s32 %s213, %s211
      %s215 = smul.addr %s214, 2
      %s216 = scalar_lea.vmem %s3, %s215
      %s217 = smul.u32 64, %s20
      %p218 = scmp.lt.s32.totalorder %s19, 3
      %s219 = scalar_select %p218, %s19, 3
      %p220 = scmp.lt.s32.totalorder %s217, 63
      %s221 = scalar_select %p220, %s217, 63
      %s222 = smul.addr %s219, 64
      %s223 = sadd.s32 %s221, %s222
      %s224 = smul.addr %s223, 4
      %s225 = scalar_lea.vmem %s0, %s224
      %s226 = smul.u32 64, %s20
      %p227 = scmp.lt.s32.totalorder %s19, 3
      %s228 = scalar_select %p227, %s19, 3
      %s229 = smul.addr %s228, 8
      %s230 = smul.addr %s229, 4
      %s231 = scalar_lea.vmem %s1, %s230
      %s232 = smul.u32 64, %s20
      %p233 = scmp.lt.s32.totalorder %s19, 3
      %s234 = scalar_select %p233, %s19, 3
      %p235 = scmp.lt.s32.totalorder %s232, 63
      %s236 = scalar_select %p235, %s232, 63
      %s237 = smul.addr %s234, 64
      %s238 = sadd.s32 %s236, %s237
      %s239 = smul.addr %s238, 4
      %s240 = scalar_lea.vmem %s2, %s239
      %s241 = smul.u32 64, %s20
      %p242 = scmp.lt.s32.totalorder %s19, 3
      %s243 = scalar_select %p242, %s19, 3
      %p244 = scmp.lt.s32.totalorder %s20, 0
      %s245 = scalar_select %p244, %s20, 0
      %s246 = sadd.s32 %s245, %s243
      %s247 = smul.addr %s246, 2
      %s248 = scalar_lea.vmem %s3, %s247
      %v250 = vld [vmem:[%s225] sm:$0xf]
      %v251 = vld [vmem:[%s225 + $0x4] sm:$0xf]
      %v252 = vld [vmem:[%s225 + $0x8] sm:$0xf]
      %v253 = vld [vmem:[%s225 + $0xc] sm:$0xf]
      %v254 = vld [vmem:[%s225 + $0x10] sm:$0xf]
      %v255 = vld [vmem:[%s225 + $0x14] sm:$0xf]
      %v256 = vld [vmem:[%s225 + $0x18] sm:$0xf]
      %v257 = vld [vmem:[%s225 + $0x1c] sm:$0xf]
      %v258 = vld [vmem:[%s225 + $0x20] sm:$0xf]
      %v259 = vld [vmem:[%s225 + $0x24] sm:$0xf]
      %v260 = vld [vmem:[%s225 + $0x28] sm:$0xf]
      %v261 = vld [vmem:[%s225 + $0x2c] sm:$0xf]
      %v262 = vld [vmem:[%s225 + $0x30] sm:$0xf]
      %v263 = vld [vmem:[%s225 + $0x34] sm:$0xf]
      %v264 = vld [vmem:[%s225 + $0x38] sm:$0xf]
      %v265 = vld [vmem:[%s225 + $0x3c] sm:$0xf]
      %v266 = vld [vmem:[%s225 + $0x40] sm:$0xf]
      %v267 = vld [vmem:[%s225 + $0x44] sm:$0xf]
      %v268 = vld [vmem:[%s225 + $0x48] sm:$0xf]
      %v269 = vld [vmem:[%s225 + $0x4c] sm:$0xf]
      %v270 = vld [vmem:[%s225 + $0x50] sm:$0xf]
      %v271 = vld [vmem:[%s225 + $0x54] sm:$0xf]
      %v272 = vld [vmem:[%s225 + $0x58] sm:$0xf]
      %v273 = vld [vmem:[%s225 + $0x5c] sm:$0xf]
      %v274 = vld [vmem:[%s225 + $0x60] sm:$0xf]
      %v275 = vld [vmem:[%s225 + $0x64] sm:$0xf]
      %v276 = vld [vmem:[%s225 + $0x68] sm:$0xf]
      %v277 = vld [vmem:[%s225 + $0x6c] sm:$0xf]
      %v278 = vld [vmem:[%s225 + $0x70] sm:$0xf]
      %v279 = vld [vmem:[%s225 + $0x74] sm:$0xf]
      %v280 = vld [vmem:[%s225 + $0x78] sm:$0xf]
      %v281 = vld [vmem:[%s225 + $0x7c] sm:$0xf]
      %v282 = vld [vmem:[%s225 + $0x80] sm:$0xf]
      %v283 = vld [vmem:[%s225 + $0x84] sm:$0xf]
      %v284 = vld [vmem:[%s225 + $0x88] sm:$0xf]
      %v285 = vld [vmem:[%s225 + $0x8c] sm:$0xf]
      %v286 = vld [vmem:[%s225 + $0x90] sm:$0xf]
      %v287 = vld [vmem:[%s225 + $0x94] sm:$0xf]
      %v288 = vld [vmem:[%s225 + $0x98] sm:$0xf]
      %v289 = vld [vmem:[%s225 + $0x9c] sm:$0xf]
      %v290 = vld [vmem:[%s225 + $0xa0] sm:$0xf]
      %v291 = vld [vmem:[%s225 + $0xa4] sm:$0xf]
      %v292 = vld [vmem:[%s225 + $0xa8] sm:$0xf]
      %v293 = vld [vmem:[%s225 + $0xac] sm:$0xf]
      %v294 = vld [vmem:[%s225 + $0xb0] sm:$0xf]
      %v295 = vld [vmem:[%s225 + $0xb4] sm:$0xf]
      %v296 = vld [vmem:[%s225 + $0xb8] sm:$0xf]
      %v297 = vld [vmem:[%s225 + $0xbc] sm:$0xf]
      %v298 = vld [vmem:[%s225 + $0xc0] sm:$0xf]
      %v299 = vld [vmem:[%s225 + $0xc4] sm:$0xf]
      %v300 = vld [vmem:[%s225 + $0xc8] sm:$0xf]
      %v301 = vld [vmem:[%s225 + $0xcc] sm:$0xf]
      %v302 = vld [vmem:[%s225 + $0xd0] sm:$0xf]
      %v303 = vld [vmem:[%s225 + $0xd4] sm:$0xf]
      %v304 = vld [vmem:[%s225 + $0xd8] sm:$0xf]
      %v305 = vld [vmem:[%s225 + $0xdc] sm:$0xf]
      %v306 = vld [vmem:[%s225 + $0xe0] sm:$0xf]
      %v307 = vld [vmem:[%s225 + $0xe4] sm:$0xf]
      %v308 = vld [vmem:[%s225 + $0xe8] sm:$0xf]
      %v309 = vld [vmem:[%s225 + $0xec] sm:$0xf]
      %v310 = vld [vmem:[%s225 + $0xf0] sm:$0xf]
      %v311 = vld [vmem:[%s225 + $0xf4] sm:$0xf]
      %v312 = vld [vmem:[%s225 + $0xf8] sm:$0xf]
      %v313 = vld [vmem:[%s225 + $0xfc] sm:$0xf]
      %v314 = vld [vmem:[%s231] sm:$0xf]
      %v315 = vld [vmem:[%s231 + $0x4] sm:$0xf]
      %v316 = vld [vmem:[%s231 + $0x8] sm:$0xf]
      %v317 = vld [vmem:[%s231 + $0xc] sm:$0xf]
      %v318 = vld [vmem:[%s231 + $0x10] sm:$0xf]
      %v319 = vld [vmem:[%s231 + $0x14] sm:$0xf]
      %v320 = vld [vmem:[%s231 + $0x18] sm:$0xf]
      %v321 = vld [vmem:[%s231 + $0x1c] sm:$0xf]
      %v386 = vunpack.c.l.b16 %v250
      %v387 = vunpack.c.l.b16 %v251
      %v388 = vunpack.c.l.b16 %v252
      %v389 = vunpack.c.l.b16 %v253
      %v390 = vunpack.c.l.b16 %v254
      %v391 = vunpack.c.l.b16 %v255
      %v392 = vunpack.c.l.b16 %v256
      %v393 = vunpack.c.l.b16 %v257
      %v394 = vunpack.c.l.b16 %v258
      %v395 = vunpack.c.l.b16 %v259
      %v396 = vunpack.c.l.b16 %v260
      %v397 = vunpack.c.l.b16 %v261
      %v398 = vunpack.c.l.b16 %v262
      %v399 = vunpack.c.l.b16 %v263
      %v400 = vunpack.c.l.b16 %v264
      %v401 = vunpack.c.l.b16 %v265
      %v402 = vunpack.c.l.b16 %v266
      %v403 = vunpack.c.l.b16 %v267
      %v404 = vunpack.c.l.b16 %v268
      %v405 = vunpack.c.l.b16 %v269
      %v406 = vunpack.c.l.b16 %v270
      %v407 = vunpack.c.l.b16 %v271
      %v408 = vunpack.c.l.b16 %v272
      %v409 = vunpack.c.l.b16 %v273
      %v410 = vunpack.c.l.b16 %v274
      %v411 = vunpack.c.l.b16 %v275
      %v412 = vunpack.c.l.b16 %v276
      %v413 = vunpack.c.l.b16 %v277
      %v414 = vunpack.c.l.b16 %v278
      %v415 = vunpack.c.l.b16 %v279
      %v416 = vunpack.c.l.b16 %v280
      %v417 = vunpack.c.l.b16 %v281
      %v418 = vunpack.c.l.b16 %v282
      %v419 = vunpack.c.l.b16 %v283
      %v420 = vunpack.c.l.b16 %v284
      %v421 = vunpack.c.l.b16 %v285
      %v422 = vunpack.c.l.b16 %v286
      %v423 = vunpack.c.l.b16 %v287
      %v424 = vunpack.c.l.b16 %v288
      %v425 = vunpack.c.l.b16 %v289
      %v426 = vunpack.c.l.b16 %v290
      %v427 = vunpack.c.l.b16 %v291
      %v428 = vunpack.c.l.b16 %v292
      %v429 = vunpack.c.l.b16 %v293
      %v430 = vunpack.c.l.b16 %v294
      %v431 = vunpack.c.l.b16 %v295
      %v432 = vunpack.c.l.b16 %v296
      %v433 = vunpack.c.l.b16 %v297
      %v434 = vunpack.c.l.b16 %v298
      %v435 = vunpack.c.l.b16 %v299
      %v436 = vunpack.c.l.b16 %v300
      %v437 = vunpack.c.l.b16 %v301
      %v438 = vunpack.c.l.b16 %v302
      %v439 = vunpack.c.l.b16 %v303
      %v440 = vunpack.c.l.b16 %v304
      %v441 = vunpack.c.l.b16 %v305
      %v442 = vunpack.c.l.b16 %v306
      %v443 = vunpack.c.l.b16 %v307
      %v444 = vunpack.c.l.b16 %v308
      %v445 = vunpack.c.l.b16 %v309
      %v446 = vunpack.c.l.b16 %v310
      %v447 = vunpack.c.l.b16 %v311
      %v448 = vunpack.c.l.b16 %v312
      %v449 = vunpack.c.l.b16 %v313
      %v450 = vpack.c.b16 %v387, %v386
      %v451 = vpack.c.b16 %v389, %v388
      %v452 = vpack.c.b16 %v391, %v390
      %v453 = vpack.c.b16 %v393, %v392
      %v454 = vpack.c.b16 %v395, %v394
      %v455 = vpack.c.b16 %v397, %v396
      %v456 = vpack.c.b16 %v399, %v398
      %v457 = vpack.c.b16 %v401, %v400
      %v458 = vpack.c.b16 %v403, %v402
      %v459 = vpack.c.b16 %v405, %v404
      %v460 = vpack.c.b16 %v407, %v406
      %v461 = vpack.c.b16 %v409, %v408
      %v462 = vpack.c.b16 %v411, %v410
      %v463 = vpack.c.b16 %v413, %v412
      %v464 = vpack.c.b16 %v415, %v414
      %v465 = vpack.c.b16 %v417, %v416
      %v466 = vpack.c.b16 %v419, %v418
      %v467 = vpack.c.b16 %v421, %v420
      %v468 = vpack.c.b16 %v423, %v422
      %v469 = vpack.c.b16 %v425, %v424
      %v470 = vpack.c.b16 %v427, %v426
      %v471 = vpack.c.b16 %v429, %v428
      %v472 = vpack.c.b16 %v431, %v430
      %v473 = vpack.c.b16 %v433, %v432
      %v474 = vpack.c.b16 %v435, %v434
      %v475 = vpack.c.b16 %v437, %v436
      %v476 = vpack.c.b16 %v439, %v438
      %v477 = vpack.c.b16 %v441, %v440
      %v478 = vpack.c.b16 %v443, %v442
      %v479 = vpack.c.b16 %v445, %v444
      %v480 = vpack.c.b16 %v447, %v446
      %v481 = vpack.c.b16 %v449, %v448
      %v490 = vunpack.c.l.b16 %v314
      %v491 = vunpack.c.l.b16 %v315
      %v492 = vunpack.c.l.b16 %v316
      %v493 = vunpack.c.l.b16 %v317
      %v494 = vunpack.c.l.b16 %v318
      %v495 = vunpack.c.l.b16 %v319
      %v496 = vunpack.c.l.b16 %v320
      %v497 = vunpack.c.l.b16 %v321
      %v498 = vpack.c.b16 %v491, %v490
      %v499 = vpack.c.b16 %v493, %v492
      %v500 = vpack.c.b16 %v495, %v494
      %v501 = vpack.c.b16 %v497, %v496
      %vm506 = vcmask 523264
      %v508 = vsel %vm506, %v450, 0
      %v511 = vsel %vm506, %v451, 0
      %v514 = vsel %vm506, %v452, 0
      %v517 = vsel %vm506, %v453, 0
      %v520 = vsel %vm506, %v454, 0
      %v523 = vsel %vm506, %v455, 0
      %v526 = vsel %vm506, %v456, 0
      %v529 = vsel %vm506, %v457, 0
      %v532 = vsel %vm506, %v458, 0
      %v535 = vsel %vm506, %v459, 0
      %v538 = vsel %vm506, %v460, 0
      %v541 = vsel %vm506, %v461, 0
      %v544 = vsel %vm506, %v462, 0
      %v547 = vsel %vm506, %v463, 0
      %v550 = vsel %vm506, %v464, 0
      %v553 = vsel %vm506, %v465, 0
      %v556 = vsel %vm506, %v466, 0
      %v559 = vsel %vm506, %v467, 0
      %v562 = vsel %vm506, %v468, 0
      %v565 = vsel %vm506, %v469, 0
      %v568 = vsel %vm506, %v470, 0
      %v571 = vsel %vm506, %v471, 0
      %v574 = vsel %vm506, %v472, 0
      %v577 = vsel %vm506, %v473, 0
      %v580 = vsel %vm506, %v474, 0
      %v583 = vsel %vm506, %v475, 0
      %v586 = vsel %vm506, %v476, 0
      %v589 = vsel %vm506, %v477, 0
      %v592 = vsel %vm506, %v478, 0
      %v595 = vsel %vm506, %v479, 0
      %v598 = vsel %vm506, %v480, 0
      %v601 = vsel %vm506, %v481, 0
      %603 = vmatprep.subr.bf16.mxu0 0
      %604 = vmatpush1.bf16.msra.mxu0 %v498
      %605 = vmatprep.subr.bf16.mxu0 0
      %606 = vmatpush1.bf16.msra.mxu0 %v499
      %607 = vmatprep.subr.bf16.mxu0 0
      %608 = vmatpush1.bf16.msra.mxu0 %v500
      %609 = vmatprep.subr.bf16.mxu0 0
      %610 = vmatpush1.bf16.msra.mxu0 %v501
      %611 = vmatprep.subr.bf16.mxu0 0
      %612 = vmatpush1.bf16.msra.mxu0 0
      %613 = vmatprep.subr.bf16.mxu0 0
      %614 = vmatpush1.bf16.msra.mxu0 0
      %615 = vmatprep.subr.bf16.mxu0 0
      %616 = vmatpush1.bf16.msra.mxu0 0
      %617 = vmatprep.subr.bf16.mxu0 0
      %618 = vmatpush1.bf16.msra.mxu0 0
      %619 = vmatprep.subr.bf16.mxu0 0
      %620 = vmatpush1.bf16.msra.mxu0 0
      %621 = vmatprep.subr.bf16.mxu0 0
      %622 = vmatpush1.bf16.msra.mxu0 0
      %623 = vmatprep.subr.bf16.mxu0 0
      %624 = vmatpush1.bf16.msra.mxu0 0
      %625 = vmatprep.subr.bf16.mxu0 0
      %626 = vmatpush1.bf16.msra.mxu0 0
      %627 = vmatprep.subr.bf16.mxu0 0
      %628 = vmatpush1.bf16.msra.mxu0 0
      %629 = vmatprep.subr.bf16.mxu0 0
      %630 = vmatpush1.bf16.msra.mxu0 0
      %631 = vmatprep.subr.bf16.mxu0 0
      %632 = vmatpush1.bf16.msra.mxu0 0
      %633 = vmatprep.subr.bf16.mxu0 0
      %634 = vmatpush1.bf16.msra.mxu0 0
      %635 = vmatprep.mubr.bf16.mxu0 0
      %636 = vmatmul.mubr.bf16.gmra.mrb[0].mxu0 %v508
      %v637 = vpop.f32.mrb[0].mxu0
      %v638 = vadd.f32 0.0, %v637
      %v639 = vpop.f32.mrb[0].mxu0
      %v640 = vpop.f32.mrb[0].mxu0
      %v641 = vadd.f32 0.0, %v640
      %v642 = vpop.f32.mrb[0].mxu0
      %643 = vmatprep.mubr.bf16.mxu0 0
      %644 = vmatmul.mubr.bf16.gmra.mrb[0].mxu0 %v511
      %v645 = vpop.f32.mrb[0].mxu0
      %v646 = vadd.f32 0.0, %v645
      %v647 = vpop.f32.mrb[0].mxu0
      %v648 = vpop.f32.mrb[0].mxu0
      %v649 = vadd.f32 0.0, %v648
      %v650 = vpop.f32.mrb[0].mxu0
      %651 = vmatprep.mubr.bf16.mxu0 0
      %652 = vmatmul.mubr.bf16.gmra.mrb[0].mxu0 %v514
      %v653 = vpop.f32.mrb[0].mxu0
      %v654 = vadd.f32 0.0, %v653
      %v655 = vpop.f32.mrb[0].mxu0
      %v656 = vpop.f32.mrb[0].mxu0
      %v657 = vadd.f32 0.0, %v656
      %v658 = vpop.f32.mrb[0].mxu0
      %659 = vmatprep.mubr.bf16.mxu0 0
      %660 = vmatmul.mubr.bf16.gmra.mrb[0].mxu0 %v517
      %v661 = vpop.f32.mrb[0].mxu0
      %v662 = vadd.f32 0.0, %v661
      %v663 = vpop.f32.mrb[0].mxu0
      %v664 = vpop.f32.mrb[0].mxu0
      %v665 = vadd.f32 0.0, %v664
      %v666 = vpop.f32.mrb[0].mxu0
      %667 = vmatprep.mubr.bf16.mxu0 0
      %668 = vmatmul.mubr.bf16.gmra.mrb[0].mxu0 %v520
      %v669 = vpop.f32.mrb[0].mxu0
      %v670 = vadd.f32 0.0, %v669
      %v671 = vpop.f32.mrb[0].mxu0
      %v672 = vpop.f32.mrb[0].mxu0
      %v673 = vadd.f32 0.0, %v672
      %v674 = vpop.f32.mrb[0].mxu0
      %675 = vmatprep.mubr.bf16.mxu0 0
      %676 = vmatmul.mubr.bf16.gmra.mrb[0].mxu0 %v523
      %v677 = vpop.f32.mrb[0].mxu0
      %v678 = vadd.f32 0.0, %v677
      %v679 = vpop.f32.mrb[0].mxu0
      %v680 = vpop.f32.mrb[0].mxu0
      %v681 = vadd.f32 0.0, %v680
      %v682 = vpop.f32.mrb[0].mxu0
      %683 = vmatprep.mubr.bf16.mxu0 0
      %684 = vmatmul.mubr.bf16.gmra.mrb[0].mxu0 %v526
      %v685 = vpop.f32.mrb[0].mxu0
      %v686 = vadd.f32 0.0, %v685
      %v687 = vpop.f32.mrb[0].mxu0
      %v688 = vpop.f32.mrb[0].mxu0
      %v689 = vadd.f32 0.0, %v688
      %v690 = vpop.f32.mrb[0].mxu0
      %691 = vmatprep.mubr.bf16.mxu0 0
      %692 = vmatmul.mubr.bf16.gmra.mrb[0].mxu0 %v529
      %v693 = vpop.f32.mrb[0].mxu0
      %v694 = vadd.f32 0.0, %v693
      %v695 = vpop.f32.mrb[0].mxu0
      %v696 = vpop.f32.mrb[0].mxu0
      %v697 = vadd.f32 0.0, %v696
      %v698 = vpop.f32.mrb[0].mxu0
      %699 = vmatprep.mubr.bf16.mxu0 0
      %700 = vmatmul.mubr.bf16.gmra.mrb[0].mxu0 %v532
      %v701 = vpop.f32.mrb[0].mxu0
      %v702 = vadd.f32 0.0, %v701
      %v703 = vpop.f32.mrb[0].mxu0
      %v704 = vpop.f32.mrb[0].mxu0
      %v705 = vadd.f32 0.0, %v704
      %v706 = vpop.f32.mrb[0].mxu0
      %707 = vmatprep.mubr.bf16.mxu0 0
      %708 = vmatmul.mubr.bf16.gmra.mrb[0].mxu0 %v535
      %v709 = vpop.f32.mrb[0].mxu0
      %v710 = vadd.f32 0.0, %v709
      %v711 = vpop.f32.mrb[0].mxu0
      %v712 = vpop.f32.mrb[0].mxu0
      %v713 = vadd.f32 0.0, %v712
      %v714 = vpop.f32.mrb[0].mxu0
      %715 = vmatprep.mubr.bf16.mxu0 0
      %716 = vmatmul.mubr.bf16.gmra.mrb[0].mxu0 %v538
      %v717 = vpop.f32.mrb[0].mxu0
      %v718 = vadd.f32 0.0, %v717
      %v719 = vpop.f32.mrb[0].mxu0
      %v720 = vpop.f32.mrb[0].mxu0
      %v721 = vadd.f32 0.0, %v720
      %v722 = vpop.f32.mrb[0].mxu0
      %723 = vmatprep.mubr.bf16.mxu0 0
      %724 = vmatmul.mubr.bf16.gmra.mrb[0].mxu0 %v541
      %v725 = vpop.f32.mrb[0].mxu0
      %v726 = vadd.f32 0.0, %v725
      %v727 = vpop.f32.mrb[0].mxu0
      %v728 = vpop.f32.mrb[0].mxu0
      %v729 = vadd.f32 0.0, %v728
      %v730 = vpop.f32.mrb[0].mxu0
      %731 = vmatprep.mubr.bf16.mxu0 0
      %732 = vmatmul.mubr.bf16.gmra.mrb[0].mxu0 %v544
      %v733 = vpop.f32.mrb[0].mxu0
      %v734 = vadd.f32 0.0, %v733
      %v735 = vpop.f32.mrb[0].mxu0
      %v736 = vpop.f32.mrb[0].mxu0
      %v737 = vadd.f32 0.0, %v736
      %v738 = vpop.f32.mrb[0].mxu0
      %739 = vmatprep.mubr.bf16.mxu0 0
      %740 = vmatmul.mubr.bf16.gmra.mrb[0].mxu0 %v547
      %v741 = vpop.f32.mrb[0].mxu0
      %v742 = vadd.f32 0.0, %v741
      %v743 = vpop.f32.mrb[0].mxu0
      %v744 = vpop.f32.mrb[0].mxu0
      %v745 = vadd.f32 0.0, %v744
      %v746 = vpop.f32.mrb[0].mxu0
      %747 = vmatprep.mubr.bf16.mxu0 0
      %748 = vmatmul.mubr.bf16.gmra.mrb[0].mxu0 %v550
      %v749 = vpop.f32.mrb[0].mxu0
      %v750 = vadd.f32 0.0, %v749
      %v751 = vpop.f32.mrb[0].mxu0
      %v752 = vpop.f32.mrb[0].mxu0
      %v753 = vadd.f32 0.0, %v752
      %v754 = vpop.f32.mrb[0].mxu0
      %755 = vmatprep.mubr.bf16.mxu0 0
      %756 = vmatmul.mubr.bf16.gmra.mrb[0].mxu0 %v553
      %v757 = vpop.f32.mrb[0].mxu0
      %v758 = vadd.f32 0.0, %v757
      %v759 = vpop.f32.mrb[0].mxu0
      %v760 = vpop.f32.mrb[0].mxu0
      %v761 = vadd.f32 0.0, %v760
      %v762 = vpop.f32.mrb[0].mxu0
      %763 = vmatprep.mubr.bf16.mxu0 0
      %764 = vmatmul.mubr.bf16.gmra.mrb[0].mxu0 %v556
      %v765 = vpop.f32.mrb[0].mxu0
      %v766 = vadd.f32 0.0, %v765
      %v767 = vpop.f32.mrb[0].mxu0
      %v768 = vpop.f32.mrb[0].mxu0
      %v769 = vadd.f32 0.0, %v768
      %v770 = vpop.f32.mrb[0].mxu0
      %771 = vmatprep.mubr.bf16.mxu0 0
      %772 = vmatmul.mubr.bf16.gmra.mrb[0].mxu0 %v559
      %v773 = vpop.f32.mrb[0].mxu0
      %v774 = vadd.f32 0.0, %v773
      %v775 = vpop.f32.mrb[0].mxu0
      %v776 = vpop.f32.mrb[0].mxu0
      %v777 = vadd.f32 0.0, %v776
      %v778 = vpop.f32.mrb[0].mxu0
      %779 = vmatprep.mubr.bf16.mxu0 0
      %780 = vmatmul.mubr.bf16.gmra.mrb[0].mxu0 %v562
      %v781 = vpop.f32.mrb[0].mxu0
      %v782 = vadd.f32 0.0, %v781
      %v783 = vpop.f32.mrb[0].mxu0
      %v784 = vpop.f32.mrb[0].mxu0
      %v785 = vadd.f32 0.0, %v784
      %v786 = vpop.f32.mrb[0].mxu0
      %787 = vmatprep.mubr.bf16.mxu0 0
      %788 = vmatmul.mubr.bf16.gmra.mrb[0].mxu0 %v565
      %v789 = vpop.f32.mrb[0].mxu0
      %v790 = vadd.f32 0.0, %v789
      %v791 = vpop.f32.mrb[0].mxu0
      %v792 = vpop.f32.mrb[0].mxu0
      %v793 = vadd.f32 0.0, %v792
      %v794 = vpop.f32.mrb[0].mxu0
      %795 = vmatprep.mubr.bf16.mxu0 0
      %796 = vmatmul.mubr.bf16.gmra.mrb[0].mxu0 %v568
      %v797 = vpop.f32.mrb[0].mxu0
      %v798 = vadd.f32 0.0, %v797
      %v799 = vpop.f32.mrb[0].mxu0
      %v800 = vpop.f32.mrb[0].mxu0
      %v801 = vadd.f32 0.0, %v800
      %v802 = vpop.f32.mrb[0].mxu0
      %803 = vmatprep.mubr.bf16.mxu0 0
      %804 = vmatmul.mubr.bf16.gmra.mrb[0].mxu0 %v571
      %v805 = vpop.f32.mrb[0].mxu0
      %v806 = vadd.f32 0.0, %v805
      %v807 = vpop.f32.mrb[0].mxu0
      %v808 = vpop.f32.mrb[0].mxu0
      %v809 = vadd.f32 0.0, %v808
      %v810 = vpop.f32.mrb[0].mxu0
      %811 = vmatprep.mubr.bf16.mxu0 0
      %812 = vmatmul.mubr.bf16.gmra.mrb[0].mxu0 %v574
      %v813 = vpop.f32.mrb[0].mxu0
      %v814 = vadd.f32 0.0, %v813
      %v815 = vpop.f32.mrb[0].mxu0
      %v816 = vpop.f32.mrb[0].mxu0
      %v817 = vadd.f32 0.0, %v816
      %v818 = vpop.f32.mrb[0].mxu0
      %819 = vmatprep.mubr.bf16.mxu0 0
      %820 = vmatmul.mubr.bf16.gmra.mrb[0].mxu0 %v577
      %v821 = vpop.f32.mrb[0].mxu0
      %v822 = vadd.f32 0.0, %v821
      %v823 = vpop.f32.mrb[0].mxu0
      %v824 = vpop.f32.mrb[0].mxu0
      %v825 = vadd.f32 0.0, %v824
      %v826 = vpop.f32.mrb[0].mxu0
      %827 = vmatprep.mubr.bf16.mxu0 0
      %828 = vmatmul.mubr.bf16.gmra.mrb[0].mxu0 %v580
      %v829 = vpop.f32.mrb[0].mxu0
      %v830 = vadd.f32 0.0, %v829
      %v831 = vpop.f32.mrb[0].mxu0
      %v832 = vpop.f32.mrb[0].mxu0
      %v833 = vadd.f32 0.0, %v832
      %v834 = vpop.f32.mrb[0].mxu0
      %835 = vmatprep.mubr.bf16.mxu0 0
      %836 = vmatmul.mubr.bf16.gmra.mrb[0].mxu0 %v583
      %v837 = vpop.f32.mrb[0].mxu0
      %v838 = vadd.f32 0.0, %v837
      %v839 = vpop.f32.mrb[0].mxu0
      %v840 = vpop.f32.mrb[0].mxu0
      %v841 = vadd.f32 0.0, %v840
      %v842 = vpop.f32.mrb[0].mxu0
      %843 = vmatprep.mubr.bf16.mxu0 0
      %844 = vmatmul.mubr.bf16.gmra.mrb[0].mxu0 %v586
      %v845 = vpop.f32.mrb[0].mxu0
      %v846 = vadd.f32 0.0, %v845
      %v847 = vpop.f32.mrb[0].mxu0
      %v848 = vpop.f32.mrb[0].mxu0
      %v849 = vadd.f32 0.0, %v848
      %v850 = vpop.f32.mrb[0].mxu0
      %851 = vmatprep.mubr.bf16.mxu0 0
      %852 = vmatmul.mubr.bf16.gmra.mrb[0].mxu0 %v589
      %v853 = vpop.f32.mrb[0].mxu0
      %v854 = vadd.f32 0.0, %v853
      %v855 = vpop.f32.mrb[0].mxu0
      %v856 = vpop.f32.mrb[0].mxu0
      %v857 = vadd.f32 0.0, %v856
      %v858 = vpop.f32.mrb[0].mxu0
      %859 = vmatprep.mubr.bf16.mxu0 0
      %860 = vmatmul.mubr.bf16.gmra.mrb[0].mxu0 %v592
      %v861 = vpop.f32.mrb[0].mxu0
      %v862 = vadd.f32 0.0, %v861
      %v863 = vpop.f32.mrb[0].mxu0
      %v864 = vpop.f32.mrb[0].mxu0
      %v865 = vadd.f32 0.0, %v864
      %v866 = vpop.f32.mrb[0].mxu0
      %867 = vmatprep.mubr.bf16.mxu0 0
      %868 = vmatmul.mubr.bf16.gmra.mrb[0].mxu0 %v595
      %v869 = vpop.f32.mrb[0].mxu0
      %v870 = vadd.f32 0.0, %v869
      %v871 = vpop.f32.mrb[0].mxu0
      %v872 = vpop.f32.mrb[0].mxu0
      %v873 = vadd.f32 0.0, %v872
      %v874 = vpop.f32.mrb[0].mxu0
      %875 = vmatprep.mubr.bf16.mxu0 0
      %876 = vmatmul.mubr.bf16.gmra.mrb[0].mxu0 %v598
      %v877 = vpop.f32.mrb[0].mxu0
      %v878 = vadd.f32 0.0, %v877
      %v879 = vpop.f32.mrb[0].mxu0
      %v880 = vpop.f32.mrb[0].mxu0
      %v881 = vadd.f32 0.0, %v880
      %v882 = vpop.f32.mrb[0].mxu0
      %883 = vmatprep.mubr.bf16.mxu0 0
      %884 = vmatmul.mubr.bf16.gmra.mrb[0].mxu0 %v601
      %v885 = vpop.f32.mrb[0].mxu0
      %v886 = vadd.f32 0.0, %v885
      %v887 = vpop.f32.mrb[0].mxu0
      %v888 = vpop.f32.mrb[0].mxu0
      %v889 = vadd.f32 0.0, %v888
      %v890 = vpop.f32.mrb[0].mxu0
      %891 = vdwg.mxu0
      %v892 = vpack.c.bf16 %v641, %v638
      %v893 = vpack.c.bf16 %v649, %v646
      %v894 = vpack.c.bf16 %v657, %v654
      %v895 = vpack.c.bf16 %v665, %v662
      %v896 = vpack.c.bf16 %v673, %v670
      %v897 = vpack.c.bf16 %v681, %v678
      %v898 = vpack.c.bf16 %v689, %v686
      %v899 = vpack.c.bf16 %v697, %v694
      %v900 = vpack.c.bf16 %v705, %v702
      %v901 = vpack.c.bf16 %v713, %v710
      %v902 = vpack.c.bf16 %v721, %v718
      %v903 = vpack.c.bf16 %v729, %v726
      %v904 = vpack.c.bf16 %v737, %v734
      %v905 = vpack.c.bf16 %v745, %v742
      %v906 = vpack.c.bf16 %v753, %v750
      %v907 = vpack.c.bf16 %v761, %v758
      %v908 = vpack.c.bf16 %v769, %v766
      %v909 = vpack.c.bf16 %v777, %v774
      %v910 = vpack.c.bf16 %v785, %v782
      %v911 = vpack.c.bf16 %v793, %v790
      %v912 = vpack.c.bf16 %v801, %v798
      %v913 = vpack.c.bf16 %v809, %v806
      %v914 = vpack.c.bf16 %v817, %v814
      %v915 = vpack.c.bf16 %v825, %v822
      %v916 = vpack.c.bf16 %v833, %v830
      %v917 = vpack.c.bf16 %v841, %v838
      %v918 = vpack.c.bf16 %v849, %v846
      %v919 = vpack.c.bf16 %v857, %v854
      %v920 = vpack.c.bf16 %v865, %v862
      %v921 = vpack.c.bf16 %v873, %v870
      %v922 = vpack.c.bf16 %v881, %v878
      %v923 = vpack.c.bf16 %v889, %v886
      %v956 = vunpack.c.l.b16 %v892
      %v957 = vunpack.c.h.b16 %v892
      %v958 = vunpack.c.l.b16 %v893
      %v959 = vunpack.c.h.b16 %v893
      %v960 = vunpack.c.l.b16 %v894
      %v961 = vunpack.c.h.b16 %v894
      %v962 = vunpack.c.l.b16 %v895
      %v963 = vunpack.c.h.b16 %v895
      %v964 = vunpack.c.l.b16 %v896
      %v965 = vunpack.c.h.b16 %v896
      %v966 = vunpack.c.l.b16 %v897
      %v967 = vunpack.c.h.b16 %v897
      %v968 = vunpack.c.l.b16 %v898
      %v969 = vunpack.c.h.b16 %v898
      %v970 = vunpack.c.l.b16 %v899
      %v971 = vunpack.c.h.b16 %v899
      %v972 = vunpack.c.l.b16 %v900
      %v973 = vunpack.c.h.b16 %v900
      %v974 = vunpack.c.l.b16 %v901
      %v975 = vunpack.c.h.b16 %v901
      %v976 = vunpack.c.l.b16 %v902
      %v977 = vunpack.c.h.b16 %v902
      %v978 = vunpack.c.l.b16 %v903
      %v979 = vunpack.c.h.b16 %v903
      %v980 = vunpack.c.l.b16 %v904
      %v981 = vunpack.c.h.b16 %v904
      %v982 = vunpack.c.l.b16 %v905
      %v983 = vunpack.c.h.b16 %v905
      %v984 = vunpack.c.l.b16 %v906
      %v985 = vunpack.c.h.b16 %v906
      %v986 = vunpack.c.l.b16 %v907
      %v987 = vunpack.c.h.b16 %v907
      %v988 = vunpack.c.l.b16 %v908
      %v989 = vunpack.c.h.b16 %v908
      %v990 = vunpack.c.l.b16 %v909
      %v991 = vunpack.c.h.b16 %v909
      %v992 = vunpack.c.l.b16 %v910
      %v993 = vunpack.c.h.b16 %v910
      %v994 = vunpack.c.l.b16 %v911
      %v995 = vunpack.c.h.b16 %v911
      %v996 = vunpack.c.l.b16 %v912
      %v997 = vunpack.c.h.b16 %v912
      %v998 = vunpack.c.l.b16 %v913
      %v999 = vunpack.c.h.b16 %v913
      %v1000 = vunpack.c.l.b16 %v914
      %v1001 = vunpack.c.h.b16 %v914
      %v1002 = vunpack.c.l.b16 %v915
      %v1003 = vunpack.c.h.b16 %v915
      %v1004 = vunpack.c.l.b16 %v916
      %v1005 = vunpack.c.h.b16 %v916
      %v1006 = vunpack.c.l.b16 %v917
      %v1007 = vunpack.c.h.b16 %v917
      %v1008 = vunpack.c.l.b16 %v918
      %v1009 = vunpack.c.h.b16 %v918
      %v1010 = vunpack.c.l.b16 %v919
      %v1011 = vunpack.c.h.b16 %v919
      %v1012 = vunpack.c.l.b16 %v920
      %v1013 = vunpack.c.h.b16 %v920
      %v1014 = vunpack.c.l.b16 %v921
      %v1015 = vunpack.c.h.b16 %v921
      %v1016 = vunpack.c.l.b16 %v922
      %v1017 = vunpack.c.h.b16 %v922
      %v1018 = vunpack.c.l.b16 %v923
      %v1019 = vunpack.c.h.b16 %v923
      %v1020 = vpack.c.b16 %v956, %v956
      %v1021 = vpack.c.b16 %v957, %v957
      %v1022 = vpack.c.b16 %v958, %v958
      %v1023 = vpack.c.b16 %v959, %v959
      %v1024 = vpack.c.b16 %v960, %v960
      %v1025 = vpack.c.b16 %v961, %v961
      %v1026 = vpack.c.b16 %v962, %v962
      %v1027 = vpack.c.b16 %v963, %v963
      %v1028 = vpack.c.b16 %v964, %v964
      %v1029 = vpack.c.b16 %v965, %v965
      %v1030 = vpack.c.b16 %v966, %v966
      %v1031 = vpack.c.b16 %v967, %v967
      %v1032 = vpack.c.b16 %v968, %v968
      %v1033 = vpack.c.b16 %v969, %v969
      %v1034 = vpack.c.b16 %v970, %v970
      %v1035 = vpack.c.b16 %v971, %v971
      %v1036 = vpack.c.b16 %v972, %v972
      %v1037 = vpack.c.b16 %v973, %v973
      %v1038 = vpack.c.b16 %v974, %v974
      %v1039 = vpack.c.b16 %v975, %v975
      %v1040 = vpack.c.b16 %v976, %v976
      %v1041 = vpack.c.b16 %v977, %v977
      %v1042 = vpack.c.b16 %v978, %v978
      %v1043 = vpack.c.b16 %v979, %v979
      %v1044 = vpack.c.b16 %v980, %v980
      %v1045 = vpack.c.b16 %v981, %v981
      %v1046 = vpack.c.b16 %v982, %v982
      %v1047 = vpack.c.b16 %v983, %v983
      %v1048 = vpack.c.b16 %v984, %v984
      %v1049 = vpack.c.b16 %v985, %v985
      %v1050 = vpack.c.b16 %v986, %v986
      %v1051 = vpack.c.b16 %v987, %v987
      %v1052 = vpack.c.b16 %v988, %v988
      %v1053 = vpack.c.b16 %v989, %v989
      %v1054 = vpack.c.b16 %v990, %v990
      %v1055 = vpack.c.b16 %v991, %v991
      %v1056 = vpack.c.b16 %v992, %v992
      %v1057 = vpack.c.b16 %v993, %v993
      %v1058 = vpack.c.b16 %v994, %v994
      %v1059 = vpack.c.b16 %v995, %v995
      %v1060 = vpack.c.b16 %v996, %v996
      %v1061 = vpack.c.b16 %v997, %v997
      %v1062 = vpack.c.b16 %v998, %v998
      %v1063 = vpack.c.b16 %v999, %v999
      %v1064 = vpack.c.b16 %v1000, %v1000
      %v1065 = vpack.c.b16 %v1001, %v1001
      %v1066 = vpack.c.b16 %v1002, %v1002
      %v1067 = vpack.c.b16 %v1003, %v1003
      %v1068 = vpack.c.b16 %v1004, %v1004
      %v1069 = vpack.c.b16 %v1005, %v1005
      %v1070 = vpack.c.b16 %v1006, %v1006
      %v1071 = vpack.c.b16 %v1007, %v1007
      %v1072 = vpack.c.b16 %v1008, %v1008
      %v1073 = vpack.c.b16 %v1009, %v1009
      %v1074 = vpack.c.b16 %v1010, %v1010
      %v1075 = vpack.c.b16 %v1011, %v1011
      %v1076 = vpack.c.b16 %v1012, %v1012
      %v1077 = vpack.c.b16 %v1013, %v1013
      %v1078 = vpack.c.b16 %v1014, %v1014
      %v1079 = vpack.c.b16 %v1015, %v1015
      %v1080 = vpack.c.b16 %v1016, %v1016
      %v1081 = vpack.c.b16 %v1017, %v1017
      %v1082 = vpack.c.b16 %v1018, %v1018
      %v1083 = vpack.c.b16 %v1019, %v1019
      %1148 = vst [vmem:[%s240] sm:$0xf] %v1020
      %1149 = vst [vmem:[%s240 + $0x4] sm:$0xf] %v1021
      %1150 = vst [vmem:[%s240 + $0x8] sm:$0xf] %v1022
      %1151 = vst [vmem:[%s240 + $0xc] sm:$0xf] %v1023
      %1152 = vst [vmem:[%s240 + $0x10] sm:$0xf] %v1024
      %1153 = vst [vmem:[%s240 + $0x14] sm:$0xf] %v1025
      %1154 = vst [vmem:[%s240 + $0x18] sm:$0xf] %v1026
      %1155 = vst [vmem:[%s240 + $0x1c] sm:$0xf] %v1027
      %1156 = vst [vmem:[%s240 + $0x20] sm:$0xf] %v1028
      %1157 = vst [vmem:[%s240 + $0x24] sm:$0xf] %v1029
      %1158 = vst [vmem:[%s240 + $0x28] sm:$0xf] %v1030
      %1159 = vst [vmem:[%s240 + $0x2c] sm:$0xf] %v1031
      %1160 = vst [vmem:[%s240 + $0x30] sm:$0xf] %v1032
      %1161 = vst [vmem:[%s240 + $0x34] sm:$0xf] %v1033
      %1162 = vst [vmem:[%s240 + $0x38] sm:$0xf] %v1034
      %1163 = vst [vmem:[%s240 + $0x3c] sm:$0xf] %v1035
      %1164 = vst [vmem:[%s240 + $0x40] sm:$0xf] %v1036
      %1165 = vst [vmem:[%s240 + $0x44] sm:$0xf] %v1037
      %1166 = vst [vmem:[%s240 + $0x48] sm:$0xf] %v1038
      %1167 = vst [vmem:[%s240 + $0x4c] sm:$0xf] %v1039
      %1168 = vst [vmem:[%s240 + $0x50] sm:$0xf] %v1040
      %1169 = vst [vmem:[%s240 + $0x54] sm:$0xf] %v1041
      %1170 = vst [vmem:[%s240 + $0x58] sm:$0xf] %v1042
      %1171 = vst [vmem:[%s240 + $0x5c] sm:$0xf] %v1043
      %1172 = vst [vmem:[%s240 + $0x60] sm:$0xf] %v1044
      %1173 = vst [vmem:[%s240 + $0x64] sm:$0xf] %v1045
      %1174 = vst [vmem:[%s240 + $0x68] sm:$0xf] %v1046
      %1175 = vst [vmem:[%s240 + $0x6c] sm:$0xf] %v1047
      %1176 = vst [vmem:[%s240 + $0x70] sm:$0xf] %v1048
      %1177 = vst [vmem:[%s240 + $0x74] sm:$0xf] %v1049
      %1178 = vst [vmem:[%s240 + $0x78] sm:$0xf] %v1050
      %1179 = vst [vmem:[%s240 + $0x7c] sm:$0xf] %v1051
      %1180 = vst [vmem:[%s240 + $0x80] sm:$0xf] %v1052
      %1181 = vst [vmem:[%s240 + $0x84] sm:$0xf] %v1053
      %1182 = vst [vmem:[%s240 + $0x88] sm:$0xf] %v1054
      %1183 = vst [vmem:[%s240 + $0x8c] sm:$0xf] %v1055
      %1184 = vst [vmem:[%s240 + $0x90] sm:$0xf] %v1056
      %1185 = vst [vmem:[%s240 + $0x94] sm:$0xf] %v1057
      %1186 = vst [vmem:[%s240 + $0x98] sm:$0xf] %v1058
      %1187 = vst [vmem:[%s240 + $0x9c] sm:$0xf] %v1059
      %1188 = vst [vmem:[%s240 + $0xa0] sm:$0xf] %v1060
      %1189 = vst [vmem:[%s240 + $0xa4] sm:$0xf] %v1061
      %1190 = vst [vmem:[%s240 + $0xa8] sm:$0xf] %v1062
      %1191 = vst [vmem:[%s240 + $0xac] sm:$0xf] %v1063
      %1192 = vst [vmem:[%s240 + $0xb0] sm:$0xf] %v1064
      %1193 = vst [vmem:[%s240 + $0xb4] sm:$0xf] %v1065
      %1194 = vst [vmem:[%s240 + $0xb8] sm:$0xf] %v1066
      %1195 = vst [vmem:[%s240 + $0xbc] sm:$0xf] %v1067
      %1196 = vst [vmem:[%s240 + $0xc0] sm:$0xf] %v1068
      %1197 = vst [vmem:[%s240 + $0xc4] sm:$0xf] %v1069
      %1198 = vst [vmem:[%s240 + $0xc8] sm:$0xf] %v1070
      %1199 = vst [vmem:[%s240 + $0xcc] sm:$0xf] %v1071
      %1200 = vst [vmem:[%s240 + $0xd0] sm:$0xf] %v1072
      %1201 = vst [vmem:[%s240 + $0xd4] sm:$0xf] %v1073
      %1202 = vst [vmem:[%s240 + $0xd8] sm:$0xf] %v1074
      %1203 = vst [vmem:[%s240 + $0xdc] sm:$0xf] %v1075
      %1204 = vst [vmem:[%s240 + $0xe0] sm:$0xf] %v1076
      %1205 = vst [vmem:[%s240 + $0xe4] sm:$0xf] %v1077
      %1206 = vst [vmem:[%s240 + $0xe8] sm:$0xf] %v1078
      %1207 = vst [vmem:[%s240 + $0xec] sm:$0xf] %v1079
      %1208 = vst [vmem:[%s240 + $0xf0] sm:$0xf] %v1080
      %1209 = vst [vmem:[%s240 + $0xf4] sm:$0xf] %v1081
      %1210 = vst [vmem:[%s240 + $0xf8] sm:$0xf] %v1082
      %1211 = vst [vmem:[%s240 + $0xfc] sm:$0xf] %v1083
      %v1212 = vadd.f32 %v638, %v641
      %v1213 = vadd.f32 %v1212, %v646
      %v1214 = vadd.f32 %v1213, %v649
      %v1215 = vadd.f32 %v1214, %v654
      %v1216 = vadd.f32 %v1215, %v657
      %v1217 = vadd.f32 %v1216, %v662
      %v1218 = vadd.f32 %v1217, %v665
      %v1219 = vadd.f32 %v1218, %v670
      %v1220 = vadd.f32 %v1219, %v673
      %v1221 = vadd.f32 %v1220, %v678
      %v1222 = vadd.f32 %v1221, %v681
      %v1223 = vadd.f32 %v1222, %v686
      %v1224 = vadd.f32 %v1223, %v689
      %v1225 = vadd.f32 %v1224, %v694
      %v1226 = vadd.f32 %v1225, %v697
      %v1227 = vadd.f32 %v1226, %v702
      %v1228 = vadd.f32 %v1227, %v705
      %v1229 = vadd.f32 %v1228, %v710
      %v1230 = vadd.f32 %v1229, %v713
      %v1231 = vadd.f32 %v1230, %v718
      %v1232 = vadd.f32 %v1231, %v721
      %v1233 = vadd.f32 %v1232, %v726
      %v1234 = vadd.f32 %v1233, %v729
      %v1235 = vadd.f32 %v1234, %v734
      %v1236 = vadd.f32 %v1235, %v737
      %v1237 = vadd.f32 %v1236, %v742
      %v1238 = vadd.f32 %v1237, %v745
      %v1239 = vadd.f32 %v1238, %v750
      %v1240 = vadd.f32 %v1239, %v753
      %v1241 = vadd.f32 %v1240, %v758
      %v1242 = vadd.f32 %v1241, %v761
      %v1243 = vadd.f32 %v1242, %v766
      %v1244 = vadd.f32 %v1243, %v769
      %v1245 = vadd.f32 %v1244, %v774
      %v1246 = vadd.f32 %v1245, %v777
      %v1247 = vadd.f32 %v1246, %v782
      %v1248 = vadd.f32 %v1247, %v785
      %v1249 = vadd.f32 %v1248, %v790
      %v1250 = vadd.f32 %v1249, %v793
      %v1251 = vadd.f32 %v1250, %v798
      %v1252 = vadd.f32 %v1251, %v801
      %v1253 = vadd.f32 %v1252, %v806
      %v1254 = vadd.f32 %v1253, %v809
      %v1255 = vadd.f32 %v1254, %v814
      %v1256 = vadd.f32 %v1255, %v817
      %v1257 = vadd.f32 %v1256, %v822
      %v1258 = vadd.f32 %v1257, %v825
      %v1259 = vadd.f32 %v1258, %v830
      %v1260 = vadd.f32 %v1259, %v833
      %v1261 = vadd.f32 %v1260, %v838
      %v1262 = vadd.f32 %v1261, %v841
      %v1263 = vadd.f32 %v1262, %v846
      %v1264 = vadd.f32 %v1263, %v849
      %v1265 = vadd.f32 %v1264, %v854
      %v1266 = vadd.f32 %v1265, %v857
      %v1267 = vadd.f32 %v1266, %v862
      %v1268 = vadd.f32 %v1267, %v865
      %v1269 = vadd.f32 %v1268, %v870
      %v1270 = vadd.f32 %v1269, %v873
      %v1271 = vadd.f32 %v1270, %v878
      %v1272 = vadd.f32 %v1271, %v881
      %v1273 = vadd.f32 %v1272, %v886
      %v1274 = vadd.f32 %v1273, %v889
      %v1275 = vrot.slane %v1274, 4
      %v1276 = vadd.f32 %v1274, %v1275
      %v1277 = vrot.slane %v1276, 2
      %v1278 = vadd.f32 %v1276, %v1277
      %v1279 = vrot.slane %v1278, 1
      %v1280 = vadd.f32 %v1278, %v1279
      %1281 = vst [vmem:[%s248] sm:$0x1] %v1280
      %v1282 = vmul.f32 %v638, %v638
      %v1283 = vmul.f32 %v641, %v641
      %v1284 = vmul.f32 %v646, %v646
      %v1285 = vmul.f32 %v649, %v649
      %v1286 = vmul.f32 %v654, %v654
      %v1287 = vmul.f32 %v657, %v657
      %v1288 = vmul.f32 %v662, %v662
      %v1289 = vmul.f32 %v665, %v665
      %v1290 = vmul.f32 %v670, %v670
      %v1291 = vmul.f32 %v673, %v673
      %v1292 = vmul.f32 %v678, %v678
      %v1293 = vmul.f32 %v681, %v681
      %v1294 = vmul.f32 %v686, %v686
      %v1295 = vmul.f32 %v689, %v689
      %v1296 = vmul.f32 %v694, %v694
      %v1297 = vmul.f32 %v697, %v697
      %v1298 = vmul.f32 %v702, %v702
      %v1299 = vmul.f32 %v705, %v705
      %v1300 = vmul.f32 %v710, %v710
      %v1301 = vmul.f32 %v713, %v713
      %v1302 = vmul.f32 %v718, %v718
      %v1303 = vmul.f32 %v721, %v721
      %v1304 = vmul.f32 %v726, %v726
      %v1305 = vmul.f32 %v729, %v729
      %v1306 = vmul.f32 %v734, %v734
      %v1307 = vmul.f32 %v737, %v737
      %v1308 = vmul.f32 %v742, %v742
      %v1309 = vmul.f32 %v745, %v745
      %v1310 = vmul.f32 %v750, %v750
      %v1311 = vmul.f32 %v753, %v753
      %v1312 = vmul.f32 %v758, %v758
      %v1313 = vmul.f32 %v761, %v761
      %v1314 = vmul.f32 %v766, %v766
      %v1315 = vmul.f32 %v769, %v769
      %v1316 = vmul.f32 %v774, %v774
      %v1317 = vmul.f32 %v777, %v777
      %v1318 = vmul.f32 %v782, %v782
      %v1319 = vmul.f32 %v785, %v785
      %v1320 = vmul.f32 %v790, %v790
      %v1321 = vmul.f32 %v793, %v793
      %v1322 = vmul.f32 %v798, %v798
      %v1323 = vmul.f32 %v801, %v801
      %v1324 = vmul.f32 %v806, %v806
      %v1325 = vmul.f32 %v809, %v809
      %v1326 = vmul.f32 %v814, %v814
      %v1327 = vmul.f32 %v817, %v817
      %v1328 = vmul.f32 %v822, %v822
      %v1329 = vmul.f32 %v825, %v825
      %v1330 = vmul.f32 %v830, %v830
      %v1331 = vmul.f32 %v833, %v833
      %v1332 = vmul.f32 %v838, %v838
      %v1333 = vmul.f32 %v841, %v841
      %v1334 = vmul.f32 %v846, %v846
      %v1335 = vmul.f32 %v849, %v849
      %v1336 = vmul.f32 %v854, %v854
      %v1337 = vmul.f32 %v857, %v857
      %v1338 = vmul.f32 %v862, %v862
      %v1339 = vmul.f32 %v865, %v865
      %v1340 = vmul.f32 %v870, %v870
      %v1341 = vmul.f32 %v873, %v873
      %v1342 = vmul.f32 %v878, %v878
      %v1343 = vmul.f32 %v881, %v881
      %v1344 = vmul.f32 %v886, %v886
      %v1345 = vmul.f32 %v889, %v889
      %v1346 = vadd.f32 %v1282, %v1283
      %v1347 = vadd.f32 %v1346, %v1284
      %v1348 = vadd.f32 %v1347, %v1285
      %v1349 = vadd.f32 %v1348, %v1286
      %v1350 = vadd.f32 %v1349, %v1287
      %v1351 = vadd.f32 %v1350, %v1288
      %v1352 = vadd.f32 %v1351, %v1289
      %v1353 = vadd.f32 %v1352, %v1290
      %v1354 = vadd.f32 %v1353, %v1291
      %v1355 = vadd.f32 %v1354, %v1292
      %v1356 = vadd.f32 %v1355, %v1293
      %v1357 = vadd.f32 %v1356, %v1294
      %v1358 = vadd.f32 %v1357, %v1295
      %v1359 = vadd.f32 %v1358, %v1296
      %v1360 = vadd.f32 %v1359, %v1297
      %v1361 = vadd.f32 %v1360, %v1298
      %v1362 = vadd.f32 %v1361, %v1299
      %v1363 = vadd.f32 %v1362, %v1300
      %v1364 = vadd.f32 %v1363, %v1301
      %v1365 = vadd.f32 %v1364, %v1302
      %v1366 = vadd.f32 %v1365, %v1303
      %v1367 = vadd.f32 %v1366, %v1304
      %v1368 = vadd.f32 %v1367, %v1305
      %v1369 = vadd.f32 %v1368, %v1306
      %v1370 = vadd.f32 %v1369, %v1307
      %v1371 = vadd.f32 %v1370, %v1308
      %v1372 = vadd.f32 %v1371, %v1309
      %v1373 = vadd.f32 %v1372, %v1310
      %v1374 = vadd.f32 %v1373, %v1311
      %v1375 = vadd.f32 %v1374, %v1312
      %v1376 = vadd.f32 %v1375, %v1313
      %v1377 = vadd.f32 %v1376, %v1314
      %v1378 = vadd.f32 %v1377, %v1315
      %v1379 = vadd.f32 %v1378, %v1316
      %v1380 = vadd.f32 %v1379, %v1317
      %v1381 = vadd.f32 %v1380, %v1318
      %v1382 = vadd.f32 %v1381, %v1319
      %v1383 = vadd.f32 %v1382, %v1320
      %v1384 = vadd.f32 %v1383, %v1321
      %v1385 = vadd.f32 %v1384, %v1322
      %v1386 = vadd.f32 %v1385, %v1323
      %v1387 = vadd.f32 %v1386, %v1324
      %v1388 = vadd.f32 %v1387, %v1325
      %v1389 = vadd.f32 %v1388, %v1326
      %v1390 = vadd.f32 %v1389, %v1327
      %v1391 = vadd.f32 %v1390, %v1328
      %v1392 = vadd.f32 %v1391, %v1329
      %v1393 = vadd.f32 %v1392, %v1330
      %v1394 = vadd.f32 %v1393, %v1331
      %v1395 = vadd.f32 %v1394, %v1332
      %v1396 = vadd.f32 %v1395, %v1333
      %v1397 = vadd.f32 %v1396, %v1334
      %v1398 = vadd.f32 %v1397, %v1335
      %v1399 = vadd.f32 %v1398, %v1336
      %v1400 = vadd.f32 %v1399, %v1337
      %v1401 = vadd.f32 %v1400, %v1338
      %v1402 = vadd.f32 %v1401, %v1339
      %v1403 = vadd.f32 %v1402, %v1340
      %v1404 = vadd.f32 %v1403, %v1341
      %v1405 = vadd.f32 %v1404, %v1342
      %v1406 = vadd.f32 %v1405, %v1343
      %v1407 = vadd.f32 %v1406, %v1344
      %v1408 = vadd.f32 %v1407, %v1345
      %v1409 = vrot.slane %v1408, 4
      %v1410 = vadd.f32 %v1408, %v1409
      %v1411 = vrot.slane %v1410, 2
      %v1412 = vadd.f32 %v1410, %v1411
      %v1413 = vrot.slane %v1412, 1
      %v1414 = vadd.f32 %v1412, %v1413
      %1415 = vst [vmem:[%s248 + $0x1] sm:$0x1] %v1414
      %s1416 = smul.u32 64, %s20
      %p1417 = scmp.lt.s32.totalorder %s19, 3
      %s1418 = scalar_select %p1417, %s19, 3
      %p1419 = scmp.lt.s32.totalorder %s1416, 63
      %s1420 = scalar_select %p1419, %s1416, 63
      %s1421 = smul.addr %s1418, 64
      %s1422 = sadd.s32 %s1420, %s1421
      %s1423 = smul.addr %s1422, 4
      %s1424 = scalar_lea.vmem %s2, %s1423
      %p1425 = scmp.lt.s32.totalorder %s19, 3
      %s1426 = scalar_select %p1425, %s19, 3
      %p1427 = scmp.lt.s32.totalorder %s20, 0
      %s1428 = scalar_select %p1427, %s20, 0
      %s1429 = sadd.s32 %s1428, %s1426
      %s1430 = smul.addr %s1429, 2
      %s1431 = scalar_lea.vmem %s3, %s1430
      // Predicated region
      $region29: #{_lambda_.8} parent=27 // pred_check
        %p1432 = pneg %p101
      $region30: #{_lambda_.8} parent=27 // pred_check_branch
        %1434 = sbr.rel (%p1432) target = $region32
      $region31: #{_lambda_.8} parent=27 // pred_region
        %s1435 = smul.u32 64, %s20
      $region32: #{_lambda_.8} parent=27 // pred_fallthru
        _
      // Predicated region
      $region33: #{_lambda_.8} parent=27 // pred_check
        %p1436 = pneg %p129
      $region34: #{_lambda_.8} parent=27 // pred_check_branch
        %1438 = sbr.rel (%p1436) target = $region36
      $region35: #{_lambda_.8} parent=27 // pred_region
        _
      $region36: #{_lambda_.8} parent=27 // pred_fallthru
        _
    $region28: #{_lambda_.8} parent=5 // pred_fallthru
      _
    %p1439 = scmp.le.s32.totalorder 2, %s10
    // Predicated region
    $region37: #{_lambda_.8} parent=5 // pred_check
      %p1440 = pneg %p1439
    $region38: #{_lambda_.8} parent=5 // pred_check_branch
      %1442 = sbr.rel (%p1440) target = $region40
    $region39: #{_lambda_.8} parent=5 // pred_region
      %s1443 = ssub.s32 %s10, 2
      // Predicated region
      $region41: #{_lambda_.8} parent=39 // pred_check
        %p1444 = pneg %p107
      $region42: #{_lambda_.8} parent=39 // pred_check_branch
        %1446 = sbr.rel (%p1444) target = $region44
      $region43: #{_lambda_.8} parent=39 // pred_region
        %s1447 = smul.u32 64, %s22
        %p1448 = scmp.lt.s32.totalorder %s21, 3
        %s1449 = scalar_select %p1448, %s21, 3
        %p1450 = scmp.lt.s32.totalorder %s1447, 63
        %s1451 = scalar_select %p1450, %s1447, 63
        %s1452 = smul.addr %s1449, 64
        %s1453 = sadd.s32 %s1451, %s1452
        %s1454 = smul.addr %s1453, 4
        %s1455 = scalar_lea.vmem %s2, %s1454
      $region44: #{_lambda_.8} parent=39 // pred_fallthru
        _
      // Predicated region
      $region45: #{_lambda_.8} parent=39 // pred_check
        %p1456 = pneg %p135
      $region46: #{_lambda_.8} parent=39 // pred_check_branch
        %1458 = sbr.rel (%p1456) target = $region48
      $region47: #{_lambda_.8} parent=39 // pred_region
        %p1459 = scmp.lt.s32.totalorder %s21, 3
        %s1460 = scalar_select %p1459, %s21, 3
        %p1461 = scmp.lt.s32.totalorder %s22, 0
        %s1462 = scalar_select %p1461, %s22, 0
        %s1463 = sadd.s32 %s1462, %s1460
        %s1464 = smul.addr %s1463, 2
        %s1465 = scalar_lea.vmem %s3, %s1464
      $region48: #{_lambda_.8} parent=39 // pred_fallthru
        _
    $region40: #{_lambda_.8} parent=5 // pred_fallthru
      _
  $region6: #{_lambda_.8} parent=0 // loop_footer
    %s14 = sadd.s32 1, %s10
  $region7: #{_lambda_.8} parent=0 // loop_footer_branch
    %9 = sbr.rel target = $region3
  $region8: #{_lambda_.8} parent=0 // loop_exit
    _

// kernel: _lambda_.9
$region0: #{_lambda_.9}
  #allocation0 [shape = 'u32[]', space=smem, size = 0x4, offset = 0x4, fixed_abs, tag = 'smem constant byte address 0x4 - core index']
  #allocation1 [shape = 'u32[144,128]{1,0:T(1,128)}', space=vmem, size = 0x12000, scoped, tag = 'internal scratch']
  %s0 = inlined_call_operand.vmem [shape: bf16[4,2048,32], index: 0, kind: input, shape index: {}]
  %s1 = inlined_call_operand.vmem [shape: bf16[4,32,128], index: 1, kind: input, shape index: {}]
  %s2 = inlined_call_operand.vmem [shape: f32[1,128], index: 2, kind: input, shape index: {}]
  %s3 = inlined_call_operand.vmem [shape: bf16[4,2048,128], index: 3, kind: output, shape index: {}]
  %s4 = sld [smem:[#allocation0]]
  $region45: #{_lambda_.9} parent=0
    _
  %s6 = ssub.s32 1, %s4
  %s7 = scalar_select 0, %s6, %s4
  loop: start=0, step=1, limit=10
  $region2: #{_lambda_.9} parent=0 // loop_pre_header
    _
  $region3: #{_lambda_.9} parent=0 // loop_header
    %s9 = sphi 0, %s13
    %p10 = scmp.ge.s32.totalorder %s9, 10
    %s16 = sphi 0, %s28
    %s17 = sphi 0, %s24
    %s18 = sphi 0, %s16
    %s19 = sphi 0, %s17
    %s20 = sphi 0, %s18
    %s21 = sphi 0, %s19
    %s33 = sphi 0, %s35
    %s36 = sphi 0, %s33
    %s37 = sphi 0, %s36
    %s53 = sphi 0, %s37
    %s59 = sphi 0, %s61
    %s62 = sphi 0, %s59
    %s63 = sphi 0, %s62
    %s79 = sphi 0, %s63
    %s83 = sphi 0, %s83
    %s85 = sphi 0, %s83
    %s86 = sphi 0, %s85
    %s100 = sphi 0, %s86
    %s108 = sphi 0, %s110
    %s111 = sphi 0, %s108
    %s112 = sphi 0, %s111
    %s128 = sphi 0, %s112
  $region4: #{_lambda_.9} parent=0 // loop_header_branch
    %12 = sbr.rel (%p10) target = $region8
  $region5: #{_lambda_.9} parent=0 // loop_body
    %s14 = ssub.s32 %s9, 1
    %s15 = ssub.s32 %s9, 2
    %s22 = sadd.s32 1, %s17
    %p23 = scmp.ge.s32.totalorder %s22, 2
    %s24 = scalar_select %p23, 0, %s22
    %s25 = sadd.s32 1, %s16
    %s26 = scalar_select %p23, %s25, %s16
    %p27 = scmp.ge.s32.totalorder %s26, 4
    %s28 = scalar_select %p27, 0, %s26
    %s29 = ssub.s32 %s16, %s28
    %s30 = ssub.s32 %s17, %s24
    %s31 = sor.u32 %s29, %s30
    %p32 = scmp.eq.s32.totalorder %s31, 0
    %s34 = sadd.s32 %s33, 1
    %s35 = scalar_select %p32, %s33, %s34
    %p38 = pneg %p32
    %p39 = scmp.eq.s32.totalorder %s9, 7
    %p40 = por %p38, %p39
    %p41 = scmp.ne.s32.totalorder %s33, %s36
    %p42 = scmp.eq.s32.totalorder %s9, 0
    %p43 = por %p41, %p42
    %p44 = scmp.ne.s32.totalorder %s33, %s36
    %p45 = scmp.eq.s32.totalorder %s14, 7
    %p46 = por %p44, %p45
    %p47 = scmp.ne.s32.totalorder %s36, %s37
    %p48 = scmp.eq.s32.totalorder %s14, 0
    %p49 = por %p47, %p48
    %p50 = scmp.ne.s32.totalorder %s36, %s37
    %p51 = scmp.eq.s32.totalorder %s15, 7
    %p52 = por %p50, %p51
    %p54 = scmp.ne.s32.totalorder %s37, %s53
    %p55 = scmp.eq.s32.totalorder %s15, 0
    %p56 = por %p54, %p55
    %s57 = ssub.s32 %s16, %s28
    %p58 = scmp.eq.s32.totalorder %s57, 0
    %s60 = sadd.s32 %s59, 1
    %s61 = scalar_select %p58, %s59, %s60
    %p64 = pneg %p58
    %p65 = scmp.eq.s32.totalorder %s9, 7
    %p66 = por %p64, %p65
    %p67 = scmp.ne.s32.totalorder %s59, %s62
    %p68 = scmp.eq.s32.totalorder %s9, 0
    %p69 = por %p67, %p68
    %p70 = scmp.ne.s32.totalorder %s59, %s62
    %p71 = scmp.eq.s32.totalorder %s14, 7
    %p72 = por %p70, %p71
    %p73 = scmp.ne.s32.totalorder %s62, %s63
    %p74 = scmp.eq.s32.totalorder %s14, 0
    %p75 = por %p73, %p74
    %p76 = scmp.ne.s32.totalorder %s62, %s63
    %p77 = scmp.eq.s32.totalorder %s15, 7
    %p78 = por %p76, %p77
    %p80 = scmp.ne.s32.totalorder %s63, %s79
    %p81 = scmp.eq.s32.totalorder %s15, 0
    %p82 = por %p80, %p81
    %s84 = sadd.s32 %s83, 1
    %p87 = scmp.eq.s32.totalorder %s9, 7
    %p88 = scmp.ne.s32.totalorder %s83, %s85
    %p89 = scmp.eq.s32.totalorder %s9, 0
    %p90 = por %p88, %p89
    %p91 = scmp.ne.s32.totalorder %s83, %s85
    %p92 = scmp.eq.s32.totalorder %s14, 7
    %p93 = por %p91, %p92
    %p94 = scmp.ne.s32.totalorder %s85, %s86
    %p95 = scmp.eq.s32.totalorder %s14, 0
    %p96 = por %p94, %p95
    %p97 = scmp.ne.s32.totalorder %s85, %s86
    %p98 = scmp.eq.s32.totalorder %s15, 7
    %p99 = por %p97, %p98
    %p101 = scmp.ne.s32.totalorder %s86, %s100
    %p102 = scmp.eq.s32.totalorder %s15, 0
    %p103 = por %p101, %p102
    %s104 = ssub.s32 %s16, %s28
    %s105 = ssub.s32 %s17, %s24
    %s106 = sor.u32 %s104, %s105
    %p107 = scmp.eq.s32.totalorder %s106, 0
    %s109 = sadd.s32 %s108, 1
    %s110 = scalar_select %p107, %s108, %s109
    %p113 = pneg %p107
    %p114 = scmp.eq.s32.totalorder %s9, 7
    %p115 = por %p113, %p114
    %p116 = scmp.ne.s32.totalorder %s108, %s111
    %p117 = scmp.eq.s32.totalorder %s9, 0
    %p118 = por %p116, %p117
    %p119 = scmp.ne.s32.totalorder %s108, %s111
    %p120 = scmp.eq.s32.totalorder %s14, 7
    %p121 = por %p119, %p120
    %p122 = scmp.ne.s32.totalorder %s111, %s112
    %p123 = scmp.eq.s32.totalorder %s14, 0
    %p124 = por %p122, %p123
    %p125 = scmp.ne.s32.totalorder %s111, %s112
    %p126 = scmp.eq.s32.totalorder %s15, 7
    %p127 = por %p125, %p126
    %p129 = scmp.ne.s32.totalorder %s112, %s128
    %p130 = scmp.eq.s32.totalorder %s15, 0
    %p131 = por %p129, %p130
    %p132 = scmp.le.s32.totalorder 1, %s9
    %p133 = scmp.lt.s32.totalorder %s9, 9
    %p134 = pnand %p132, %p133
    %p135 = pneg %p134
    // Predicated region
    $region9: #{_lambda_.9} parent=5 // pred_check
      _
    $region10: #{_lambda_.9} parent=5 // pred_check_branch
      %137 = sbr.rel (%p134) target = $region12
    $region11: #{_lambda_.9} parent=5 // pred_region
      %s138 = ssub.s32 %s9, 1
      // Predicated region
      $region13: #{_lambda_.9} parent=11 // pred_check
        %p139 = pneg %p96
      $region14: #{_lambda_.9} parent=11 // pred_check_branch
        %141 = sbr.rel (%p139) target = $region16
      $region15: #{_lambda_.9} parent=11 // pred_region
        _
      $region16: #{_lambda_.9} parent=11 // pred_fallthru
        _
    $region12: #{_lambda_.9} parent=5 // pred_fallthru
      _
    %p142 = scmp.lt.s32.totalorder %s9, 8
    // Predicated region
    $region17: #{_lambda_.9} parent=5 // pred_check
      %p143 = pneg %p142
    $region18: #{_lambda_.9} parent=5 // pred_check_branch
      %145 = sbr.rel (%p143) target = $region20
    $region19: #{_lambda_.9} parent=5 // pred_region
      // Predicated region
      $region21: #{_lambda_.9} parent=19 // pred_check
        %p146 = pneg %p43
      $region22: #{_lambda_.9} parent=19 // pred_check_branch
        %148 = sbr.rel (%p146) target = $region24
      $region23: #{_lambda_.9} parent=19 // pred_region
        %s149 = smul.u32 128, %s17
        %p150 = scmp.lt.s32.totalorder %s16, 3
        %s151 = scalar_select %p150, %s16, 3
        %p152 = scmp.lt.s32.totalorder %s149, 255
        %s153 = scalar_select %p152, %s149, 255
        %s154 = smul.addr %s151, 256
        %s155 = sadd.s32 %s153, %s154
        %s156 = smul.addr %s155, 4
        %s157 = scalar_lea.vmem %s0, %s156
        %s158 = smul.u32 128, %s17
      $region24: #{_lambda_.9} parent=19 // pred_fallthru
        _
      // Predicated region
      $region25: #{_lambda_.9} parent=19 // pred_check
        %p159 = pneg %p69
      $region26: #{_lambda_.9} parent=19 // pred_check_branch
        %161 = sbr.rel (%p159) target = $region28
      $region27: #{_lambda_.9} parent=19 // pred_region
        %p162 = scmp.lt.s32.totalorder %s16, 3
        %s163 = scalar_select %p162, %s16, 3
        %s164 = smul.addr %s163, 4
        %s165 = smul.addr %s164, 4
        %s166 = scalar_lea.vmem %s1, %s165
      $region28: #{_lambda_.9} parent=19 // pred_fallthru
        _
    $region20: #{_lambda_.9} parent=5 // pred_fallthru
      _
    %p167 = scmp.le.s32.totalorder 1, %s9
    %p168 = scmp.lt.s32.totalorder %s9, 9
    %p169 = pnand %p167, %p168
    %p170 = pneg %p169
    // Predicated region
    $region29: #{_lambda_.9} parent=5 // pred_check
      _
    $region30: #{_lambda_.9} parent=5 // pred_check_branch
      %172 = sbr.rel (%p169) target = $region32
    $region31: #{_lambda_.9} parent=5 // pred_region
      %s173 = ssub.s32 %s9, 1
      %s174 = smul.u32 128, %s19
      %p175 = scmp.lt.s32.totalorder %s18, 3
      %s176 = scalar_select %p175, %s18, 3
      %p177 = scmp.lt.s32.totalorder %s174, 255
      %s178 = scalar_select %p177, %s174, 255
      %s179 = smul.addr %s176, 256
      %s180 = sadd.s32 %s178, %s179
      %s181 = smul.addr %s180, 4
      %s182 = scalar_lea.vmem %s0, %s181
      %p183 = pneg %p49
      %p184 = pneg %p46
      %p185 = scmp.lt.s32.totalorder %s18, 3
      %s186 = scalar_select %p185, %s18, 3
      %s187 = smul.addr %s186, 4
      %s188 = smul.addr %s187, 4
      %s189 = scalar_lea.vmem %s1, %s188
      %p190 = pneg %p75
      %p191 = pneg %p72
      %p192 = pneg %p96
      %p193 = pneg %p93
      %p194 = pneg %p124
      %p195 = pneg %p121
      %s196 = smul.u32 128, %s19
      %p197 = scmp.lt.s32.totalorder %s18, 3
      %s198 = scalar_select %p197, %s18, 3
      %p199 = scmp.lt.s32.totalorder %s196, 255
      %s200 = scalar_select %p199, %s196, 255
      %s201 = smul.addr %s198, 256
      %s202 = sadd.s32 %s200, %s201
      %s203 = smul.addr %s202, 4
      %s204 = scalar_lea.vmem %s3, %s203
      %s205 = smul.u32 128, %s19
      %p206 = scmp.lt.s32.totalorder %s18, 3
      %s207 = scalar_select %p206, %s18, 3
      %p208 = scmp.lt.s32.totalorder %s205, 255
      %s209 = scalar_select %p208, %s205, 255
      %s210 = smul.addr %s207, 256
      %s211 = sadd.s32 %s209, %s210
      %s212 = smul.addr %s211, 4
      %s213 = scalar_lea.vmem %s0, %s212
      %s214 = smul.u32 128, %s19
      %p215 = scmp.lt.s32.totalorder %s18, 3
      %s216 = scalar_select %p215, %s18, 3
      %s217 = smul.addr %s216, 4
      %s218 = smul.addr %s217, 4
      %s219 = scalar_lea.vmem %s1, %s218
      %s220 = smul.u32 128, %s19
      %p221 = scmp.lt.s32.totalorder %s18, 3
      %s222 = scalar_select %p221, %s18, 3
      %p223 = scmp.lt.s32.totalorder %s220, 255
      %s224 = scalar_select %p223, %s220, 255
      %s225 = smul.addr %s222, 256
      %s226 = sadd.s32 %s224, %s225
      %s227 = smul.addr %s226, 4
      %s228 = scalar_lea.vmem %s3, %s227
      %s229 = smul.u32 128, %s19
      %v231 = vld [vmem:[%s213] sm:$0xf]
      %v232 = vld [vmem:[%s213 + $0x4] sm:$0xf]
      %v233 = vld [vmem:[%s213 + $0x8] sm:$0xf]
      %v234 = vld [vmem:[%s213 + $0xc] sm:$0xf]
      %v235 = vld [vmem:[%s213 + $0x10] sm:$0xf]
      %v236 = vld [vmem:[%s213 + $0x14] sm:$0xf]
      %v237 = vld [vmem:[%s213 + $0x18] sm:$0xf]
      %v238 = vld [vmem:[%s213 + $0x1c] sm:$0xf]
      %v239 = vld [vmem:[%s213 + $0x20] sm:$0xf]
      %v240 = vld [vmem:[%s213 + $0x24] sm:$0xf]
      %v241 = vld [vmem:[%s213 + $0x28] sm:$0xf]
      %v242 = vld [vmem:[%s213 + $0x2c] sm:$0xf]
      %v243 = vld [vmem:[%s213 + $0x30] sm:$0xf]
      %v244 = vld [vmem:[%s213 + $0x34] sm:$0xf]
      %v245 = vld [vmem:[%s213 + $0x38] sm:$0xf]
      %v246 = vld [vmem:[%s213 + $0x3c] sm:$0xf]
      %v247 = vld [vmem:[%s213 + $0x40] sm:$0xf]
      %v248 = vld [vmem:[%s213 + $0x44] sm:$0xf]
      %v249 = vld [vmem:[%s213 + $0x48] sm:$0xf]
      %v250 = vld [vmem:[%s213 + $0x4c] sm:$0xf]
      %v251 = vld [vmem:[%s213 + $0x50] sm:$0xf]
      %v252 = vld [vmem:[%s213 + $0x54] sm:$0xf]
      %v253 = vld [vmem:[%s213 + $0x58] sm:$0xf]
      %v254 = vld [vmem:[%s213 + $0x5c] sm:$0xf]
      %v255 = vld [vmem:[%s213 + $0x60] sm:$0xf]
      %v256 = vld [vmem:[%s213 + $0x64] sm:$0xf]
      %v257 = vld [vmem:[%s213 + $0x68] sm:$0xf]
      %v258 = vld [vmem:[%s213 + $0x6c] sm:$0xf]
      %v259 = vld [vmem:[%s213 + $0x70] sm:$0xf]
      %v260 = vld [vmem:[%s213 + $0x74] sm:$0xf]
      %v261 = vld [vmem:[%s213 + $0x78] sm:$0xf]
      %v262 = vld [vmem:[%s213 + $0x7c] sm:$0xf]
      %v263 = vld [vmem:[%s213 + $0x80] sm:$0xf]
      %v264 = vld [vmem:[%s213 + $0x84] sm:$0xf]
      %v265 = vld [vmem:[%s213 + $0x88] sm:$0xf]
      %v266 = vld [vmem:[%s213 + $0x8c] sm:$0xf]
      %v267 = vld [vmem:[%s213 + $0x90] sm:$0xf]
      %v268 = vld [vmem:[%s213 + $0x94] sm:$0xf]
      %v269 = vld [vmem:[%s213 + $0x98] sm:$0xf]
      %v270 = vld [vmem:[%s213 + $0x9c] sm:$0xf]
      %v271 = vld [vmem:[%s213 + $0xa0] sm:$0xf]
      %v272 = vld [vmem:[%s213 + $0xa4] sm:$0xf]
      %v273 = vld [vmem:[%s213 + $0xa8] sm:$0xf]
      %v274 = vld [vmem:[%s213 + $0xac] sm:$0xf]
      %v275 = vld [vmem:[%s213 + $0xb0] sm:$0xf]
      %v276 = vld [vmem:[%s213 + $0xb4] sm:$0xf]
      %v277 = vld [vmem:[%s213 + $0xb8] sm:$0xf]
      %v278 = vld [vmem:[%s213 + $0xbc] sm:$0xf]
      %v279 = vld [vmem:[%s213 + $0xc0] sm:$0xf]
      %v280 = vld [vmem:[%s213 + $0xc4] sm:$0xf]
      %v281 = vld [vmem:[%s213 + $0xc8] sm:$0xf]
      %v282 = vld [vmem:[%s213 + $0xcc] sm:$0xf]
      %v283 = vld [vmem:[%s213 + $0xd0] sm:$0xf]
      %v284 = vld [vmem:[%s213 + $0xd4] sm:$0xf]
      %v285 = vld [vmem:[%s213 + $0xd8] sm:$0xf]
      %v286 = vld [vmem:[%s213 + $0xdc] sm:$0xf]
      %v287 = vld [vmem:[%s213 + $0xe0] sm:$0xf]
      %v288 = vld [vmem:[%s213 + $0xe4] sm:$0xf]
      %v289 = vld [vmem:[%s213 + $0xe8] sm:$0xf]
      %v290 = vld [vmem:[%s213 + $0xec] sm:$0xf]
      %v291 = vld [vmem:[%s213 + $0xf0] sm:$0xf]
      %v292 = vld [vmem:[%s213 + $0xf4] sm:$0xf]
      %v293 = vld [vmem:[%s213 + $0xf8] sm:$0xf]
      %v294 = vld [vmem:[%s213 + $0xfc] sm:$0xf]
      %v295 = vld [vmem:[%s213 + $0x100] sm:$0xf]
      %v296 = vld [vmem:[%s213 + $0x104] sm:$0xf]
      %v297 = vld [vmem:[%s213 + $0x108] sm:$0xf]
      %v298 = vld [vmem:[%s213 + $0x10c] sm:$0xf]
      %v299 = vld [vmem:[%s213 + $0x110] sm:$0xf]
      %v300 = vld [vmem:[%s213 + $0x114] sm:$0xf]
      %v301 = vld [vmem:[%s213 + $0x118] sm:$0xf]
      %v302 = vld [vmem:[%s213 + $0x11c] sm:$0xf]
      %v303 = vld [vmem:[%s213 + $0x120] sm:$0xf]
      %v304 = vld [vmem:[%s213 + $0x124] sm:$0xf]
      %v305 = vld [vmem:[%s213 + $0x128] sm:$0xf]
      %v306 = vld [vmem:[%s213 + $0x12c] sm:$0xf]
      %v307 = vld [vmem:[%s213 + $0x130] sm:$0xf]
      %v308 = vld [vmem:[%s213 + $0x134] sm:$0xf]
      %v309 = vld [vmem:[%s213 + $0x138] sm:$0xf]
      %v310 = vld [vmem:[%s213 + $0x13c] sm:$0xf]
      %v311 = vld [vmem:[%s213 + $0x140] sm:$0xf]
      %v312 = vld [vmem:[%s213 + $0x144] sm:$0xf]
      %v313 = vld [vmem:[%s213 + $0x148] sm:$0xf]
      %v314 = vld [vmem:[%s213 + $0x14c] sm:$0xf]
      %v315 = vld [vmem:[%s213 + $0x150] sm:$0xf]
      %v316 = vld [vmem:[%s213 + $0x154] sm:$0xf]
      %v317 = vld [vmem:[%s213 + $0x158] sm:$0xf]
      %v318 = vld [vmem:[%s213 + $0x15c] sm:$0xf]
      %v319 = vld [vmem:[%s213 + $0x160] sm:$0xf]
      %v320 = vld [vmem:[%s213 + $0x164] sm:$0xf]
      %v321 = vld [vmem:[%s213 + $0x168] sm:$0xf]
      %v322 = vld [vmem:[%s213 + $0x16c] sm:$0xf]
      %v323 = vld [vmem:[%s213 + $0x170] sm:$0xf]
      %v324 = vld [vmem:[%s213 + $0x174] sm:$0xf]
      %v325 = vld [vmem:[%s213 + $0x178] sm:$0xf]
      %v326 = vld [vmem:[%s213 + $0x17c] sm:$0xf]
      %v327 = vld [vmem:[%s213 + $0x180] sm:$0xf]
      %v328 = vld [vmem:[%s213 + $0x184] sm:$0xf]
      %v329 = vld [vmem:[%s213 + $0x188] sm:$0xf]
      %v330 = vld [vmem:[%s213 + $0x18c] sm:$0xf]
      %v331 = vld [vmem:[%s213 + $0x190] sm:$0xf]
      %v332 = vld [vmem:[%s213 + $0x194] sm:$0xf]
      %v333 = vld [vmem:[%s213 + $0x198] sm:$0xf]
      %v334 = vld [vmem:[%s213 + $0x19c] sm:$0xf]
      %v335 = vld [vmem:[%s213 + $0x1a0] sm:$0xf]
      %v336 = vld [vmem:[%s213 + $0x1a4] sm:$0xf]
      %v337 = vld [vmem:[%s213 + $0x1a8] sm:$0xf]
      %v338 = vld [vmem:[%s213 + $0x1ac] sm:$0xf]
      %v339 = vld [vmem:[%s213 + $0x1b0] sm:$0xf]
      %v340 = vld [vmem:[%s213 + $0x1b4] sm:$0xf]
      %v341 = vld [vmem:[%s213 + $0x1b8] sm:$0xf]
      %v342 = vld [vmem:[%s213 + $0x1bc] sm:$0xf]
      %v343 = vld [vmem:[%s213 + $0x1c0] sm:$0xf]
      %v344 = vld [vmem:[%s213 + $0x1c4] sm:$0xf]
      %v345 = vld [vmem:[%s213 + $0x1c8] sm:$0xf]
      %v346 = vld [vmem:[%s213 + $0x1cc] sm:$0xf]
      %v347 = vld [vmem:[%s213 + $0x1d0] sm:$0xf]
      %v348 = vld [vmem:[%s213 + $0x1d4] sm:$0xf]
      %v349 = vld [vmem:[%s213 + $0x1d8] sm:$0xf]
      %v350 = vld [vmem:[%s213 + $0x1dc] sm:$0xf]
      %v351 = vld [vmem:[%s213 + $0x1e0] sm:$0xf]
      %v352 = vld [vmem:[%s213 + $0x1e4] sm:$0xf]
      %v353 = vld [vmem:[%s213 + $0x1e8] sm:$0xf]
      %v354 = vld [vmem:[%s213 + $0x1ec] sm:$0xf]
      %v355 = vld [vmem:[%s213 + $0x1f0] sm:$0xf]
      %v356 = vld [vmem:[%s213 + $0x1f4] sm:$0xf]
      %v357 = vld [vmem:[%s213 + $0x1f8] sm:$0xf]
      %v358 = vld [vmem:[%s213 + $0x1fc] sm:$0xf]
      %v359 = vld [vmem:[%s219] sm:$0xf]
      %v360 = vld [vmem:[%s219 + $0x4] sm:$0xf]
      %v361 = vld [vmem:[%s219 + $0x8] sm:$0xf]
      %v362 = vld [vmem:[%s219 + $0xc] sm:$0xf]
      %v363 = vld [vmem:[%s2] sm:$0x1]
      %v365 = vlaneseq
      %v366 = vshrl.u32 %v365, 7
      %v367 = vsub.s32 0, %v366
      %v368 = vrot.slane %v363, %v367
      %v498 = vunpack.c.l.b16 %v231
      %v499 = vunpack.c.l.b16 %v232
      %v500 = vunpack.c.l.b16 %v233
      %v501 = vunpack.c.l.b16 %v234
      %v502 = vunpack.c.l.b16 %v235
      %v503 = vunpack.c.l.b16 %v236
      %v504 = vunpack.c.l.b16 %v237
      %v505 = vunpack.c.l.b16 %v238
      %v506 = vunpack.c.l.b16 %v239
      %v507 = vunpack.c.l.b16 %v240
      %v508 = vunpack.c.l.b16 %v241
      %v509 = vunpack.c.l.b16 %v242
      %v510 = vunpack.c.l.b16 %v243
      %v511 = vunpack.c.l.b16 %v244
      %v512 = vunpack.c.l.b16 %v245
      %v513 = vunpack.c.l.b16 %v246
      %v514 = vunpack.c.l.b16 %v247
      %v515 = vunpack.c.l.b16 %v248
      %v516 = vunpack.c.l.b16 %v249
      %v517 = vunpack.c.l.b16 %v250
      %v518 = vunpack.c.l.b16 %v251
      %v519 = vunpack.c.l.b16 %v252
      %v520 = vunpack.c.l.b16 %v253
      %v521 = vunpack.c.l.b16 %v254
      %v522 = vunpack.c.l.b16 %v255
      %v523 = vunpack.c.l.b16 %v256
      %v524 = vunpack.c.l.b16 %v257
      %v525 = vunpack.c.l.b16 %v258
      %v526 = vunpack.c.l.b16 %v259
      %v527 = vunpack.c.l.b16 %v260
      %v528 = vunpack.c.l.b16 %v261
      %v529 = vunpack.c.l.b16 %v262
      %v530 = vunpack.c.l.b16 %v263
      %v531 = vunpack.c.l.b16 %v264
      %v532 = vunpack.c.l.b16 %v265
      %v533 = vunpack.c.l.b16 %v266
      %v534 = vunpack.c.l.b16 %v267
      %v535 = vunpack.c.l.b16 %v268
      %v536 = vunpack.c.l.b16 %v269
      %v537 = vunpack.c.l.b16 %v270
      %v538 = vunpack.c.l.b16 %v271
      %v539 = vunpack.c.l.b16 %v272
      %v540 = vunpack.c.l.b16 %v273
      %v541 = vunpack.c.l.b16 %v274
      %v542 = vunpack.c.l.b16 %v275
      %v543 = vunpack.c.l.b16 %v276
      %v544 = vunpack.c.l.b16 %v277
      %v545 = vunpack.c.l.b16 %v278
      %v546 = vunpack.c.l.b16 %v279
      %v547 = vunpack.c.l.b16 %v280
      %v548 = vunpack.c.l.b16 %v281
      %v549 = vunpack.c.l.b16 %v282
      %v550 = vunpack.c.l.b16 %v283
      %v551 = vunpack.c.l.b16 %v284
      %v552 = vunpack.c.l.b16 %v285
      %v553 = vunpack.c.l.b16 %v286
      %v554 = vunpack.c.l.b16 %v287
      %v555 = vunpack.c.l.b16 %v288
      %v556 = vunpack.c.l.b16 %v289
      %v557 = vunpack.c.l.b16 %v290
      %v558 = vunpack.c.l.b16 %v291
      %v559 = vunpack.c.l.b16 %v292
      %v560 = vunpack.c.l.b16 %v293
      %v561 = vunpack.c.l.b16 %v294
      %v562 = vunpack.c.l.b16 %v295
      %v563 = vunpack.c.l.b16 %v296
      %v564 = vunpack.c.l.b16 %v297
      %v565 = vunpack.c.l.b16 %v298
      %v566 = vunpack.c.l.b16 %v299
      %v567 = vunpack.c.l.b16 %v300
      %v568 = vunpack.c.l.b16 %v301
      %v569 = vunpack.c.l.b16 %v302
      %v570 = vunpack.c.l.b16 %v303
      %v571 = vunpack.c.l.b16 %v304
      %v572 = vunpack.c.l.b16 %v305
      %v573 = vunpack.c.l.b16 %v306
      %v574 = vunpack.c.l.b16 %v307
      %v575 = vunpack.c.l.b16 %v308
      %v576 = vunpack.c.l.b16 %v309
      %v577 = vunpack.c.l.b16 %v310
      %v578 = vunpack.c.l.b16 %v311
      %v579 = vunpack.c.l.b16 %v312
      %v580 = vunpack.c.l.b16 %v313
      %v581 = vunpack.c.l.b16 %v314
      %v582 = vunpack.c.l.b16 %v315
      %v583 = vunpack.c.l.b16 %v316
      %v584 = vunpack.c.l.b16 %v317
      %v585 = vunpack.c.l.b16 %v318
      %v586 = vunpack.c.l.b16 %v319
      %v587 = vunpack.c.l.b16 %v320
      %v588 = vunpack.c.l.b16 %v321
      %v589 = vunpack.c.l.b16 %v322
      %v590 = vunpack.c.l.b16 %v323
      %v591 = vunpack.c.l.b16 %v324
      %v592 = vunpack.c.l.b16 %v325
      %v593 = vunpack.c.l.b16 %v326
      %v594 = vunpack.c.l.b16 %v327
      %v595 = vunpack.c.l.b16 %v328
      %v596 = vunpack.c.l.b16 %v329
      %v597 = vunpack.c.l.b16 %v330
      %v598 = vunpack.c.l.b16 %v331
      %v599 = vunpack.c.l.b16 %v332
      %v600 = vunpack.c.l.b16 %v333
      %v601 = vunpack.c.l.b16 %v334
      %v602 = vunpack.c.l.b16 %v335
      %v603 = vunpack.c.l.b16 %v336
      %v604 = vunpack.c.l.b16 %v337
      %v605 = vunpack.c.l.b16 %v338
      %v606 = vunpack.c.l.b16 %v339
      %v607 = vunpack.c.l.b16 %v340
      %v608 = vunpack.c.l.b16 %v341
      %v609 = vunpack.c.l.b16 %v342
      %v610 = vunpack.c.l.b16 %v343
      %v611 = vunpack.c.l.b16 %v344
      %v612 = vunpack.c.l.b16 %v345
      %v613 = vunpack.c.l.b16 %v346
      %v614 = vunpack.c.l.b16 %v347
      %v615 = vunpack.c.l.b16 %v348
      %v616 = vunpack.c.l.b16 %v349
      %v617 = vunpack.c.l.b16 %v350
      %v618 = vunpack.c.l.b16 %v351
      %v619 = vunpack.c.l.b16 %v352
      %v620 = vunpack.c.l.b16 %v353
      %v621 = vunpack.c.l.b16 %v354
      %v622 = vunpack.c.l.b16 %v355
      %v623 = vunpack.c.l.b16 %v356
      %v624 = vunpack.c.l.b16 %v357
      %v625 = vunpack.c.l.b16 %v358
      %v626 = vpack.c.b16 %v499, %v498
      %v627 = vpack.c.b16 %v501, %v500
      %v628 = vpack.c.b16 %v503, %v502
      %v629 = vpack.c.b16 %v505, %v504
      %v630 = vpack.c.b16 %v507, %v506
      %v631 = vpack.c.b16 %v509, %v508
      %v632 = vpack.c.b16 %v511, %v510
      %v633 = vpack.c.b16 %v513, %v512
      %v634 = vpack.c.b16 %v515, %v514
      %v635 = vpack.c.b16 %v517, %v516
      %v636 = vpack.c.b16 %v519, %v518
      %v637 = vpack.c.b16 %v521, %v520
      %v638 = vpack.c.b16 %v523, %v522
      %v639 = vpack.c.b16 %v525, %v524
      %v640 = vpack.c.b16 %v527, %v526
      %v641 = vpack.c.b16 %v529, %v528
      %v642 = vpack.c.b16 %v531, %v530
      %v643 = vpack.c.b16 %v533, %v532
      %v644 = vpack.c.b16 %v535, %v534
      %v645 = vpack.c.b16 %v537, %v536
      %v646 = vpack.c.b16 %v539, %v538
      %v647 = vpack.c.b16 %v541, %v540
      %v648 = vpack.c.b16 %v543, %v542
      %v649 = vpack.c.b16 %v545, %v544
      %v650 = vpack.c.b16 %v547, %v546
      %v651 = vpack.c.b16 %v549, %v548
      %v652 = vpack.c.b16 %v551, %v550
      %v653 = vpack.c.b16 %v553, %v552
      %v654 = vpack.c.b16 %v555, %v554
      %v655 = vpack.c.b16 %v557, %v556
      %v656 = vpack.c.b16 %v559, %v558
      %v657 = vpack.c.b16 %v561, %v560
      %v658 = vpack.c.b16 %v563, %v562
      %v659 = vpack.c.b16 %v565, %v564
      %v660 = vpack.c.b16 %v567, %v566
      %v661 = vpack.c.b16 %v569, %v568
      %v662 = vpack.c.b16 %v571, %v570
      %v663 = vpack.c.b16 %v573, %v572
      %v664 = vpack.c.b16 %v575, %v574
      %v665 = vpack.c.b16 %v577, %v576
      %v666 = vpack.c.b16 %v579, %v578
      %v667 = vpack.c.b16 %v581, %v580
      %v668 = vpack.c.b16 %v583, %v582
      %v669 = vpack.c.b16 %v585, %v584
      %v670 = vpack.c.b16 %v587, %v586
      %v671 = vpack.c.b16 %v589, %v588
      %v672 = vpack.c.b16 %v591, %v590
      %v673 = vpack.c.b16 %v593, %v592
      %v674 = vpack.c.b16 %v595, %v594
      %v675 = vpack.c.b16 %v597, %v596
      %v676 = vpack.c.b16 %v599, %v598
      %v677 = vpack.c.b16 %v601, %v600
      %v678 = vpack.c.b16 %v603, %v602
      %v679 = vpack.c.b16 %v605, %v604
      %v680 = vpack.c.b16 %v607, %v606
      %v681 = vpack.c.b16 %v609, %v608
      %v682 = vpack.c.b16 %v611, %v610
      %v683 = vpack.c.b16 %v613, %v612
      %v684 = vpack.c.b16 %v615, %v614
      %v685 = vpack.c.b16 %v617, %v616
      %v686 = vpack.c.b16 %v619, %v618
      %v687 = vpack.c.b16 %v621, %v620
      %v688 = vpack.c.b16 %v623, %v622
      %v689 = vpack.c.b16 %v625, %v624
      %v694 = vunpack.c.l.b16 %v359
      %v695 = vunpack.c.l.b16 %v360
      %v696 = vunpack.c.l.b16 %v361
      %v697 = vunpack.c.l.b16 %v362
      %v698 = vpack.c.b16 %v695, %v694
      %v699 = vpack.c.b16 %v697, %v696
      %vm702 = vcmask 261120
      %v704 = vsel %vm702, %v626, 0
      %v707 = vsel %vm702, %v627, 0
      %v710 = vsel %vm702, %v628, 0
      %v713 = vsel %vm702, %v629, 0
      %v716 = vsel %vm702, %v630, 0
      %v719 = vsel %vm702, %v631, 0
      %v722 = vsel %vm702, %v632, 0
      %v725 = vsel %vm702, %v633, 0
      %v728 = vsel %vm702, %v634, 0
      %v731 = vsel %vm702, %v635, 0
      %v734 = vsel %vm702, %v636, 0
      %v737 = vsel %vm702, %v637, 0
      %v740 = vsel %vm702, %v638, 0
      %v743 = vsel %vm702, %v639, 0
      %v746 = vsel %vm702, %v640, 0
      %v749 = vsel %vm702, %v641, 0
      %v752 = vsel %vm702, %v642, 0
      %v755 = vsel %vm702, %v643, 0
      %v758 = vsel %vm702, %v644, 0
      %v761 = vsel %vm702, %v645, 0
      %v764 = vsel %vm702, %v646, 0
      %v767 = vsel %vm702, %v647, 0
      %v770 = vsel %vm702, %v648, 0
      %v773 = vsel %vm702, %v649, 0
      %v776 = vsel %vm702, %v650, 0
      %v779 = vsel %vm702, %v651, 0
      %v782 = vsel %vm702, %v652, 0
      %v785 = vsel %vm702, %v653, 0
      %v788 = vsel %vm702, %v654, 0
      %v791 = vsel %vm702, %v655, 0
      %v794 = vsel %vm702, %v656, 0
      %v797 = vsel %vm702, %v657, 0
      %v800 = vsel %vm702, %v658, 0
      %v803 = vsel %vm702, %v659, 0
      %v806 = vsel %vm702, %v660, 0
      %v809 = vsel %vm702, %v661, 0
      %v812 = vsel %vm702, %v662, 0
      %v815 = vsel %vm702, %v663, 0
      %v818 = vsel %vm702, %v664, 0
      %v821 = vsel %vm702, %v665, 0
      %v824 = vsel %vm702, %v666, 0
      %v827 = vsel %vm702, %v667, 0
      %v830 = vsel %vm702, %v668, 0
      %v833 = vsel %vm702, %v669, 0
      %v836 = vsel %vm702, %v670, 0
      %v839 = vsel %vm702, %v671, 0
      %v842 = vsel %vm702, %v672, 0
      %v845 = vsel %vm702, %v673, 0
      %v848 = vsel %vm702, %v674, 0
      %v851 = vsel %vm702, %v675, 0
      %v854 = vsel %vm702, %v676, 0
      %v857 = vsel %vm702, %v677, 0
      %v860 = vsel %vm702, %v678, 0
      %v863 = vsel %vm702, %v679, 0
      %v866 = vsel %vm702, %v680, 0
      %v869 = vsel %vm702, %v681, 0
      %v872 = vsel %vm702, %v682, 0
      %v875 = vsel %vm702, %v683, 0
      %v878 = vsel %vm702, %v684, 0
      %v881 = vsel %vm702, %v685, 0
      %v884 = vsel %vm702, %v686, 0
      %v887 = vsel %vm702, %v687, 0
      %v890 = vsel %vm702, %v688, 0
      %v893 = vsel %vm702, %v689, 0
      %895 = vmatprep.subr.bf16.mxu0 0
      %896 = vmatpush1.bf16.msra.mxu0 %v698
      %897 = vmatprep.subr.bf16.mxu0 0
      %898 = vmatpush1.bf16.msra.mxu0 %v699
      %899 = vmatprep.subr.bf16.mxu0 0
      %900 = vmatpush1.bf16.msra.mxu0 0
      %901 = vmatprep.subr.bf16.mxu0 0
      %902 = vmatpush1.bf16.msra.mxu0 0
      %903 = vmatprep.subr.bf16.mxu0 0
      %904 = vmatpush1.bf16.msra.mxu0 0
      %905 = vmatprep.subr.bf16.mxu0 0
      %906 = vmatpush1.bf16.msra.mxu0 0
      %907 = vmatprep.subr.bf16.mxu0 0
      %908 = vmatpush1.bf16.msra.mxu0 0
      %909 = vmatprep.subr.bf16.mxu0 0
      %910 = vmatpush1.bf16.msra.mxu0 0
      %911 = vmatprep.subr.bf16.mxu0 0
      %912 = vmatpush1.bf16.msra.mxu0 0
      %913 = vmatprep.subr.bf16.mxu0 0
      %914 = vmatpush1.bf16.msra.mxu0 0
      %915 = vmatprep.subr.bf16.mxu0 0
      %916 = vmatpush1.bf16.msra.mxu0 0
      %917 = vmatprep.subr.bf16.mxu0 0
      %918 = vmatpush1.bf16.msra.mxu0 0
      %919 = vmatprep.subr.bf16.mxu0 0
      %920 = vmatpush1.bf16.msra.mxu0 0
      %921 = vmatprep.subr.bf16.mxu0 0
      %922 = vmatpush1.bf16.msra.mxu0 0
      %923 = vmatprep.subr.bf16.mxu0 0
      %924 = vmatpush1.bf16.msra.mxu0 0
      %925 = vmatprep.subr.bf16.mxu0 0
      %926 = vmatpush1.bf16.msra.mxu0 0
      %927 = vmatprep.mubr.bf16.mxu0 0
      %928 = vmatmul.mubr.bf16.gmra.mrb[0].mxu0 %v704
      %v929 = vpop.f32.mrb[0].mxu0
      %v930 = vadd.f32 %v368, %v929
      %v931 = vpop.f32.mrb[0].mxu0
      %v932 = vpop.f32.mrb[0].mxu0
      %v933 = vadd.f32 %v368, %v932
      %v934 = vpop.f32.mrb[0].mxu0
      %935 = vmatprep.mubr.bf16.mxu0 0
      %936 = vmatmul.mubr.bf16.gmra.mrb[0].mxu0 %v707
      %v937 = vpop.f32.mrb[0].mxu0
      %v938 = vadd.f32 %v368, %v937
      %v939 = vpop.f32.mrb[0].mxu0
      %v940 = vpop.f32.mrb[0].mxu0
      %v941 = vadd.f32 %v368, %v940
      %v942 = vpop.f32.mrb[0].mxu0
      %943 = vmatprep.mubr.bf16.mxu0 0
      %944 = vmatmul.mubr.bf16.gmra.mrb[0].mxu0 %v710
      %v945 = vpop.f32.mrb[0].mxu0
      %v946 = vadd.f32 %v368, %v945
      %v947 = vpop.f32.mrb[0].mxu0
      %v948 = vpop.f32.mrb[0].mxu0
      %v949 = vadd.f32 %v368, %v948
      %v950 = vpop.f32.mrb[0].mxu0
      %951 = vmatprep.mubr.bf16.mxu0 0
      %952 = vmatmul.mubr.bf16.gmra.mrb[0].mxu0 %v713
      %v953 = vpop.f32.mrb[0].mxu0
      %v954 = vadd.f32 %v368, %v953
      %v955 = vpop.f32.mrb[0].mxu0
      %v956 = vpop.f32.mrb[0].mxu0
      %v957 = vadd.f32 %v368, %v956
      %v958 = vpop.f32.mrb[0].mxu0
      %959 = vmatprep.mubr.bf16.mxu0 0
      %960 = vmatmul.mubr.bf16.gmra.mrb[0].mxu0 %v716
      %v961 = vpop.f32.mrb[0].mxu0
      %v962 = vadd.f32 %v368, %v961
      %v963 = vpop.f32.mrb[0].mxu0
      %v964 = vpop.f32.mrb[0].mxu0
      %v965 = vadd.f32 %v368, %v964
      %v966 = vpop.f32.mrb[0].mxu0
      %967 = vmatprep.mubr.bf16.mxu0 0
      %968 = vmatmul.mubr.bf16.gmra.mrb[0].mxu0 %v719
      %v969 = vpop.f32.mrb[0].mxu0
      %v970 = vadd.f32 %v368, %v969
      %v971 = vpop.f32.mrb[0].mxu0
      %v972 = vpop.f32.mrb[0].mxu0
      %v973 = vadd.f32 %v368, %v972
      %v974 = vpop.f32.mrb[0].mxu0
      %975 = vmatprep.mubr.bf16.mxu0 0
      %976 = vmatmul.mubr.bf16.gmra.mrb[0].mxu0 %v722
      %v977 = vpop.f32.mrb[0].mxu0
      %v978 = vadd.f32 %v368, %v977
      %v979 = vpop.f32.mrb[0].mxu0
      %v980 = vpop.f32.mrb[0].mxu0
      %v981 = vadd.f32 %v368, %v980
      %v982 = vpop.f32.mrb[0].mxu0
      %983 = vmatprep.mubr.bf16.mxu0 0
      %984 = vmatmul.mubr.bf16.gmra.mrb[0].mxu0 %v725
      %v985 = vpop.f32.mrb[0].mxu0
      %v986 = vadd.f32 %v368, %v985
      %v987 = vpop.f32.mrb[0].mxu0
      %v988 = vpop.f32.mrb[0].mxu0
      %v989 = vadd.f32 %v368, %v988
      %v990 = vpop.f32.mrb[0].mxu0
      %991 = vmatprep.mubr.bf16.mxu0 0
      %992 = vmatmul.mubr.bf16.gmra.mrb[0].mxu0 %v728
      %v993 = vpop.f32.mrb[0].mxu0
      %v994 = vadd.f32 %v368, %v993
      %v995 = vpop.f32.mrb[0].mxu0
      %v996 = vpop.f32.mrb[0].mxu0
      %v997 = vadd.f32 %v368, %v996
      %v998 = vpop.f32.mrb[0].mxu0
      %999 = vmatprep.mubr.bf16.mxu0 0
      %1000 = vmatmul.mubr.bf16.gmra.mrb[0].mxu0 %v731
      %v1001 = vpop.f32.mrb[0].mxu0
      %v1002 = vadd.f32 %v368, %v1001
      %v1003 = vpop.f32.mrb[0].mxu0
      %v1004 = vpop.f32.mrb[0].mxu0
      %v1005 = vadd.f32 %v368, %v1004
      %v1006 = vpop.f32.mrb[0].mxu0
      %1007 = vmatprep.mubr.bf16.mxu0 0
      %1008 = vmatmul.mubr.bf16.gmra.mrb[0].mxu0 %v734
      %v1009 = vpop.f32.mrb[0].mxu0
      %v1010 = vadd.f32 %v368, %v1009
      %v1011 = vpop.f32.mrb[0].mxu0
      %v1012 = vpop.f32.mrb[0].mxu0
      %v1013 = vadd.f32 %v368, %v1012
      %v1014 = vpop.f32.mrb[0].mxu0
      %1015 = vmatprep.mubr.bf16.mxu0 0
      %1016 = vmatmul.mubr.bf16.gmra.mrb[0].mxu0 %v737
      %v1017 = vpop.f32.mrb[0].mxu0
      %v1018 = vadd.f32 %v368, %v1017
      %v1019 = vpop.f32.mrb[0].mxu0
      %v1020 = vpop.f32.mrb[0].mxu0
      %v1021 = vadd.f32 %v368, %v1020
      %v1022 = vpop.f32.mrb[0].mxu0
      %1023 = vmatprep.mubr.bf16.mxu0 0
      %1024 = vmatmul.mubr.bf16.gmra.mrb[0].mxu0 %v740
      %v1025 = vpop.f32.mrb[0].mxu0
      %v1026 = vadd.f32 %v368, %v1025
      %v1027 = vpop.f32.mrb[0].mxu0
      %v1028 = vpop.f32.mrb[0].mxu0
      %v1029 = vadd.f32 %v368, %v1028
      %v1030 = vpop.f32.mrb[0].mxu0
      %1031 = vmatprep.mubr.bf16.mxu0 0
      %1032 = vmatmul.mubr.bf16.gmra.mrb[0].mxu0 %v743
      %v1033 = vpop.f32.mrb[0].mxu0
      %v1034 = vadd.f32 %v368, %v1033
      %v1035 = vpop.f32.mrb[0].mxu0
      %v1036 = vpop.f32.mrb[0].mxu0
      %v1037 = vadd.f32 %v368, %v1036
      %v1038 = vpop.f32.mrb[0].mxu0
      %1039 = vmatprep.mubr.bf16.mxu0 0
      %1040 = vmatmul.mubr.bf16.gmra.mrb[0].mxu0 %v746
      %v1041 = vpop.f32.mrb[0].mxu0
      %v1042 = vadd.f32 %v368, %v1041
      %v1043 = vpop.f32.mrb[0].mxu0
      %v1044 = vpop.f32.mrb[0].mxu0
      %v1045 = vadd.f32 %v368, %v1044
      %v1046 = vpop.f32.mrb[0].mxu0
      %1047 = vmatprep.mubr.bf16.mxu0 0
      %1048 = vmatmul.mubr.bf16.gmra.mrb[0].mxu0 %v749
      %v1049 = vpop.f32.mrb[0].mxu0
      %v1050 = vadd.f32 %v368, %v1049
      %v1051 = vpop.f32.mrb[0].mxu0
      %v1052 = vpop.f32.mrb[0].mxu0
      %v1053 = vadd.f32 %v368, %v1052
      %v1054 = vpop.f32.mrb[0].mxu0
      %1055 = vmatprep.mubr.bf16.mxu0 0
      %1056 = vmatmul.mubr.bf16.gmra.mrb[0].mxu0 %v752
      %v1057 = vpop.f32.mrb[0].mxu0
      %v1058 = vadd.f32 %v368, %v1057
      %v1059 = vpop.f32.mrb[0].mxu0
      %v1060 = vpop.f32.mrb[0].mxu0
      %v1061 = vadd.f32 %v368, %v1060
      %v1062 = vpop.f32.mrb[0].mxu0
      %1063 = vmatprep.mubr.bf16.mxu0 0
      %1064 = vmatmul.mubr.bf16.gmra.mrb[0].mxu0 %v755
      %v1065 = vpop.f32.mrb[0].mxu0
      %v1066 = vadd.f32 %v368, %v1065
      %v1067 = vpop.f32.mrb[0].mxu0
      %v1068 = vpop.f32.mrb[0].mxu0
      %v1069 = vadd.f32 %v368, %v1068
      %v1070 = vpop.f32.mrb[0].mxu0
      %1071 = vmatprep.mubr.bf16.mxu0 0
      %1072 = vmatmul.mubr.bf16.gmra.mrb[0].mxu0 %v758
      %v1073 = vpop.f32.mrb[0].mxu0
      %v1074 = vadd.f32 %v368, %v1073
      %v1075 = vpop.f32.mrb[0].mxu0
      %v1076 = vpop.f32.mrb[0].mxu0
      %v1077 = vadd.f32 %v368, %v1076
      %v1078 = vpop.f32.mrb[0].mxu0
      %1079 = vmatprep.mubr.bf16.mxu0 0
      %1080 = vmatmul.mubr.bf16.gmra.mrb[0].mxu0 %v761
      %v1081 = vpop.f32.mrb[0].mxu0
      %v1082 = vadd.f32 %v368, %v1081
      %v1083 = vpop.f32.mrb[0].mxu0
      %v1084 = vpop.f32.mrb[0].mxu0
      %v1085 = vadd.f32 %v368, %v1084
      %v1086 = vpop.f32.mrb[0].mxu0
      %1087 = vmatprep.mubr.bf16.mxu0 0
      %1088 = vmatmul.mubr.bf16.gmra.mrb[0].mxu0 %v764
      %v1089 = vpop.f32.mrb[0].mxu0
      %v1090 = vadd.f32 %v368, %v1089
      %v1091 = vpop.f32.mrb[0].mxu0
      %v1092 = vpop.f32.mrb[0].mxu0
      %v1093 = vadd.f32 %v368, %v1092
      %v1094 = vpop.f32.mrb[0].mxu0
      %1095 = vmatprep.mubr.bf16.mxu0 0
      %1096 = vmatmul.mubr.bf16.gmra.mrb[0].mxu0 %v767
      %v1097 = vpop.f32.mrb[0].mxu0
      %v1098 = vadd.f32 %v368, %v1097
      %v1099 = vpop.f32.mrb[0].mxu0
      %v1100 = vpop.f32.mrb[0].mxu0
      %v1101 = vadd.f32 %v368, %v1100
      %v1102 = vpop.f32.mrb[0].mxu0
      %1103 = vmatprep.mubr.bf16.mxu0 0
      %1104 = vmatmul.mubr.bf16.gmra.mrb[0].mxu0 %v770
      %v1105 = vpop.f32.mrb[0].mxu0
      %v1106 = vadd.f32 %v368, %v1105
      %v1107 = vpop.f32.mrb[0].mxu0
      %v1108 = vpop.f32.mrb[0].mxu0
      %v1109 = vadd.f32 %v368, %v1108
      %v1110 = vpop.f32.mrb[0].mxu0
      %1111 = vmatprep.mubr.bf16.mxu0 0
      %1112 = vmatmul.mubr.bf16.gmra.mrb[0].mxu0 %v773
      %v1113 = vpop.f32.mrb[0].mxu0
      %v1114 = vadd.f32 %v368, %v1113
      %v1115 = vpop.f32.mrb[0].mxu0
      %v1116 = vpop.f32.mrb[0].mxu0
      %v1117 = vadd.f32 %v368, %v1116
      %v1118 = vpop.f32.mrb[0].mxu0
      %1119 = vmatprep.mubr.bf16.mxu0 0
      %1120 = vmatmul.mubr.bf16.gmra.mrb[0].mxu0 %v776
      %v1121 = vpop.f32.mrb[0].mxu0
      %v1122 = vadd.f32 %v368, %v1121
      %v1123 = vpop.f32.mrb[0].mxu0
      %v1124 = vpop.f32.mrb[0].mxu0
      %v1125 = vadd.f32 %v368, %v1124
      %v1126 = vpop.f32.mrb[0].mxu0
      %1127 = vmatprep.mubr.bf16.mxu0 0
      %1128 = vmatmul.mubr.bf16.gmra.mrb[0].mxu0 %v779
      %v1129 = vpop.f32.mrb[0].mxu0
      %v1130 = vadd.f32 %v368, %v1129
      %v1131 = vpop.f32.mrb[0].mxu0
      %v1132 = vpop.f32.mrb[0].mxu0
      %v1133 = vadd.f32 %v368, %v1132
      %v1134 = vpop.f32.mrb[0].mxu0
      %1135 = vmatprep.mubr.bf16.mxu0 0
      %1136 = vmatmul.mubr.bf16.gmra.mrb[0].mxu0 %v782
      %v1137 = vpop.f32.mrb[0].mxu0
      %v1138 = vadd.f32 %v368, %v1137
      %v1139 = vpop.f32.mrb[0].mxu0
      %v1140 = vpop.f32.mrb[0].mxu0
      %v1141 = vadd.f32 %v368, %v1140
      %v1142 = vpop.f32.mrb[0].mxu0
      %1143 = vmatprep.mubr.bf16.mxu0 0
      %1144 = vmatmul.mubr.bf16.gmra.mrb[0].mxu0 %v785
      %v1145 = vpop.f32.mrb[0].mxu0
      %v1146 = vadd.f32 %v368, %v1145
      %v1147 = vpop.f32.mrb[0].mxu0
      %v1148 = vpop.f32.mrb[0].mxu0
      %v1149 = vadd.f32 %v368, %v1148
      %v1150 = vpop.f32.mrb[0].mxu0
      %1151 = vmatprep.mubr.bf16.mxu0 0
      %1152 = vmatmul.mubr.bf16.gmra.mrb[0].mxu0 %v788
      %v1153 = vpop.f32.mrb[0].mxu0
      %v1154 = vadd.f32 %v368, %v1153
      %v1155 = vpop.f32.mrb[0].mxu0
      %v1156 = vpop.f32.mrb[0].mxu0
      %v1157 = vadd.f32 %v368, %v1156
      %v1158 = vpop.f32.mrb[0].mxu0
      %1159 = vmatprep.mubr.bf16.mxu0 0
      %1160 = vmatmul.mubr.bf16.gmra.mrb[0].mxu0 %v791
      %v1161 = vpop.f32.mrb[0].mxu0
      %v1162 = vadd.f32 %v368, %v1161
      %v1163 = vpop.f32.mrb[0].mxu0
      %v1164 = vpop.f32.mrb[0].mxu0
      %v1165 = vadd.f32 %v368, %v1164
      %v1166 = vpop.f32.mrb[0].mxu0
      %1167 = vmatprep.mubr.bf16.mxu0 0
      %1168 = vmatmul.mubr.bf16.gmra.mrb[0].mxu0 %v794
      %v1169 = vpop.f32.mrb[0].mxu0
      %v1170 = vadd.f32 %v368, %v1169
      %v1171 = vpop.f32.mrb[0].mxu0
      %v1172 = vpop.f32.mrb[0].mxu0
      %v1173 = vadd.f32 %v368, %v1172
      %v1174 = vpop.f32.mrb[0].mxu0
      %1175 = vmatprep.mubr.bf16.mxu0 0
      %1176 = vmatmul.mubr.bf16.gmra.mrb[0].mxu0 %v797
      %v1177 = vpop.f32.mrb[0].mxu0
      %v1178 = vadd.f32 %v368, %v1177
      %v1179 = vpop.f32.mrb[0].mxu0
      %v1180 = vpop.f32.mrb[0].mxu0
      %v1181 = vadd.f32 %v368, %v1180
      %v1182 = vpop.f32.mrb[0].mxu0
      %1183 = vmatprep.mubr.bf16.mxu0 0
      %1184 = vmatmul.mubr.bf16.gmra.mrb[0].mxu0 %v800
      %v1185 = vpop.f32.mrb[0].mxu0
      %v1186 = vadd.f32 %v368, %v1185
      %v1187 = vpop.f32.mrb[0].mxu0
      %v1188 = vpop.f32.mrb[0].mxu0
      %v1189 = vadd.f32 %v368, %v1188
      %v1190 = vpop.f32.mrb[0].mxu0
      %1191 = vmatprep.mubr.bf16.mxu0 0
      %1192 = vmatmul.mubr.bf16.gmra.mrb[0].mxu0 %v803
      %v1193 = vpop.f32.mrb[0].mxu0
      %v1194 = vadd.f32 %v368, %v1193
      %v1195 = vpop.f32.mrb[0].mxu0
      %v1196 = vpop.f32.mrb[0].mxu0
      %v1197 = vadd.f32 %v368, %v1196
      %v1198 = vpop.f32.mrb[0].mxu0
      %1199 = vmatprep.mubr.bf16.mxu0 0
      %1200 = vmatmul.mubr.bf16.gmra.mrb[0].mxu0 %v806
      %v1201 = vpop.f32.mrb[0].mxu0
      %v1202 = vadd.f32 %v368, %v1201
      %v1203 = vpop.f32.mrb[0].mxu0
      %v1204 = vpop.f32.mrb[0].mxu0
      %v1205 = vadd.f32 %v368, %v1204
      %v1206 = vpop.f32.mrb[0].mxu0
      %1207 = vmatprep.mubr.bf16.mxu0 0
      %1208 = vmatmul.mubr.bf16.gmra.mrb[0].mxu0 %v809
      %v1209 = vpop.f32.mrb[0].mxu0
      %v1210 = vadd.f32 %v368, %v1209
      %v1211 = vpop.f32.mrb[0].mxu0
      %v1212 = vpop.f32.mrb[0].mxu0
      %v1213 = vadd.f32 %v368, %v1212
      %v1214 = vpop.f32.mrb[0].mxu0
      %1215 = vmatprep.mubr.bf16.mxu0 0
      %1216 = vmatmul.mubr.bf16.gmra.mrb[0].mxu0 %v812
      %v1217 = vpop.f32.mrb[0].mxu0
      %v1218 = vadd.f32 %v368, %v1217
      %v1219 = vpop.f32.mrb[0].mxu0
      %v1220 = vpop.f32.mrb[0].mxu0
      %v1221 = vadd.f32 %v368, %v1220
      %v1222 = vpop.f32.mrb[0].mxu0
      %1223 = vmatprep.mubr.bf16.mxu0 0
      %1224 = vmatmul.mubr.bf16.gmra.mrb[0].mxu0 %v815
      %v1225 = vpop.f32.mrb[0].mxu0
      %v1226 = vadd.f32 %v368, %v1225
      %v1227 = vpop.f32.mrb[0].mxu0
      %v1228 = vpop.f32.mrb[0].mxu0
      %v1229 = vadd.f32 %v368, %v1228
      %v1230 = vpop.f32.mrb[0].mxu0
      %1231 = vmatprep.mubr.bf16.mxu0 0
      %1232 = vmatmul.mubr.bf16.gmra.mrb[0].mxu0 %v818
      %v1233 = vpop.f32.mrb[0].mxu0
      %v1234 = vadd.f32 %v368, %v1233
      %v1235 = vpop.f32.mrb[0].mxu0
      %v1236 = vpop.f32.mrb[0].mxu0
      %v1237 = vadd.f32 %v368, %v1236
      %v1238 = vpop.f32.mrb[0].mxu0
      %1239 = vmatprep.mubr.bf16.mxu0 0
      %1240 = vmatmul.mubr.bf16.gmra.mrb[0].mxu0 %v821
      %v1241 = vpop.f32.mrb[0].mxu0
      %v1242 = vadd.f32 %v368, %v1241
      %v1243 = vpop.f32.mrb[0].mxu0
      %v1244 = vpop.f32.mrb[0].mxu0
      %v1245 = vadd.f32 %v368, %v1244
      %v1246 = vpop.f32.mrb[0].mxu0
      %1247 = vmatprep.mubr.bf16.mxu0 0
      %1248 = vmatmul.mubr.bf16.gmra.mrb[0].mxu0 %v824
      %v1249 = vpop.f32.mrb[0].mxu0
      %v1250 = vadd.f32 %v368, %v1249
      %v1251 = vpop.f32.mrb[0].mxu0
      %v1252 = vpop.f32.mrb[0].mxu0
      %v1253 = vadd.f32 %v368, %v1252
      %v1254 = vpop.f32.mrb[0].mxu0
      %1255 = vmatprep.mubr.bf16.mxu0 0
      %1256 = vmatmul.mubr.bf16.gmra.mrb[0].mxu0 %v827
      %v1257 = vpop.f32.mrb[0].mxu0
      %v1258 = vadd.f32 %v368, %v1257
      %v1259 = vpop.f32.mrb[0].mxu0
      %v1260 = vpop.f32.mrb[0].mxu0
      %v1261 = vadd.f32 %v368, %v1260
      %v1262 = vpop.f32.mrb[0].mxu0
      %1263 = vmatprep.mubr.bf16.mxu0 0
      %1264 = vmatmul.mubr.bf16.gmra.mrb[0].mxu0 %v830
      %v1265 = vpop.f32.mrb[0].mxu0
      %v1266 = vadd.f32 %v368, %v1265
      %v1267 = vpop.f32.mrb[0].mxu0
      %v1268 = vpop.f32.mrb[0].mxu0
      %v1269 = vadd.f32 %v368, %v1268
      %v1270 = vpop.f32.mrb[0].mxu0
      %1271 = vmatprep.mubr.bf16.mxu0 0
      %1272 = vmatmul.mubr.bf16.gmra.mrb[0].mxu0 %v833
      %v1273 = vpop.f32.mrb[0].mxu0
      %v1274 = vadd.f32 %v368, %v1273
      %v1275 = vpop.f32.mrb[0].mxu0
      %v1276 = vpop.f32.mrb[0].mxu0
      %v1277 = vadd.f32 %v368, %v1276
      %v1278 = vpop.f32.mrb[0].mxu0
      %1279 = vmatprep.mubr.bf16.mxu0 0
      %1280 = vmatmul.mubr.bf16.gmra.mrb[0].mxu0 %v836
      %v1281 = vpop.f32.mrb[0].mxu0
      %v1282 = vadd.f32 %v368, %v1281
      %v1283 = vpop.f32.mrb[0].mxu0
      %v1284 = vpop.f32.mrb[0].mxu0
      %v1285 = vadd.f32 %v368, %v1284
      %v1286 = vpop.f32.mrb[0].mxu0
      %1287 = vmatprep.mubr.bf16.mxu0 0
      %1288 = vmatmul.mubr.bf16.gmra.mrb[0].mxu0 %v839
      %v1289 = vpop.f32.mrb[0].mxu0
      %v1290 = vadd.f32 %v368, %v1289
      %v1291 = vpop.f32.mrb[0].mxu0
      %v1292 = vpop.f32.mrb[0].mxu0
      %v1293 = vadd.f32 %v368, %v1292
      %v1294 = vpop.f32.mrb[0].mxu0
      %1295 = vmatprep.mubr.bf16.mxu0 0
      %1296 = vmatmul.mubr.bf16.gmra.mrb[0].mxu0 %v842
      %v1297 = vpop.f32.mrb[0].mxu0
      %v1298 = vadd.f32 %v368, %v1297
      %v1299 = vpop.f32.mrb[0].mxu0
      %v1300 = vpop.f32.mrb[0].mxu0
      %v1301 = vadd.f32 %v368, %v1300
      %v1302 = vpop.f32.mrb[0].mxu0
      %1303 = vmatprep.mubr.bf16.mxu0 0
      %1304 = vmatmul.mubr.bf16.gmra.mrb[0].mxu0 %v845
      %v1305 = vpop.f32.mrb[0].mxu0
      %v1306 = vadd.f32 %v368, %v1305
      %v1307 = vpop.f32.mrb[0].mxu0
      %v1308 = vpop.f32.mrb[0].mxu0
      %v1309 = vadd.f32 %v368, %v1308
      %v1310 = vpop.f32.mrb[0].mxu0
      %1311 = vmatprep.mubr.bf16.mxu0 0
      %1312 = vmatmul.mubr.bf16.gmra.mrb[0].mxu0 %v848
      %v1313 = vpop.f32.mrb[0].mxu0
      %v1314 = vadd.f32 %v368, %v1313
      %v1315 = vpop.f32.mrb[0].mxu0
      %v1316 = vpop.f32.mrb[0].mxu0
      %v1317 = vadd.f32 %v368, %v1316
      %v1318 = vpop.f32.mrb[0].mxu0
      %1319 = vmatprep.mubr.bf16.mxu0 0
      %1320 = vmatmul.mubr.bf16.gmra.mrb[0].mxu0 %v851
      %v1321 = vpop.f32.mrb[0].mxu0
      %v1322 = vadd.f32 %v368, %v1321
      %v1323 = vpop.f32.mrb[0].mxu0
      %v1324 = vpop.f32.mrb[0].mxu0
      %v1325 = vadd.f32 %v368, %v1324
      %v1326 = vpop.f32.mrb[0].mxu0
      %1327 = vmatprep.mubr.bf16.mxu0 0
      %1328 = vmatmul.mubr.bf16.gmra.mrb[0].mxu0 %v854
      %v1329 = vpop.f32.mrb[0].mxu0
      %v1330 = vadd.f32 %v368, %v1329
      %v1331 = vpop.f32.mrb[0].mxu0
      %v1332 = vpop.f32.mrb[0].mxu0
      %v1333 = vadd.f32 %v368, %v1332
      %v1334 = vpop.f32.mrb[0].mxu0
      %1335 = vmatprep.mubr.bf16.mxu0 0
      %1336 = vmatmul.mubr.bf16.gmra.mrb[0].mxu0 %v857
      %v1337 = vpop.f32.mrb[0].mxu0
      %v1338 = vadd.f32 %v368, %v1337
      %v1339 = vpop.f32.mrb[0].mxu0
      %v1340 = vpop.f32.mrb[0].mxu0
      %v1341 = vadd.f32 %v368, %v1340
      %v1342 = vpop.f32.mrb[0].mxu0
      %1343 = vmatprep.mubr.bf16.mxu0 0
      %1344 = vmatmul.mubr.bf16.gmra.mrb[0].mxu0 %v860
      %v1345 = vpop.f32.mrb[0].mxu0
      %v1346 = vadd.f32 %v368, %v1345
      %v1347 = vpop.f32.mrb[0].mxu0
      %v1348 = vpop.f32.mrb[0].mxu0
      %v1349 = vadd.f32 %v368, %v1348
      %v1350 = vpop.f32.mrb[0].mxu0
      %1351 = vmatprep.mubr.bf16.mxu0 0
      %1352 = vmatmul.mubr.bf16.gmra.mrb[0].mxu0 %v863
      %v1353 = vpop.f32.mrb[0].mxu0
      %v1354 = vadd.f32 %v368, %v1353
      %v1355 = vpop.f32.mrb[0].mxu0
      %v1356 = vpop.f32.mrb[0].mxu0
      %v1357 = vadd.f32 %v368, %v1356
      %v1358 = vpop.f32.mrb[0].mxu0
      %1359 = vmatprep.mubr.bf16.mxu0 0
      %1360 = vmatmul.mubr.bf16.gmra.mrb[0].mxu0 %v866
      %v1361 = vpop.f32.mrb[0].mxu0
      %v1362 = vadd.f32 %v368, %v1361
      %v1363 = vpop.f32.mrb[0].mxu0
      %v1364 = vpop.f32.mrb[0].mxu0
      %v1365 = vadd.f32 %v368, %v1364
      %v1366 = vpop.f32.mrb[0].mxu0
      %1367 = vmatprep.mubr.bf16.mxu0 0
      %1368 = vmatmul.mubr.bf16.gmra.mrb[0].mxu0 %v869
      %v1369 = vpop.f32.mrb[0].mxu0
      %v1370 = vadd.f32 %v368, %v1369
      %v1371 = vpop.f32.mrb[0].mxu0
      %v1372 = vpop.f32.mrb[0].mxu0
      %v1373 = vadd.f32 %v368, %v1372
      %v1374 = vpop.f32.mrb[0].mxu0
      %1375 = vmatprep.mubr.bf16.mxu0 0
      %1376 = vmatmul.mubr.bf16.gmra.mrb[0].mxu0 %v872
      %v1377 = vpop.f32.mrb[0].mxu0
      %v1378 = vadd.f32 %v368, %v1377
      %v1379 = vpop.f32.mrb[0].mxu0
      %v1380 = vpop.f32.mrb[0].mxu0
      %v1381 = vadd.f32 %v368, %v1380
      %v1382 = vpop.f32.mrb[0].mxu0
      %1383 = vmatprep.mubr.bf16.mxu0 0
      %1384 = vmatmul.mubr.bf16.gmra.mrb[0].mxu0 %v875
      %v1385 = vpop.f32.mrb[0].mxu0
      %v1386 = vadd.f32 %v368, %v1385
      %v1387 = vpop.f32.mrb[0].mxu0
      %v1388 = vpop.f32.mrb[0].mxu0
      %v1389 = vadd.f32 %v368, %v1388
      %v1390 = vpop.f32.mrb[0].mxu0
      %1391 = vmatprep.mubr.bf16.mxu0 0
      %1392 = vmatmul.mubr.bf16.gmra.mrb[0].mxu0 %v878
      %v1393 = vpop.f32.mrb[0].mxu0
      %v1394 = vadd.f32 %v368, %v1393
      %v1395 = vpop.f32.mrb[0].mxu0
      %v1396 = vpop.f32.mrb[0].mxu0
      %v1397 = vadd.f32 %v368, %v1396
      %v1398 = vpop.f32.mrb[0].mxu0
      %1399 = vmatprep.mubr.bf16.mxu0 0
      %1400 = vmatmul.mubr.bf16.gmra.mrb[0].mxu0 %v881
      %v1401 = vpop.f32.mrb[0].mxu0
      %v1402 = vadd.f32 %v368, %v1401
      %v1403 = vpop.f32.mrb[0].mxu0
      %v1404 = vpop.f32.mrb[0].mxu0
      %v1405 = vadd.f32 %v368, %v1404
      %v1406 = vpop.f32.mrb[0].mxu0
      %1407 = vmatprep.mubr.bf16.mxu0 0
      %1408 = vmatmul.mubr.bf16.gmra.mrb[0].mxu0 %v884
      %v1409 = vpop.f32.mrb[0].mxu0
      %v1410 = vadd.f32 %v368, %v1409
      %v1411 = vpop.f32.mrb[0].mxu0
      %v1412 = vpop.f32.mrb[0].mxu0
      %v1413 = vadd.f32 %v368, %v1412
      %v1414 = vpop.f32.mrb[0].mxu0
      %1415 = vmatprep.mubr.bf16.mxu0 0
      %1416 = vmatmul.mubr.bf16.gmra.mrb[0].mxu0 %v887
      %v1417 = vpop.f32.mrb[0].mxu0
      %v1418 = vadd.f32 %v368, %v1417
      %v1419 = vpop.f32.mrb[0].mxu0
      %v1420 = vpop.f32.mrb[0].mxu0
      %v1421 = vadd.f32 %v368, %v1420
      %v1422 = vpop.f32.mrb[0].mxu0
      %1423 = vmatprep.mubr.bf16.mxu0 0
      %1424 = vmatmul.mubr.bf16.gmra.mrb[0].mxu0 %v890
      %v1425 = vpop.f32.mrb[0].mxu0
      %v1426 = vadd.f32 %v368, %v1425
      %v1427 = vpop.f32.mrb[0].mxu0
      %v1428 = vpop.f32.mrb[0].mxu0
      %v1429 = vadd.f32 %v368, %v1428
      %v1430 = vpop.f32.mrb[0].mxu0
      %1431 = vmatprep.mubr.bf16.mxu0 0
      %1432 = vmatmul.mubr.bf16.gmra.mrb[0].mxu0 %v893
      %v1433 = vpop.f32.mrb[0].mxu0
      %v1434 = vadd.f32 %v368, %v1433
      %v1435 = vpop.f32.mrb[0].mxu0
      %v1436 = vpop.f32.mrb[0].mxu0
      %v1437 = vadd.f32 %v368, %v1436
      %v1438 = vpop.f32.mrb[0].mxu0
      %1439 = vdwg.mxu0
      %v1440 = vtanh.pop %v930
      %v1441 = vtanh.pop %v933
      %v1442 = vtanh.pop %v938
      %v1443 = vtanh.pop %v941
      %v1444 = vtanh.pop %v946
      %v1445 = vtanh.pop %v949
      %v1446 = vtanh.pop %v954
      %v1447 = vtanh.pop %v957
      %v1448 = vtanh.pop %v962
      %v1449 = vtanh.pop %v965
      %v1450 = vtanh.pop %v970
      %v1451 = vtanh.pop %v973
      %v1452 = vtanh.pop %v978
      %v1453 = vtanh.pop %v981
      %v1454 = vtanh.pop %v986
      %v1455 = vtanh.pop %v989
      %v1456 = vtanh.pop %v994
      %v1457 = vtanh.pop %v997
      %v1458 = vtanh.pop %v1002
      %v1459 = vtanh.pop %v1005
      %v1460 = vtanh.pop %v1010
      %v1461 = vtanh.pop %v1013
      %v1462 = vtanh.pop %v1018
      %v1463 = vtanh.pop %v1021
      %v1464 = vtanh.pop %v1026
      %v1465 = vtanh.pop %v1029
      %v1466 = vtanh.pop %v1034
      %v1467 = vtanh.pop %v1037
      %v1468 = vtanh.pop %v1042
      %v1469 = vtanh.pop %v1045
      %v1470 = vtanh.pop %v1050
      %v1471 = vtanh.pop %v1053
      %v1472 = vtanh.pop %v1058
      %v1473 = vtanh.pop %v1061
      %v1474 = vtanh.pop %v1066
      %v1475 = vtanh.pop %v1069
      %v1476 = vtanh.pop %v1074
      %v1477 = vtanh.pop %v1077
      %v1478 = vtanh.pop %v1082
      %v1479 = vtanh.pop %v1085
      %v1480 = vtanh.pop %v1090
      %v1481 = vtanh.pop %v1093
      %v1482 = vtanh.pop %v1098
      %v1483 = vtanh.pop %v1101
      %v1484 = vtanh.pop %v1106
      %v1485 = vtanh.pop %v1109
      %v1486 = vtanh.pop %v1114
      %v1487 = vtanh.pop %v1117
      %v1488 = vtanh.pop %v1122
      %v1489 = vtanh.pop %v1125
      %v1490 = vtanh.pop %v1130
      %v1491 = vtanh.pop %v1133
      %v1492 = vtanh.pop %v1138
      %v1493 = vtanh.pop %v1141
      %v1494 = vtanh.pop %v1146
      %v1495 = vtanh.pop %v1149
      %v1496 = vtanh.pop %v1154
      %v1497 = vtanh.pop %v1157
      %v1498 = vtanh.pop %v1162
      %v1499 = vtanh.pop %v1165
      %v1500 = vtanh.pop %v1170
      %v1501 = vtanh.pop %v1173
      %v1502 = vtanh.pop %v1178
      %v1503 = vtanh.pop %v1181
      %v1504 = vtanh.pop %v1186
      %v1505 = vtanh.pop %v1189
      %v1506 = vtanh.pop %v1194
      %v1507 = vtanh.pop %v1197
      %v1508 = vtanh.pop %v1202
      %v1509 = vtanh.pop %v1205
      %v1510 = vtanh.pop %v1210
      %v1511 = vtanh.pop %v1213
      %v1512 = vtanh.pop %v1218
      %v1513 = vtanh.pop %v1221
      %v1514 = vtanh.pop %v1226
      %v1515 = vtanh.pop %v1229
      %v1516 = vtanh.pop %v1234
      %v1517 = vtanh.pop %v1237
      %v1518 = vtanh.pop %v1242
      %v1519 = vtanh.pop %v1245
      %v1520 = vtanh.pop %v1250
      %v1521 = vtanh.pop %v1253
      %v1522 = vtanh.pop %v1258
      %v1523 = vtanh.pop %v1261
      %v1524 = vtanh.pop %v1266
      %v1525 = vtanh.pop %v1269
      %v1526 = vtanh.pop %v1274
      %v1527 = vtanh.pop %v1277
      %v1528 = vtanh.pop %v1282
      %v1529 = vtanh.pop %v1285
      %v1530 = vtanh.pop %v1290
      %v1531 = vtanh.pop %v1293
      %v1532 = vtanh.pop %v1298
      %v1533 = vtanh.pop %v1301
      %v1534 = vtanh.pop %v1306
      %v1535 = vtanh.pop %v1309
      %v1536 = vtanh.pop %v1314
      %v1537 = vtanh.pop %v1317
      %v1538 = vtanh.pop %v1322
      %v1539 = vtanh.pop %v1325
      %v1540 = vtanh.pop %v1330
      %v1541 = vtanh.pop %v1333
      %v1542 = vtanh.pop %v1338
      %v1543 = vtanh.pop %v1341
      %v1544 = vtanh.pop %v1346
      %v1545 = vtanh.pop %v1349
      %v1546 = vtanh.pop %v1354
      %v1547 = vtanh.pop %v1357
      %v1548 = vtanh.pop %v1362
      %v1549 = vtanh.pop %v1365
      %v1550 = vtanh.pop %v1370
      %v1551 = vtanh.pop %v1373
      %v1552 = vtanh.pop %v1378
      %v1553 = vtanh.pop %v1381
      %v1554 = vtanh.pop %v1386
      %v1555 = vtanh.pop %v1389
      %v1556 = vtanh.pop %v1394
      %v1557 = vtanh.pop %v1397
      %v1558 = vtanh.pop %v1402
      %v1559 = vtanh.pop %v1405
      %v1560 = vtanh.pop %v1410
      %v1561 = vtanh.pop %v1413
      %v1562 = vtanh.pop %v1418
      %v1563 = vtanh.pop %v1421
      %v1564 = vtanh.pop %v1426
      %v1565 = vtanh.pop %v1429
      %v1566 = vtanh.pop %v1434
      %v1567 = vtanh.pop %v1437
      %v1568 = vpack.c.bf16 %v1441, %v1440
      %v1569 = vpack.c.bf16 %v1443, %v1442
      %v1570 = vpack.c.bf16 %v1445, %v1444
      %v1571 = vpack.c.bf16 %v1447, %v1446
      %v1572 = vpack.c.bf16 %v1449, %v1448
      %v1573 = vpack.c.bf16 %v1451, %v1450
      %v1574 = vpack.c.bf16 %v1453, %v1452
      %v1575 = vpack.c.bf16 %v1455, %v1454
      %v1576 = vpack.c.bf16 %v1457, %v1456
      %v1577 = vpack.c.bf16 %v1459, %v1458
      %v1578 = vpack.c.bf16 %v1461, %v1460
      %v1579 = vpack.c.bf16 %v1463, %v1462
      %v1580 = vpack.c.bf16 %v1465, %v1464
      %v1581 = vpack.c.bf16 %v1467, %v1466
      %v1582 = vpack.c.bf16 %v1469, %v1468
      %v1583 = vpack.c.bf16 %v1471, %v1470
      %v1584 = vpack.c.bf16 %v1473, %v1472
      %v1585 = vpack.c.bf16 %v1475, %v1474
      %v1586 = vpack.c.bf16 %v1477, %v1476
      %v1587 = vpack.c.bf16 %v1479, %v1478
      %v1588 = vpack.c.bf16 %v1481, %v1480
      %v1589 = vpack.c.bf16 %v1483, %v1482
      %v1590 = vpack.c.bf16 %v1485, %v1484
      %v1591 = vpack.c.bf16 %v1487, %v1486
      %v1592 = vpack.c.bf16 %v1489, %v1488
      %v1593 = vpack.c.bf16 %v1491, %v1490
      %v1594 = vpack.c.bf16 %v1493, %v1492
      %v1595 = vpack.c.bf16 %v1495, %v1494
      %v1596 = vpack.c.bf16 %v1497, %v1496
      %v1597 = vpack.c.bf16 %v1499, %v1498
      %v1598 = vpack.c.bf16 %v1501, %v1500
      %v1599 = vpack.c.bf16 %v1503, %v1502
      %v1600 = vpack.c.bf16 %v1505, %v1504
      %v1601 = vpack.c.bf16 %v1507, %v1506
      %v1602 = vpack.c.bf16 %v1509, %v1508
      %v1603 = vpack.c.bf16 %v1511, %v1510
      %v1604 = vpack.c.bf16 %v1513, %v1512
      %v1605 = vpack.c.bf16 %v1515, %v1514
      %v1606 = vpack.c.bf16 %v1517, %v1516
      %v1607 = vpack.c.bf16 %v1519, %v1518
      %v1608 = vpack.c.bf16 %v1521, %v1520
      %v1609 = vpack.c.bf16 %v1523, %v1522
      %v1610 = vpack.c.bf16 %v1525, %v1524
      %v1611 = vpack.c.bf16 %v1527, %v1526
      %v1612 = vpack.c.bf16 %v1529, %v1528
      %v1613 = vpack.c.bf16 %v1531, %v1530
      %v1614 = vpack.c.bf16 %v1533, %v1532
      %v1615 = vpack.c.bf16 %v1535, %v1534
      %v1616 = vpack.c.bf16 %v1537, %v1536
      %v1617 = vpack.c.bf16 %v1539, %v1538
      %v1618 = vpack.c.bf16 %v1541, %v1540
      %v1619 = vpack.c.bf16 %v1543, %v1542
      %v1620 = vpack.c.bf16 %v1545, %v1544
      %v1621 = vpack.c.bf16 %v1547, %v1546
      %v1622 = vpack.c.bf16 %v1549, %v1548
      %v1623 = vpack.c.bf16 %v1551, %v1550
      %v1624 = vpack.c.bf16 %v1553, %v1552
      %v1625 = vpack.c.bf16 %v1555, %v1554
      %v1626 = vpack.c.bf16 %v1557, %v1556
      %v1627 = vpack.c.bf16 %v1559, %v1558
      %v1628 = vpack.c.bf16 %v1561, %v1560
      %v1629 = vpack.c.bf16 %v1563, %v1562
      %v1630 = vpack.c.bf16 %v1565, %v1564
      %v1631 = vpack.c.bf16 %v1567, %v1566
      %v1696 = vunpack.c.l.b16 %v1568
      %v1697 = vunpack.c.h.b16 %v1568
      %v1698 = vunpack.c.l.b16 %v1569
      %v1699 = vunpack.c.h.b16 %v1569
      %v1700 = vunpack.c.l.b16 %v1570
      %v1701 = vunpack.c.h.b16 %v1570
      %v1702 = vunpack.c.l.b16 %v1571
      %v1703 = vunpack.c.h.b16 %v1571
      %v1704 = vunpack.c.l.b16 %v1572
      %v1705 = vunpack.c.h.b16 %v1572
      %v1706 = vunpack.c.l.b16 %v1573
      %v1707 = vunpack.c.h.b16 %v1573
      %v1708 = vunpack.c.l.b16 %v1574
      %v1709 = vunpack.c.h.b16 %v1574
      %v1710 = vunpack.c.l.b16 %v1575
      %v1711 = vunpack.c.h.b16 %v1575
      %v1712 = vunpack.c.l.b16 %v1576
      %v1713 = vunpack.c.h.b16 %v1576
      %v1714 = vunpack.c.l.b16 %v1577
      %v1715 = vunpack.c.h.b16 %v1577
      %v1716 = vunpack.c.l.b16 %v1578
      %v1717 = vunpack.c.h.b16 %v1578
      %v1718 = vunpack.c.l.b16 %v1579
      %v1719 = vunpack.c.h.b16 %v1579
      %v1720 = vunpack.c.l.b16 %v1580
      %v1721 = vunpack.c.h.b16 %v1580
      %v1722 = vunpack.c.l.b16 %v1581
      %v1723 = vunpack.c.h.b16 %v1581
      %v1724 = vunpack.c.l.b16 %v1582
      %v1725 = vunpack.c.h.b16 %v1582
      %v1726 = vunpack.c.l.b16 %v1583
      %v1727 = vunpack.c.h.b16 %v1583
      %v1728 = vunpack.c.l.b16 %v1584
      %v1729 = vunpack.c.h.b16 %v1584
      %v1730 = vunpack.c.l.b16 %v1585
      %v1731 = vunpack.c.h.b16 %v1585
      %v1732 = vunpack.c.l.b16 %v1586
      %v1733 = vunpack.c.h.b16 %v1586
      %v1734 = vunpack.c.l.b16 %v1587
      %v1735 = vunpack.c.h.b16 %v1587
      %v1736 = vunpack.c.l.b16 %v1588
      %v1737 = vunpack.c.h.b16 %v1588
      %v1738 = vunpack.c.l.b16 %v1589
      %v1739 = vunpack.c.h.b16 %v1589
      %v1740 = vunpack.c.l.b16 %v1590
      %v1741 = vunpack.c.h.b16 %v1590
      %v1742 = vunpack.c.l.b16 %v1591
      %v1743 = vunpack.c.h.b16 %v1591
      %v1744 = vunpack.c.l.b16 %v1592
      %v1745 = vunpack.c.h.b16 %v1592
      %v1746 = vunpack.c.l.b16 %v1593
      %v1747 = vunpack.c.h.b16 %v1593
      %v1748 = vunpack.c.l.b16 %v1594
      %v1749 = vunpack.c.h.b16 %v1594
      %v1750 = vunpack.c.l.b16 %v1595
      %v1751 = vunpack.c.h.b16 %v1595
      %v1752 = vunpack.c.l.b16 %v1596
      %v1753 = vunpack.c.h.b16 %v1596
      %v1754 = vunpack.c.l.b16 %v1597
      %v1755 = vunpack.c.h.b16 %v1597
      %v1756 = vunpack.c.l.b16 %v1598
      %v1757 = vunpack.c.h.b16 %v1598
      %v1758 = vunpack.c.l.b16 %v1599
      %v1759 = vunpack.c.h.b16 %v1599
      %v1760 = vunpack.c.l.b16 %v1600
      %v1761 = vunpack.c.h.b16 %v1600
      %v1762 = vunpack.c.l.b16 %v1601
      %v1763 = vunpack.c.h.b16 %v1601
      %v1764 = vunpack.c.l.b16 %v1602
      %v1765 = vunpack.c.h.b16 %v1602
      %v1766 = vunpack.c.l.b16 %v1603
      %v1767 = vunpack.c.h.b16 %v1603
      %v1768 = vunpack.c.l.b16 %v1604
      %v1769 = vunpack.c.h.b16 %v1604
      %v1770 = vunpack.c.l.b16 %v1605
      %v1771 = vunpack.c.h.b16 %v1605
      %v1772 = vunpack.c.l.b16 %v1606
      %v1773 = vunpack.c.h.b16 %v1606
      %v1774 = vunpack.c.l.b16 %v1607
      %v1775 = vunpack.c.h.b16 %v1607
      %v1776 = vunpack.c.l.b16 %v1608
      %v1777 = vunpack.c.h.b16 %v1608
      %v1778 = vunpack.c.l.b16 %v1609
      %v1779 = vunpack.c.h.b16 %v1609
      %v1780 = vunpack.c.l.b16 %v1610
      %v1781 = vunpack.c.h.b16 %v1610
      %v1782 = vunpack.c.l.b16 %v1611
      %v1783 = vunpack.c.h.b16 %v1611
      %v1784 = vunpack.c.l.b16 %v1612
      %v1785 = vunpack.c.h.b16 %v1612
      %v1786 = vunpack.c.l.b16 %v1613
      %v1787 = vunpack.c.h.b16 %v1613
      %v1788 = vunpack.c.l.b16 %v1614
      %v1789 = vunpack.c.h.b16 %v1614
      %v1790 = vunpack.c.l.b16 %v1615
      %v1791 = vunpack.c.h.b16 %v1615
      %v1792 = vunpack.c.l.b16 %v1616
      %v1793 = vunpack.c.h.b16 %v1616
      %v1794 = vunpack.c.l.b16 %v1617
      %v1795 = vunpack.c.h.b16 %v1617
      %v1796 = vunpack.c.l.b16 %v1618
      %v1797 = vunpack.c.h.b16 %v1618
      %v1798 = vunpack.c.l.b16 %v1619
      %v1799 = vunpack.c.h.b16 %v1619
      %v1800 = vunpack.c.l.b16 %v1620
      %v1801 = vunpack.c.h.b16 %v1620
      %v1802 = vunpack.c.l.b16 %v1621
      %v1803 = vunpack.c.h.b16 %v1621
      %v1804 = vunpack.c.l.b16 %v1622
      %v1805 = vunpack.c.h.b16 %v1622
      %v1806 = vunpack.c.l.b16 %v1623
      %v1807 = vunpack.c.h.b16 %v1623
      %v1808 = vunpack.c.l.b16 %v1624
      %v1809 = vunpack.c.h.b16 %v1624
      %v1810 = vunpack.c.l.b16 %v1625
      %v1811 = vunpack.c.h.b16 %v1625
      %v1812 = vunpack.c.l.b16 %v1626
      %v1813 = vunpack.c.h.b16 %v1626
      %v1814 = vunpack.c.l.b16 %v1627
      %v1815 = vunpack.c.h.b16 %v1627
      %v1816 = vunpack.c.l.b16 %v1628
      %v1817 = vunpack.c.h.b16 %v1628
      %v1818 = vunpack.c.l.b16 %v1629
      %v1819 = vunpack.c.h.b16 %v1629
      %v1820 = vunpack.c.l.b16 %v1630
      %v1821 = vunpack.c.h.b16 %v1630
      %v1822 = vunpack.c.l.b16 %v1631
      %v1823 = vunpack.c.h.b16 %v1631
      %v1824 = vpack.c.b16 %v1696, %v1696
      %v1825 = vpack.c.b16 %v1697, %v1697
      %v1826 = vpack.c.b16 %v1698, %v1698
      %v1827 = vpack.c.b16 %v1699, %v1699
      %v1828 = vpack.c.b16 %v1700, %v1700
      %v1829 = vpack.c.b16 %v1701, %v1701
      %v1830 = vpack.c.b16 %v1702, %v1702
      %v1831 = vpack.c.b16 %v1703, %v1703
      %v1832 = vpack.c.b16 %v1704, %v1704
      %v1833 = vpack.c.b16 %v1705, %v1705
      %v1834 = vpack.c.b16 %v1706, %v1706
      %v1835 = vpack.c.b16 %v1707, %v1707
      %v1836 = vpack.c.b16 %v1708, %v1708
      %v1837 = vpack.c.b16 %v1709, %v1709
      %v1838 = vpack.c.b16 %v1710, %v1710
      %v1839 = vpack.c.b16 %v1711, %v1711
      %v1840 = vpack.c.b16 %v1712, %v1712
      %v1841 = vpack.c.b16 %v1713, %v1713
      %v1842 = vpack.c.b16 %v1714, %v1714
      %v1843 = vpack.c.b16 %v1715, %v1715
      %v1844 = vpack.c.b16 %v1716, %v1716
      %v1845 = vpack.c.b16 %v1717, %v1717
      %v1846 = vpack.c.b16 %v1718, %v1718
      %v1847 = vpack.c.b16 %v1719, %v1719
      %v1848 = vpack.c.b16 %v1720, %v1720
      %v1849 = vpack.c.b16 %v1721, %v1721
      %v1850 = vpack.c.b16 %v1722, %v1722
      %v1851 = vpack.c.b16 %v1723, %v1723
      %v1852 = vpack.c.b16 %v1724, %v1724
      %v1853 = vpack.c.b16 %v1725, %v1725
      %v1854 = vpack.c.b16 %v1726, %v1726
      %v1855 = vpack.c.b16 %v1727, %v1727
      %v1856 = vpack.c.b16 %v1728, %v1728
      %v1857 = vpack.c.b16 %v1729, %v1729
      %v1858 = vpack.c.b16 %v1730, %v1730
      %v1859 = vpack.c.b16 %v1731, %v1731
      %v1860 = vpack.c.b16 %v1732, %v1732
      %v1861 = vpack.c.b16 %v1733, %v1733
      %v1862 = vpack.c.b16 %v1734, %v1734
      %v1863 = vpack.c.b16 %v1735, %v1735
      %v1864 = vpack.c.b16 %v1736, %v1736
      %v1865 = vpack.c.b16 %v1737, %v1737
      %v1866 = vpack.c.b16 %v1738, %v1738
      %v1867 = vpack.c.b16 %v1739, %v1739
      %v1868 = vpack.c.b16 %v1740, %v1740
      %v1869 = vpack.c.b16 %v1741, %v1741
      %v1870 = vpack.c.b16 %v1742, %v1742
      %v1871 = vpack.c.b16 %v1743, %v1743
      %v1872 = vpack.c.b16 %v1744, %v1744
      %v1873 = vpack.c.b16 %v1745, %v1745
      %v1874 = vpack.c.b16 %v1746, %v1746
      %v1875 = vpack.c.b16 %v1747, %v1747
      %v1876 = vpack.c.b16 %v1748, %v1748
      %v1877 = vpack.c.b16 %v1749, %v1749
      %v1878 = vpack.c.b16 %v1750, %v1750
      %v1879 = vpack.c.b16 %v1751, %v1751
      %v1880 = vpack.c.b16 %v1752, %v1752
      %v1881 = vpack.c.b16 %v1753, %v1753
      %v1882 = vpack.c.b16 %v1754, %v1754
      %v1883 = vpack.c.b16 %v1755, %v1755
      %v1884 = vpack.c.b16 %v1756, %v1756
      %v1885 = vpack.c.b16 %v1757, %v1757
      %v1886 = vpack.c.b16 %v1758, %v1758
      %v1887 = vpack.c.b16 %v1759, %v1759
      %v1888 = vpack.c.b16 %v1760, %v1760
      %v1889 = vpack.c.b16 %v1761, %v1761
      %v1890 = vpack.c.b16 %v1762, %v1762
      %v1891 = vpack.c.b16 %v1763, %v1763
      %v1892 = vpack.c.b16 %v1764, %v1764
      %v1893 = vpack.c.b16 %v1765, %v1765
      %v1894 = vpack.c.b16 %v1766, %v1766
      %v1895 = vpack.c.b16 %v1767, %v1767
      %v1896 = vpack.c.b16 %v1768, %v1768
      %v1897 = vpack.c.b16 %v1769, %v1769
      %v1898 = vpack.c.b16 %v1770, %v1770
      %v1899 = vpack.c.b16 %v1771, %v1771
      %v1900 = vpack.c.b16 %v1772, %v1772
      %v1901 = vpack.c.b16 %v1773, %v1773
      %v1902 = vpack.c.b16 %v1774, %v1774
      %v1903 = vpack.c.b16 %v1775, %v1775
      %v1904 = vpack.c.b16 %v1776, %v1776
      %v1905 = vpack.c.b16 %v1777, %v1777
      %v1906 = vpack.c.b16 %v1778, %v1778
      %v1907 = vpack.c.b16 %v1779, %v1779
      %v1908 = vpack.c.b16 %v1780, %v1780
      %v1909 = vpack.c.b16 %v1781, %v1781
      %v1910 = vpack.c.b16 %v1782, %v1782
      %v1911 = vpack.c.b16 %v1783, %v1783
      %v1912 = vpack.c.b16 %v1784, %v1784
      %v1913 = vpack.c.b16 %v1785, %v1785
      %v1914 = vpack.c.b16 %v1786, %v1786
      %v1915 = vpack.c.b16 %v1787, %v1787
      %v1916 = vpack.c.b16 %v1788, %v1788
      %v1917 = vpack.c.b16 %v1789, %v1789
      %v1918 = vpack.c.b16 %v1790, %v1790
      %v1919 = vpack.c.b16 %v1791, %v1791
      %v1920 = vpack.c.b16 %v1792, %v1792
      %v1921 = vpack.c.b16 %v1793, %v1793
      %v1922 = vpack.c.b16 %v1794, %v1794
      %v1923 = vpack.c.b16 %v1795, %v1795
      %v1924 = vpack.c.b16 %v1796, %v1796
      %v1925 = vpack.c.b16 %v1797, %v1797
      %v1926 = vpack.c.b16 %v1798, %v1798
      %v1927 = vpack.c.b16 %v1799, %v1799
      %v1928 = vpack.c.b16 %v1800, %v1800
      %v1929 = vpack.c.b16 %v1801, %v1801
      %v1930 = vpack.c.b16 %v1802, %v1802
      %v1931 = vpack.c.b16 %v1803, %v1803
      %v1932 = vpack.c.b16 %v1804, %v1804
      %v1933 = vpack.c.b16 %v1805, %v1805
      %v1934 = vpack.c.b16 %v1806, %v1806
      %v1935 = vpack.c.b16 %v1807, %v1807
      %v1936 = vpack.c.b16 %v1808, %v1808
      %v1937 = vpack.c.b16 %v1809, %v1809
      %v1938 = vpack.c.b16 %v1810, %v1810
      %v1939 = vpack.c.b16 %v1811, %v1811
      %v1940 = vpack.c.b16 %v1812, %v1812
      %v1941 = vpack.c.b16 %v1813, %v1813
      %v1942 = vpack.c.b16 %v1814, %v1814
      %v1943 = vpack.c.b16 %v1815, %v1815
      %v1944 = vpack.c.b16 %v1816, %v1816
      %v1945 = vpack.c.b16 %v1817, %v1817
      %v1946 = vpack.c.b16 %v1818, %v1818
      %v1947 = vpack.c.b16 %v1819, %v1819
      %v1948 = vpack.c.b16 %v1820, %v1820
      %v1949 = vpack.c.b16 %v1821, %v1821
      %v1950 = vpack.c.b16 %v1822, %v1822
      %v1951 = vpack.c.b16 %v1823, %v1823
      %2080 = vst [vmem:[%s228] sm:$0xf] %v1824
      %2081 = vst [vmem:[%s228 + $0x4] sm:$0xf] %v1825
      %2082 = vst [vmem:[%s228 + $0x8] sm:$0xf] %v1826
      %2083 = vst [vmem:[%s228 + $0xc] sm:$0xf] %v1827
      %2084 = vst [vmem:[%s228 + $0x10] sm:$0xf] %v1828
      %2085 = vst [vmem:[%s228 + $0x14] sm:$0xf] %v1829
      %2086 = vst [vmem:[%s228 + $0x18] sm:$0xf] %v1830
      %2087 = vst [vmem:[%s228 + $0x1c] sm:$0xf] %v1831
      %2088 = vst [vmem:[%s228 + $0x20] sm:$0xf] %v1832
      %2089 = vst [vmem:[%s228 + $0x24] sm:$0xf] %v1833
      %2090 = vst [vmem:[%s228 + $0x28] sm:$0xf] %v1834
      %2091 = vst [vmem:[%s228 + $0x2c] sm:$0xf] %v1835
      %2092 = vst [vmem:[%s228 + $0x30] sm:$0xf] %v1836
      %2093 = vst [vmem:[%s228 + $0x34] sm:$0xf] %v1837
      %2094 = vst [vmem:[%s228 + $0x38] sm:$0xf] %v1838
      %2095 = vst [vmem:[%s228 + $0x3c] sm:$0xf] %v1839
      %2096 = vst [vmem:[%s228 + $0x40] sm:$0xf] %v1840
      %2097 = vst [vmem:[%s228 + $0x44] sm:$0xf] %v1841
      %2098 = vst [vmem:[%s228 + $0x48] sm:$0xf] %v1842
      %2099 = vst [vmem:[%s228 + $0x4c] sm:$0xf] %v1843
      %2100 = vst [vmem:[%s228 + $0x50] sm:$0xf] %v1844
      %2101 = vst [vmem:[%s228 + $0x54] sm:$0xf] %v1845
      %2102 = vst [vmem:[%s228 + $0x58] sm:$0xf] %v1846
      %2103 = vst [vmem:[%s228 + $0x5c] sm:$0xf] %v1847
      %2104 = vst [vmem:[%s228 + $0x60] sm:$0xf] %v1848
      %2105 = vst [vmem:[%s228 + $0x64] sm:$0xf] %v1849
      %2106 = vst [vmem:[%s228 + $0x68] sm:$0xf] %v1850
      %2107 = vst [vmem:[%s228 + $0x6c] sm:$0xf] %v1851
      %2108 = vst [vmem:[%s228 + $0x70] sm:$0xf] %v1852
      %2109 = vst [vmem:[%s228 + $0x74] sm:$0xf] %v1853
      %2110 = vst [vmem:[%s228 + $0x78] sm:$0xf] %v1854
      %2111 = vst [vmem:[%s228 + $0x7c] sm:$0xf] %v1855
      %2112 = vst [vmem:[%s228 + $0x80] sm:$0xf] %v1856
      %2113 = vst [vmem:[%s228 + $0x84] sm:$0xf] %v1857
      %2114 = vst [vmem:[%s228 + $0x88] sm:$0xf] %v1858
      %2115 = vst [vmem:[%s228 + $0x8c] sm:$0xf] %v1859
      %2116 = vst [vmem:[%s228 + $0x90] sm:$0xf] %v1860
      %2117 = vst [vmem:[%s228 + $0x94] sm:$0xf] %v1861
      %2118 = vst [vmem:[%s228 + $0x98] sm:$0xf] %v1862
      %2119 = vst [vmem:[%s228 + $0x9c] sm:$0xf] %v1863
      %2120 = vst [vmem:[%s228 + $0xa0] sm:$0xf] %v1864
      %2121 = vst [vmem:[%s228 + $0xa4] sm:$0xf] %v1865
      %2122 = vst [vmem:[%s228 + $0xa8] sm:$0xf] %v1866
      %2123 = vst [vmem:[%s228 + $0xac] sm:$0xf] %v1867
      %2124 = vst [vmem:[%s228 + $0xb0] sm:$0xf] %v1868
      %2125 = vst [vmem:[%s228 + $0xb4] sm:$0xf] %v1869
      %2126 = vst [vmem:[%s228 + $0xb8] sm:$0xf] %v1870
      %2127 = vst [vmem:[%s228 + $0xbc] sm:$0xf] %v1871
      %2128 = vst [vmem:[%s228 + $0xc0] sm:$0xf] %v1872
      %2129 = vst [vmem:[%s228 + $0xc4] sm:$0xf] %v1873
      %2130 = vst [vmem:[%s228 + $0xc8] sm:$0xf] %v1874
      %2131 = vst [vmem:[%s228 + $0xcc] sm:$0xf] %v1875
      %2132 = vst [vmem:[%s228 + $0xd0] sm:$0xf] %v1876
      %2133 = vst [vmem:[%s228 + $0xd4] sm:$0xf] %v1877
      %2134 = vst [vmem:[%s228 + $0xd8] sm:$0xf] %v1878
      %2135 = vst [vmem:[%s228 + $0xdc] sm:$0xf] %v1879
      %2136 = vst [vmem:[%s228 + $0xe0] sm:$0xf] %v1880
      %2137 = vst [vmem:[%s228 + $0xe4] sm:$0xf] %v1881
      %2138 = vst [vmem:[%s228 + $0xe8] sm:$0xf] %v1882
      %2139 = vst [vmem:[%s228 + $0xec] sm:$0xf] %v1883
      %2140 = vst [vmem:[%s228 + $0xf0] sm:$0xf] %v1884
      %2141 = vst [vmem:[%s228 + $0xf4] sm:$0xf] %v1885
      %2142 = vst [vmem:[%s228 + $0xf8] sm:$0xf] %v1886
      %2143 = vst [vmem:[%s228 + $0xfc] sm:$0xf] %v1887
      %2144 = vst [vmem:[%s228 + $0x100] sm:$0xf] %v1888
      %2145 = vst [vmem:[%s228 + $0x104] sm:$0xf] %v1889
      %2146 = vst [vmem:[%s228 + $0x108] sm:$0xf] %v1890
      %2147 = vst [vmem:[%s228 + $0x10c] sm:$0xf] %v1891
      %2148 = vst [vmem:[%s228 + $0x110] sm:$0xf] %v1892
      %2149 = vst [vmem:[%s228 + $0x114] sm:$0xf] %v1893
      %2150 = vst [vmem:[%s228 + $0x118] sm:$0xf] %v1894
      %2151 = vst [vmem:[%s228 + $0x11c] sm:$0xf] %v1895
      %2152 = vst [vmem:[%s228 + $0x120] sm:$0xf] %v1896
      %2153 = vst [vmem:[%s228 + $0x124] sm:$0xf] %v1897
      %2154 = vst [vmem:[%s228 + $0x128] sm:$0xf] %v1898
      %2155 = vst [vmem:[%s228 + $0x12c] sm:$0xf] %v1899
      %2156 = vst [vmem:[%s228 + $0x130] sm:$0xf] %v1900
      %2157 = vst [vmem:[%s228 + $0x134] sm:$0xf] %v1901
      %2158 = vst [vmem:[%s228 + $0x138] sm:$0xf] %v1902
      %2159 = vst [vmem:[%s228 + $0x13c] sm:$0xf] %v1903
      %2160 = vst [vmem:[%s228 + $0x140] sm:$0xf] %v1904
      %2161 = vst [vmem:[%s228 + $0x144] sm:$0xf] %v1905
      %2162 = vst [vmem:[%s228 + $0x148] sm:$0xf] %v1906
      %2163 = vst [vmem:[%s228 + $0x14c] sm:$0xf] %v1907
      %2164 = vst [vmem:[%s228 + $0x150] sm:$0xf] %v1908
      %2165 = vst [vmem:[%s228 + $0x154] sm:$0xf] %v1909
      %2166 = vst [vmem:[%s228 + $0x158] sm:$0xf] %v1910
      %2167 = vst [vmem:[%s228 + $0x15c] sm:$0xf] %v1911
      %2168 = vst [vmem:[%s228 + $0x160] sm:$0xf] %v1912
      %2169 = vst [vmem:[%s228 + $0x164] sm:$0xf] %v1913
      %2170 = vst [vmem:[%s228 + $0x168] sm:$0xf] %v1914
      %2171 = vst [vmem:[%s228 + $0x16c] sm:$0xf] %v1915
      %2172 = vst [vmem:[%s228 + $0x170] sm:$0xf] %v1916
      %2173 = vst [vmem:[%s228 + $0x174] sm:$0xf] %v1917
      %2174 = vst [vmem:[%s228 + $0x178] sm:$0xf] %v1918
      %2175 = vst [vmem:[%s228 + $0x17c] sm:$0xf] %v1919
      %2176 = vst [vmem:[%s228 + $0x180] sm:$0xf] %v1920
      %2177 = vst [vmem:[%s228 + $0x184] sm:$0xf] %v1921
      %2178 = vst [vmem:[%s228 + $0x188] sm:$0xf] %v1922
      %2179 = vst [vmem:[%s228 + $0x18c] sm:$0xf] %v1923
      %2180 = vst [vmem:[%s228 + $0x190] sm:$0xf] %v1924
      %2181 = vst [vmem:[%s228 + $0x194] sm:$0xf] %v1925
      %2182 = vst [vmem:[%s228 + $0x198] sm:$0xf] %v1926
      %2183 = vst [vmem:[%s228 + $0x19c] sm:$0xf] %v1927
      %2184 = vst [vmem:[%s228 + $0x1a0] sm:$0xf] %v1928
      %2185 = vst [vmem:[%s228 + $0x1a4] sm:$0xf] %v1929
      %2186 = vst [vmem:[%s228 + $0x1a8] sm:$0xf] %v1930
      %2187 = vst [vmem:[%s228 + $0x1ac] sm:$0xf] %v1931
      %2188 = vst [vmem:[%s228 + $0x1b0] sm:$0xf] %v1932
      %2189 = vst [vmem:[%s228 + $0x1b4] sm:$0xf] %v1933
      %2190 = vst [vmem:[%s228 + $0x1b8] sm:$0xf] %v1934
      %2191 = vst [vmem:[%s228 + $0x1bc] sm:$0xf] %v1935
      %2192 = vst [vmem:[%s228 + $0x1c0] sm:$0xf] %v1936
      %2193 = vst [vmem:[%s228 + $0x1c4] sm:$0xf] %v1937
      %2194 = vst [vmem:[%s228 + $0x1c8] sm:$0xf] %v1938
      %2195 = vst [vmem:[%s228 + $0x1cc] sm:$0xf] %v1939
      %2196 = vst [vmem:[%s228 + $0x1d0] sm:$0xf] %v1940
      %2197 = vst [vmem:[%s228 + $0x1d4] sm:$0xf] %v1941
      %2198 = vst [vmem:[%s228 + $0x1d8] sm:$0xf] %v1942
      %2199 = vst [vmem:[%s228 + $0x1dc] sm:$0xf] %v1943
      %2200 = vst [vmem:[%s228 + $0x1e0] sm:$0xf] %v1944
      %2201 = vst [vmem:[%s228 + $0x1e4] sm:$0xf] %v1945
      %2202 = vst [vmem:[%s228 + $0x1e8] sm:$0xf] %v1946
      %2203 = vst [vmem:[%s228 + $0x1ec] sm:$0xf] %v1947
      %2204 = vst [vmem:[%s228 + $0x1f0] sm:$0xf] %v1948
      %2205 = vst [vmem:[%s228 + $0x1f4] sm:$0xf] %v1949
      %2206 = vst [vmem:[%s228 + $0x1f8] sm:$0xf] %v1950
      %2207 = vst [vmem:[%s228 + $0x1fc] sm:$0xf] %v1951
      %s2208 = smul.u32 128, %s19
      %p2209 = scmp.lt.s32.totalorder %s18, 3
      %s2210 = scalar_select %p2209, %s18, 3
      %p2211 = scmp.lt.s32.totalorder %s2208, 255
      %s2212 = scalar_select %p2211, %s2208, 255
      %s2213 = smul.addr %s2210, 256
      %s2214 = sadd.s32 %s2212, %s2213
      %s2215 = smul.addr %s2214, 4
      %s2216 = scalar_lea.vmem %s3, %s2215
      // Predicated region
      $region33: #{_lambda_.9} parent=31 // pred_check
        %p2217 = pneg %p121
      $region34: #{_lambda_.9} parent=31 // pred_check_branch
        %2219 = sbr.rel (%p2217) target = $region36
      $region35: #{_lambda_.9} parent=31 // pred_region
        %s2220 = smul.u32 128, %s19
      $region36: #{_lambda_.9} parent=31 // pred_fallthru
        _
    $region32: #{_lambda_.9} parent=5 // pred_fallthru
      _
    %p2221 = scmp.le.s32.totalorder 2, %s9
    // Predicated region
    $region37: #{_lambda_.9} parent=5 // pred_check
      %p2222 = pneg %p2221
    $region38: #{_lambda_.9} parent=5 // pred_check_branch
      %2224 = sbr.rel (%p2222) target = $region40
    $region39: #{_lambda_.9} parent=5 // pred_region
      %s2225 = ssub.s32 %s9, 2
      // Predicated region
      $region41: #{_lambda_.9} parent=39 // pred_check
        %p2226 = pneg %p127
      $region42: #{_lambda_.9} parent=39 // pred_check_branch
        %2228 = sbr.rel (%p2226) target = $region44
      $region43: #{_lambda_.9} parent=39 // pred_region
        %s2229 = smul.u32 128, %s21
        %p2230 = scmp.lt.s32.totalorder %s20, 3
        %s2231 = scalar_select %p2230, %s20, 3
        %p2232 = scmp.lt.s32.totalorder %s2229, 255
        %s2233 = scalar_select %p2232, %s2229, 255
        %s2234 = smul.addr %s2231, 256
        %s2235 = sadd.s32 %s2233, %s2234
        %s2236 = smul.addr %s2235, 4
        %s2237 = scalar_lea.vmem %s3, %s2236
      $region44: #{_lambda_.9} parent=39 // pred_fallthru
        _
    $region40: #{_lambda_.9} parent=5 // pred_fallthru
      _
  $region6: #{_lambda_.9} parent=0 // loop_footer
    %s13 = sadd.s32 1, %s9
  $region7: #{_lambda_.9} parent=0 // loop_footer_branch
    %8 = sbr.rel target = $region3
  $region8: #{_lambda_.9} parent=0 // loop_exit
    _

</llo_original>
